<compile_context>
chip_gen: v6e
topology: v6e:2x2x1
jax: 0.10.0
libtpu: 0.0.40
codegen_flags: <defaults>
</compile_context>

<pallas_src>
import functools

import jax
import jax.numpy as jnp
from jax import lax
from jax.experimental import pallas as pl
from jax.experimental.pallas import tpu as pltpu

KSIZE = 7
PAD = KSIZE // 2


def _round_up(x, m):
    return (x + m - 1) // m * m


def _largest_divisor_leq(n, cap):
    cap = max(1, min(n, cap))
    for d in range(cap, 0, -1):
        if n % d == 0:
            return d
    return 1


def _vmem_budgets():
    """Return (x-block byte budget, vmem_limit_bytes) keyed on physical VMEM."""
    vmem_bytes = 64 * 1024 * 1024          # conservative default (v7x-sized)
    try:
        info = pltpu.get_tpu_info()
        v = getattr(info, "vmem_capacity_bytes", None)
        if v:
            vmem_bytes = int(v)
    except Exception:
        pass
    if vmem_bytes >= 96 * 1024 * 1024:     # v5e / v6e: 128 MiB physical VMEM
        return 8 * 1024 * 1024, 64 * 1024 * 1024
    return 4 * 1024 * 1024, 32 * 1024 * 1024   # v7x: 64 MiB physical VMEM


def _choose_tiles(N, C, HW, itemsize, x_block_budget):
    # Batch tile: divisor of N, <= 8 (sublane depth), and leaving >= 2 steps on
    # the "parallel" grid axis whenever N >= 2 so v7x shards across both
    # TensorCores (v5e/v6e are single-core and unaffected).
    nb_cap = 8 if N < 2 else min(8, max(1, N // 2))
    nb = _largest_divisor_leq(N, nb_cap)
    # Channel tile: keep the (nb, tc, HW) block within budget (the pipeline
    # double-buffers it).  tc is either all of C or a multiple of 8 so the
    # block's second-minor dim stays sublane-aligned; a non-divisible C is
    # handled by a masked tail step rather than by shrinking tc.
    tc = x_block_budget // max(1, nb * HW * itemsize)
    if tc >= C:
        tc = C
    else:
        tc = min(C, max(8, tc - tc % 8))
    return nb, tc


def _spatial_attn_kernel(w_ref, x_ref, o_ref, sum_scr, max_scr, avg_cvs, max_cvs,
                         *, n_chan, tc, H, W, Wl):
    # w_ref   : SMEM (2*K*K,) f32        conv1 weight, flattened (c, kh, kw)
    # x_ref   : VMEM (NB, TC, H*W)       one channel tile, spatial dims in lanes
    # o_ref   : VMEM (1, NB, H*W)        resident across the C axis
    # sum_scr : VMEM (NB, H*W) f32       running channel sum
    # max_scr : VMEM (NB, H*W) f32       running channel max
    # avg_cvs : VMEM (Hp, NB, Wl) f32    zero-padded conv canvas, "avg" channel
    # max_cvs : VMEM (Hp, NB, Wl) f32    zero-padded conv canvas, "max" channel
    c_idx = pl.program_id(1)
    n_c = pl.num_programs(1)

    @pl.when(c_idx == 0)
    def _init():
        sum_scr[...] = jnp.zeros_like(sum_scr)
        max_scr[...] = jnp.full_like(max_scr, -jnp.inf)

    # --- streaming channel reduction over a lane-dense (NB, TC, HW) block ---
    x = x_ref[...]
    if n_chan % tc:                        # static: C not divisible -> mask the tail
        ch = c_idx * tc + lax.broadcasted_iota(jnp.int32, x.shape, 1)
        valid = ch < n_chan
        xs = jnp.where(valid, x, jnp.zeros_like(x))
        xm = jnp.where(valid, x, jnp.full_like(x, -jnp.inf))
    else:
        xs, xm = x, x
    sum_scr[...] += jnp.sum(xs, axis=1, dtype=jnp.float32)
    max_scr[...] = jnp.maximum(max_scr[...],
                               jnp.max(xm, axis=1).astype(jnp.float32))

    # --- finalize: 7x7 conv (2 -> 1 channel, zero pad 3, no bias) + sigmoid ---
    @pl.when(c_idx == n_c - 1)
    def _finalize():
        NB = sum_scr.shape[0]

        # Scatter the reduced maps into zero-padded canvases: image row h goes
        # to canvas row PAD + h at lanes [0, W); lanes [W, Wl) and the PAD rows
        # stay zero, so the lane rolls below wrap into zeros (free zero pad).
        avg_cvs[...] = jnp.zeros_like(avg_cvs)
        max_cvs[...] = jnp.zeros_like(max_cvs)
        avg_flat = sum_scr[...] * (1.0 / n_chan)          # (NB, HW) f32
        max_flat = max_scr[...]
        for h in range(H):
            lo = h * W
            avg_cvs[PAD + h, :, 0:W] = lax.slice(avg_flat, (0, lo), (NB, lo + W))
            max_cvs[PAD + h, :, 0:W] = lax.slice(max_flat, (0, lo), (NB, lo + W))

        # Hoist all 98 conv weights out of the tap loops (scalar SMEM reads).
        wv = [[[w_ref[c * KSIZE * KSIZE + kh * KSIZE + kw]
                for kw in range(KSIZE)]
               for kh in range(KSIZE)]
              for c in range(2)]

        # Shift-and-accumulate conv: reduce the 7 kw taps of each (channel, kh)
        # slice into a local value, then fold into one global accumulator
        # (14 global adds instead of 98 read-modify-writes).
        acc = None
        for c, cvs in enumerate((avg_cvs, max_cvs)):
            cv = cvs[...]                                  # (Hp, NB, Wl) f32
            for kh in range(KSIZE):
                fph = lax.slice(cv, (kh, 0, 0), (kh + H, NB, Wl))  # (H, NB, Wl)
                local = None
                for kw in range(KSIZE):
                    d = kw - PAD
                    if d == 0:
                        shifted = fph
                    elif d > 0:            # shifted[j] = fph[j + d]  (no wrap)
                        shifted = pltpu.roll(fph, shift=Wl - d, axis=2)
                    else:                  # shifted[j] = fph[j + d]; j+d<0 wraps to zeros
                        shifted = pltpu.roll(fph, shift=-d, axis=2)
                    term = wv[c][kh][kw] * shifted
                    local = term if local is None else local + term
                acc = local if acc is None else acc + local          # (H, NB, Wl)

        # Re-pack rows into a lane-dense (NB, H*W) slab, activate, store once.
        out_flat = jnp.concatenate([acc[i, :, :W] for i in range(H)], axis=-1)
        o_ref[0] = jax.nn.sigmoid(out_flat).astype(o_ref.dtype)


def spatial_attention(x, weight):
    """x: (N, C, H, W); weight: (1, 2, K, K) -> (N, 1, H, W), same dtype as x."""
    N, C, H, W = x.shape
    HW = H * W
    Wl = _round_up(W + PAD, 128)           # lane-aligned conv canvas width
    Hp = H + 2 * PAD

    w_flat = weight.reshape(-1).astype(jnp.float32)        # (2*K*K,)
    x_flat = x.reshape(N, C, HW)                           # spatial dims -> lanes

    x_budget, vmem_limit = _vmem_budgets()
    nb, tc = _choose_tiles(N, C, HW, jnp.dtype(x.dtype).itemsize, x_budget)

    out = pl.pallas_call(
        functools.partial(_spatial_attn_kernel,
                          n_chan=C, tc=tc, H=H, W=W, Wl=Wl),
        out_shape=jax.ShapeDtypeStruct((N // nb, nb, HW), x.dtype),
        grid=(N // nb, pl.cdiv(C, tc)),
        in_specs=[
            pl.BlockSpec(memory_space=pltpu.MemorySpace.SMEM),         # weights
            pl.BlockSpec((nb, tc, HW), lambda n, c: (n, c, 0)),        # x tile
        ],
        out_specs=pl.BlockSpec((1, nb, HW), lambda n, c: (n, 0, 0)),
        scratch_shapes=[
            pltpu.VMEM((nb, HW), jnp.float32),      # running channel sum
            pltpu.VMEM((nb, HW), jnp.float32),      # running channel max
            pltpu.VMEM((Hp, nb, Wl), jnp.float32),  # conv canvas (avg channel)
            pltpu.VMEM((Hp, nb, Wl), jnp.float32),  # conv canvas (max channel)
        ],
        compiler_params=pltpu.CompilerParams(
            dimension_semantics=("parallel", "arbitrary"),
            vmem_limit_bytes=vmem_limit,
        ),
    )(w_flat, x_flat)
    return out.reshape(N, 1, H, W)


def spatial_attention_reference(x, weight):
    """Pure-JAX reference matching the PyTorch forward."""
    avg = jnp.mean(x, axis=1, keepdims=True)
    mx = jnp.max(x, axis=1, keepdims=True)
    cat = jnp.concatenate([avg, mx], axis=1)                # (N, 2, H, W)
    out = lax.conv_general_dilated(
        cat, weight, window_strides=(1, 1),
        padding=[(PAD, PAD), (PAD, PAD)],
        dimension_numbers=("NCHW", "OIHW", "NCHW"),
    )
    return jax.nn.sigmoid(out)


if __name__ == "__main__":
    key = jax.random.PRNGKey(0)
    kx, kw = jax.random.split(key)

    N, C, H, W = 2, 4, 16, 16
    x = jax.random.normal(kx, (N, C, H, W), dtype=jnp.float32)
    # Deterministic synthetic conv1 weight (shape per nn.Conv2d(2, 1, 7, bias=False)).
    weight = jax.random.normal(kw, (1, 2, KSIZE, KSIZE), dtype=jnp.float32) * 0.1

    out = spatial_attention(x, weight)
    out = jax.block_until_ready(out)

    ref = spatial_attention_reference(x, weight)
    assert out.shape == (N, 1, H, W)
    assert jnp.allclose(out, ref, atol=1e-4, rtol=1e-4), "mismatch vs reference"

    print("KERNEL_OK")
</pallas_src>

<mosaic_0001>
module attributes {stable_mosaic.version = 11 : i64} {
  func.func @_spatial_attn_kernel(%arg0: i32, %arg1: i32, %arg2: memref<98xf32, #tpu.memory_space<smem>>, %arg3: memref<1x4x256xf32, #tpu.memory_space<vmem>>, %arg4: memref<1x1x256xf32, #tpu.memory_space<vmem>>, %arg5: memref<1x256xf32, #tpu.memory_space<vmem>>, %arg6: memref<1x256xf32, #tpu.memory_space<vmem>>, %arg7: memref<22x1x128xf32, #tpu.memory_space<vmem>>, %arg8: memref<22x1x128xf32, #tpu.memory_space<vmem>>) attributes {dimension_semantics = [#tpu.dimension_semantics<parallel>, #tpu.dimension_semantics<arbitrary>], iteration_bounds = array<i64: 2, 1>, scalar_prefetch = 0 : i64, scratch_operands = 4 : i64, tpu.core_type = #tpu.core_type<tc>, window_params = [{transform_indices = @transform_0, window_bounds = array<i64: 98>}, {transform_indices = @transform_1, window_bounds = array<i64: 1, 4, 256>}, {transform_indices = @transform_2, window_bounds = array<i64: 1, 1, 256>}]} {
    %c0_i32 = arith.constant 0 : i32
    %0 = arith.cmpi eq, %arg1, %c0_i32 : i32
    %1 = arith.extui %0 : i1 to i32
    %c0_i32_0 = arith.constant 0 : i32
    %2 = arith.cmpi ne, %1, %c0_i32_0 : i32
    scf.if %2 {
      %cst_14 = arith.constant 0.000000e+00 : f32
      %15 = vector.broadcast %cst_14 : f32 to vector<1x256xf32>
      %c0_15 = arith.constant 0 : index
      %c0_16 = arith.constant 0 : index
      %16 = vector.load %arg5[%c0_15, %c0_16] : memref<1x256xf32, #tpu.memory_space<vmem>>, vector<1x256xf32>
      tpu.vector_store %arg5[%c0_15, %c0_16], %15 {strides = array<i32>} : memref<1x256xf32, #tpu.memory_space<vmem>>, vector<1x256xf32>,
      %cst_17 = arith.constant 0xFF800000 : f32
      %17 = vector.broadcast %cst_17 : f32 to vector<1x256xf32>
      %c0_18 = arith.constant 0 : index
      %c0_19 = arith.constant 0 : index
      %18 = vector.load %arg6[%c0_18, %c0_19] : memref<1x256xf32, #tpu.memory_space<vmem>>, vector<1x256xf32>
      tpu.vector_store %arg6[%c0_18, %c0_19], %17 {strides = array<i32>} : memref<1x256xf32, #tpu.memory_space<vmem>>, vector<1x256xf32>,
    } else {
    }
    %c0 = arith.constant 0 : index
    %c0_1 = arith.constant 0 : index
    %c0_2 = arith.constant 0 : index
    %3 = vector.load %arg3[%c0, %c0_1, %c0_2] : memref<1x4x256xf32, #tpu.memory_space<vmem>>, vector<1x4x256xf32>
    %c0_3 = arith.constant 0 : index
    %c0_4 = arith.constant 0 : index
    %4 = vector.load %arg5[%c0_3, %c0_4] : memref<1x256xf32, #tpu.memory_space<vmem>>, vector<1x256xf32>
    %cst = arith.constant dense<0.000000e+00> : vector<1x256xf32>
    %5 = vector.multi_reduction <add>, %3, %cst [1] : vector<1x4x256xf32> to vector<1x256xf32>
    %6 = arith.addf %4, %5 : vector<1x256xf32>
    %c0_5 = arith.constant 0 : index
    %c0_6 = arith.constant 0 : index
    %7 = vector.load %arg5[%c0_5, %c0_6] : memref<1x256xf32, #tpu.memory_space<vmem>>, vector<1x256xf32>
    tpu.vector_store %arg5[%c0_5, %c0_6], %6 {strides = array<i32>} : memref<1x256xf32, #tpu.memory_space<vmem>>, vector<1x256xf32>,
    %c0_7 = arith.constant 0 : index
    %c0_8 = arith.constant 0 : index
    %8 = vector.load %arg6[%c0_7, %c0_8] : memref<1x256xf32, #tpu.memory_space<vmem>>, vector<1x256xf32>
    %cst_9 = arith.constant dense<0xFF800000> : vector<1x256xf32>
    %9 = vector.multi_reduction <maximumf>, %3, %cst_9 [1] : vector<1x4x256xf32> to vector<1x256xf32>
    %10 = arith.maximumf %8, %9 : vector<1x256xf32>
    %c0_10 = arith.constant 0 : index
    %c0_11 = arith.constant 0 : index
    %11 = vector.load %arg6[%c0_10, %c0_11] : memref<1x256xf32, #tpu.memory_space<vmem>>, vector<1x256xf32>
    tpu.vector_store %arg6[%c0_10, %c0_11], %10 {strides = array<i32>} : memref<1x256xf32, #tpu.memory_space<vmem>>, vector<1x256xf32>,
    %c0_i32_12 = arith.constant 0 : i32
    %12 = arith.cmpi eq, %arg1, %c0_i32_12 : i32
    %13 = arith.extui %12 : i1 to i32
    %c0_i32_13 = arith.constant 0 : i32
    %14 = arith.cmpi ne, %13, %c0_i32_13 : i32
    scf.if %14 {
      %cst_14 = arith.constant 0.000000e+00 : f32
      %15 = vector.broadcast %cst_14 : f32 to vector<22x1x128xf32>
      %c0_15 = arith.constant 0 : index
      %c0_16 = arith.constant 0 : index
      %c0_17 = arith.constant 0 : index
      %16 = vector.load %arg7[%c0_15, %c0_16, %c0_17] : memref<22x1x128xf32, #tpu.memory_space<vmem>>, vector<22x1x128xf32>
      tpu.vector_store %arg7[%c0_15, %c0_16, %c0_17], %15 {strides = array<i32>} : memref<22x1x128xf32, #tpu.memory_space<vmem>>, vector<22x1x128xf32>,
      %cst_18 = arith.constant 0.000000e+00 : f32
      %17 = vector.broadcast %cst_18 : f32 to vector<22x1x128xf32>
      %c0_19 = arith.constant 0 : index
      %c0_20 = arith.constant 0 : index
      %c0_21 = arith.constant 0 : index
      %18 = vector.load %arg8[%c0_19, %c0_20, %c0_21] : memref<22x1x128xf32, #tpu.memory_space<vmem>>, vector<22x1x128xf32>
      tpu.vector_store %arg8[%c0_19, %c0_20, %c0_21], %17 {strides = array<i32>} : memref<22x1x128xf32, #tpu.memory_space<vmem>>, vector<22x1x128xf32>,
      %c0_22 = arith.constant 0 : index
      %c0_23 = arith.constant 0 : index
      %19 = vector.load %arg5[%c0_22, %c0_23] : memref<1x256xf32, #tpu.memory_space<vmem>>, vector<1x256xf32>
      %cst_24 = arith.constant 2.500000e-01 : f32
      %20 = vector.broadcast %cst_24 : f32 to vector<1x256xf32>
      %21 = arith.mulf %19, %20 : vector<1x256xf32>
      %c0_25 = arith.constant 0 : index
      %c0_26 = arith.constant 0 : index
      %22 = vector.load %arg6[%c0_25, %c0_26] : memref<1x256xf32, #tpu.memory_space<vmem>>, vector<1x256xf32>
      %23 = vector.extract_strided_slice %21 {offsets = [0, 0], sizes = [1, 16], strides = [1, 1]} : vector<1x256xf32> to vector<1x16xf32>
      %c3 = arith.constant 3 : index
      %c0_27 = arith.constant 0 : index
      %c0_28 = arith.constant 0 : index
      %24 = vector.load %arg7[%c3, %c0_27, %c0_28] : memref<22x1x128xf32, #tpu.memory_space<vmem>>, vector<1x1x16xf32>
      %25 = vector.shape_cast %24 : vector<1x1x16xf32> to vector<1x16xf32>
      %26 = vector.shape_cast %23 : vector<1x16xf32> to vector<1x1x16xf32>
      tpu.vector_store %arg7[%c3, %c0_27, %c0_28], %26 {strides = array<i32>} : memref<22x1x128xf32, #tpu.memory_space<vmem>>, vector<1x1x16xf32>,
      %27 = vector.extract_strided_slice %22 {offsets = [0, 0], sizes = [1, 16], strides = [1, 1]} : vector<1x256xf32> to vector<1x16xf32>
      %c3_29 = arith.constant 3 : index
      %c0_30 = arith.constant 0 : index
      %c0_31 = arith.constant 0 : index
      %28 = vector.load %arg8[%c3_29, %c0_30, %c0_31] : memref<22x1x128xf32, #tpu.memory_space<vmem>>, vector<1x1x16xf32>
      %29 = vector.shape_cast %28 : vector<1x1x16xf32> to vector<1x16xf32>
      %30 = vector.shape_cast %27 : vector<1x16xf32> to vector<1x1x16xf32>
      tpu.vector_store %arg8[%c3_29, %c0_30, %c0_31], %30 {strides = array<i32>} : memref<22x1x128xf32, #tpu.memory_space<vmem>>, vector<1x1x16xf32>,
      %31 = vector.extract_strided_slice %21 {offsets = [0, 16], sizes = [1, 16], strides = [1, 1]} : vector<1x256xf32> to vector<1x16xf32>
      %c4 = arith.constant 4 : index
      %c0_32 = arith.constant 0 : index
      %c0_33 = arith.constant 0 : index
      %32 = vector.load %arg7[%c4, %c0_32, %c0_33] : memref<22x1x128xf32, #tpu.memory_space<vmem>>, vector<1x1x16xf32>
      %33 = vector.shape_cast %32 : vector<1x1x16xf32> to vector<1x16xf32>
      %34 = vector.shape_cast %31 : vector<1x16xf32> to vector<1x1x16xf32>
      tpu.vector_store %arg7[%c4, %c0_32, %c0_33], %34 {strides = array<i32>} : memref<22x1x128xf32, #tpu.memory_space<vmem>>, vector<1x1x16xf32>,
      %35 = vector.extract_strided_slice %22 {offsets = [0, 16], sizes = [1, 16], strides = [1, 1]} : vector<1x256xf32> to vector<1x16xf32>
      %c4_34 = arith.constant 4 : index
      %c0_35 = arith.constant 0 : index
      %c0_36 = arith.constant 0 : index
      %36 = vector.load %arg8[%c4_34, %c0_35, %c0_36] : memref<22x1x128xf32, #tpu.memory_space<vmem>>, vector<1x1x16xf32>
      %37 = vector.shape_cast %36 : vector<1x1x16xf32> to vector<1x16xf32>
      %38 = vector.shape_cast %35 : vector<1x16xf32> to vector<1x1x16xf32>
      tpu.vector_store %arg8[%c4_34, %c0_35, %c0_36], %38 {strides = array<i32>} : memref<22x1x128xf32, #tpu.memory_space<vmem>>, vector<1x1x16xf32>,
      %39 = vector.extract_strided_slice %21 {offsets = [0, 32], sizes = [1, 16], strides = [1, 1]} : vector<1x256xf32> to vector<1x16xf32>
      %c5 = arith.constant 5 : index
      %c0_37 = arith.constant 0 : index
      %c0_38 = arith.constant 0 : index
      %40 = vector.load %arg7[%c5, %c0_37, %c0_38] : memref<22x1x128xf32, #tpu.memory_space<vmem>>, vector<1x1x16xf32>
      %41 = vector.shape_cast %40 : vector<1x1x16xf32> to vector<1x16xf32>
      %42 = vector.shape_cast %39 : vector<1x16xf32> to vector<1x1x16xf32>
      tpu.vector_store %arg7[%c5, %c0_37, %c0_38], %42 {strides = array<i32>} : memref<22x1x128xf32, #tpu.memory_space<vmem>>, vector<1x1x16xf32>,
      %43 = vector.extract_strided_slice %22 {offsets = [0, 32], sizes = [1, 16], strides = [1, 1]} : vector<1x256xf32> to vector<1x16xf32>
      %c5_39 = arith.constant 5 : index
      %c0_40 = arith.constant 0 : index
      %c0_41 = arith.constant 0 : index
      %44 = vector.load %arg8[%c5_39, %c0_40, %c0_41] : memref<22x1x128xf32, #tpu.memory_space<vmem>>, vector<1x1x16xf32>
      %45 = vector.shape_cast %44 : vector<1x1x16xf32> to vector<1x16xf32>
      %46 = vector.shape_cast %43 : vector<1x16xf32> to vector<1x1x16xf32>
      tpu.vector_store %arg8[%c5_39, %c0_40, %c0_41], %46 {strides = array<i32>} : memref<22x1x128xf32, #tpu.memory_space<vmem>>, vector<1x1x16xf32>,
      %47 = vector.extract_strided_slice %21 {offsets = [0, 48], sizes = [1, 16], strides = [1, 1]} : vector<1x256xf32> to vector<1x16xf32>
      %c6 = arith.constant 6 : index
      %c0_42 = arith.constant 0 : index
      %c0_43 = arith.constant 0 : index
      %48 = vector.load %arg7[%c6, %c0_42, %c0_43] : memref<22x1x128xf32, #tpu.memory_space<vmem>>, vector<1x1x16xf32>
      %49 = vector.shape_cast %48 : vector<1x1x16xf32> to vector<1x16xf32>
      %50 = vector.shape_cast %47 : vector<1x16xf32> to vector<1x1x16xf32>
      tpu.vector_store %arg7[%c6, %c0_42, %c0_43], %50 {strides = array<i32>} : memref<22x1x128xf32, #tpu.memory_space<vmem>>, vector<1x1x16xf32>,
      %51 = vector.extract_strided_slice %22 {offsets = [0, 48], sizes = [1, 16], strides = [1, 1]} : vector<1x256xf32> to vector<1x16xf32>
      %c6_44 = arith.constant 6 : index
      %c0_45 = arith.constant 0 : index
      %c0_46 = arith.constant 0 : index
      %52 = vector.load %arg8[%c6_44, %c0_45, %c0_46] : memref<22x1x128xf32, #tpu.memory_space<vmem>>, vector<1x1x16xf32>
      %53 = vector.shape_cast %52 : vector<1x1x16xf32> to vector<1x16xf32>
      %54 = vector.shape_cast %51 : vector<1x16xf32> to vector<1x1x16xf32>
      tpu.vector_store %arg8[%c6_44, %c0_45, %c0_46], %54 {strides = array<i32>} : memref<22x1x128xf32, #tpu.memory_space<vmem>>, vector<1x1x16xf32>,
      %55 = vector.extract_strided_slice %21 {offsets = [0, 64], sizes = [1, 16], strides = [1, 1]} : vector<1x256xf32> to vector<1x16xf32>
      %c7 = arith.constant 7 : index
      %c0_47 = arith.constant 0 : index
      %c0_48 = arith.constant 0 : index
      %56 = vector.load %arg7[%c7, %c0_47, %c0_48] : memref<22x1x128xf32, #tpu.memory_space<vmem>>, vector<1x1x16xf32>
      %57 = vector.shape_cast %56 : vector<1x1x16xf32> to vector<1x16xf32>
      %58 = vector.shape_cast %55 : vector<1x16xf32> to vector<1x1x16xf32>
      tpu.vector_store %arg7[%c7, %c0_47, %c0_48], %58 {strides = array<i32>} : memref<22x1x128xf32, #tpu.memory_space<vmem>>, vector<1x1x16xf32>,
      %59 = vector.extract_strided_slice %22 {offsets = [0, 64], sizes = [1, 16], strides = [1, 1]} : vector<1x256xf32> to vector<1x16xf32>
      %c7_49 = arith.constant 7 : index
      %c0_50 = arith.constant 0 : index
      %c0_51 = arith.constant 0 : index
      %60 = vector.load %arg8[%c7_49, %c0_50, %c0_51] : memref<22x1x128xf32, #tpu.memory_space<vmem>>, vector<1x1x16xf32>
      %61 = vector.shape_cast %60 : vector<1x1x16xf32> to vector<1x16xf32>
      %62 = vector.shape_cast %59 : vector<1x16xf32> to vector<1x1x16xf32>
      tpu.vector_store %arg8[%c7_49, %c0_50, %c0_51], %62 {strides = array<i32>} : memref<22x1x128xf32, #tpu.memory_space<vmem>>, vector<1x1x16xf32>,
      %63 = vector.extract_strided_slice %21 {offsets = [0, 80], sizes = [1, 16], strides = [1, 1]} : vector<1x256xf32> to vector<1x16xf32>
      %c8 = arith.constant 8 : index
      %c0_52 = arith.constant 0 : index
      %c0_53 = arith.constant 0 : index
      %64 = vector.load %arg7[%c8, %c0_52, %c0_53] : memref<22x1x128xf32, #tpu.memory_space<vmem>>, vector<1x1x16xf32>
      %65 = vector.shape_cast %64 : vector<1x1x16xf32> to vector<1x16xf32>
      %66 = vector.shape_cast %63 : vector<1x16xf32> to vector<1x1x16xf32>
      tpu.vector_store %arg7[%c8, %c0_52, %c0_53], %66 {strides = array<i32>} : memref<22x1x128xf32, #tpu.memory_space<vmem>>, vector<1x1x16xf32>,
      %67 = vector.extract_strided_slice %22 {offsets = [0, 80], sizes = [1, 16], strides = [1, 1]} : vector<1x256xf32> to vector<1x16xf32>
      %c8_54 = arith.constant 8 : index
      %c0_55 = arith.constant 0 : index
      %c0_56 = arith.constant 0 : index
      %68 = vector.load %arg8[%c8_54, %c0_55, %c0_56] : memref<22x1x128xf32, #tpu.memory_space<vmem>>, vector<1x1x16xf32>
      %69 = vector.shape_cast %68 : vector<1x1x16xf32> to vector<1x16xf32>
      %70 = vector.shape_cast %67 : vector<1x16xf32> to vector<1x1x16xf32>
      tpu.vector_store %arg8[%c8_54, %c0_55, %c0_56], %70 {strides = array<i32>} : memref<22x1x128xf32, #tpu.memory_space<vmem>>, vector<1x1x16xf32>,
      %71 = vector.extract_strided_slice %21 {offsets = [0, 96], sizes = [1, 16], strides = [1, 1]} : vector<1x256xf32> to vector<1x16xf32>
      %c9 = arith.constant 9 : index
      %c0_57 = arith.constant 0 : index
      %c0_58 = arith.constant 0 : index
      %72 = vector.load %arg7[%c9, %c0_57, %c0_58] : memref<22x1x128xf32, #tpu.memory_space<vmem>>, vector<1x1x16xf32>
      %73 = vector.shape_cast %72 : vector<1x1x16xf32> to vector<1x16xf32>
      %74 = vector.shape_cast %71 : vector<1x16xf32> to vector<1x1x16xf32>
      tpu.vector_store %arg7[%c9, %c0_57, %c0_58], %74 {strides = array<i32>} : memref<22x1x128xf32, #tpu.memory_space<vmem>>, vector<1x1x16xf32>,
      %75 = vector.extract_strided_slice %22 {offsets = [0, 96], sizes = [1, 16], strides = [1, 1]} : vector<1x256xf32> to vector<1x16xf32>
      %c9_59 = arith.constant 9 : index
      %c0_60 = arith.constant 0 : index
      %c0_61 = arith.constant 0 : index
      %76 = vector.load %arg8[%c9_59, %c0_60, %c0_61] : memref<22x1x128xf32, #tpu.memory_space<vmem>>, vector<1x1x16xf32>
      %77 = vector.shape_cast %76 : vector<1x1x16xf32> to vector<1x16xf32>
      %78 = vector.shape_cast %75 : vector<1x16xf32> to vector<1x1x16xf32>
      tpu.vector_store %arg8[%c9_59, %c0_60, %c0_61], %78 {strides = array<i32>} : memref<22x1x128xf32, #tpu.memory_space<vmem>>, vector<1x1x16xf32>,
      %79 = vector.extract_strided_slice %21 {offsets = [0, 112], sizes = [1, 16], strides = [1, 1]} : vector<1x256xf32> to vector<1x16xf32>
      %c10 = arith.constant 10 : index
      %c0_62 = arith.constant 0 : index
      %c0_63 = arith.constant 0 : index
      %80 = vector.load %arg7[%c10, %c0_62, %c0_63] : memref<22x1x128xf32, #tpu.memory_space<vmem>>, vector<1x1x16xf32>
      %81 = vector.shape_cast %80 : vector<1x1x16xf32> to vector<1x16xf32>
      %82 = vector.shape_cast %79 : vector<1x16xf32> to vector<1x1x16xf32>
      tpu.vector_store %arg7[%c10, %c0_62, %c0_63], %82 {strides = array<i32>} : memref<22x1x128xf32, #tpu.memory_space<vmem>>, vector<1x1x16xf32>,
      %83 = vector.extract_strided_slice %22 {offsets = [0, 112], sizes = [1, 16], strides = [1, 1]} : vector<1x256xf32> to vector<1x16xf32>
      %c10_64 = arith.constant 10 : index
      %c0_65 = arith.constant 0 : index
      %c0_66 = arith.constant 0 : index
      %84 = vector.load %arg8[%c10_64, %c0_65, %c0_66] : memref<22x1x128xf32, #tpu.memory_space<vmem>>, vector<1x1x16xf32>
      %85 = vector.shape_cast %84 : vector<1x1x16xf32> to vector<1x16xf32>
      %86 = vector.shape_cast %83 : vector<1x16xf32> to vector<1x1x16xf32>
      tpu.vector_store %arg8[%c10_64, %c0_65, %c0_66], %86 {strides = array<i32>} : memref<22x1x128xf32, #tpu.memory_space<vmem>>, vector<1x1x16xf32>,
      %87 = vector.extract_strided_slice %21 {offsets = [0, 128], sizes = [1, 16], strides = [1, 1]} : vector<1x256xf32> to vector<1x16xf32>
      %c11 = arith.constant 11 : index
      %c0_67 = arith.constant 0 : index
      %c0_68 = arith.constant 0 : index
      %88 = vector.load %arg7[%c11, %c0_67, %c0_68] : memref<22x1x128xf32, #tpu.memory_space<vmem>>, vector<1x1x16xf32>
      %89 = vector.shape_cast %88 : vector<1x1x16xf32> to vector<1x16xf32>
      %90 = vector.shape_cast %87 : vector<1x16xf32> to vector<1x1x16xf32>
      tpu.vector_store %arg7[%c11, %c0_67, %c0_68], %90 {strides = array<i32>} : memref<22x1x128xf32, #tpu.memory_space<vmem>>, vector<1x1x16xf32>,
      %91 = vector.extract_strided_slice %22 {offsets = [0, 128], sizes = [1, 16], strides = [1, 1]} : vector<1x256xf32> to vector<1x16xf32>
      %c11_69 = arith.constant 11 : index
      %c0_70 = arith.constant 0 : index
      %c0_71 = arith.constant 0 : index
      %92 = vector.load %arg8[%c11_69, %c0_70, %c0_71] : memref<22x1x128xf32, #tpu.memory_space<vmem>>, vector<1x1x16xf32>
      %93 = vector.shape_cast %92 : vector<1x1x16xf32> to vector<1x16xf32>
      %94 = vector.shape_cast %91 : vector<1x16xf32> to vector<1x1x16xf32>
      tpu.vector_store %arg8[%c11_69, %c0_70, %c0_71], %94 {strides = array<i32>} : memref<22x1x128xf32, #tpu.memory_space<vmem>>, vector<1x1x16xf32>,
      %95 = vector.extract_strided_slice %21 {offsets = [0, 144], sizes = [1, 16], strides = [1, 1]} : vector<1x256xf32> to vector<1x16xf32>
      %c12 = arith.constant 12 : index
      %c0_72 = arith.constant 0 : index
      %c0_73 = arith.constant 0 : index
      %96 = vector.load %arg7[%c12, %c0_72, %c0_73] : memref<22x1x128xf32, #tpu.memory_space<vmem>>, vector<1x1x16xf32>
      %97 = vector.shape_cast %96 : vector<1x1x16xf32> to vector<1x16xf32>
      %98 = vector.shape_cast %95 : vector<1x16xf32> to vector<1x1x16xf32>
      tpu.vector_store %arg7[%c12, %c0_72, %c0_73], %98 {strides = array<i32>} : memref<22x1x128xf32, #tpu.memory_space<vmem>>, vector<1x1x16xf32>,
      %99 = vector.extract_strided_slice %22 {offsets = [0, 144], sizes = [1, 16], strides = [1, 1]} : vector<1x256xf32> to vector<1x16xf32>
      %c12_74 = arith.constant 12 : index
      %c0_75 = arith.constant 0 : index
      %c0_76 = arith.constant 0 : index
      %100 = vector.load %arg8[%c12_74, %c0_75, %c0_76] : memref<22x1x128xf32, #tpu.memory_space<vmem>>, vector<1x1x16xf32>
      %101 = vector.shape_cast %100 : vector<1x1x16xf32> to vector<1x16xf32>
      %102 = vector.shape_cast %99 : vector<1x16xf32> to vector<1x1x16xf32>
      tpu.vector_store %arg8[%c12_74, %c0_75, %c0_76], %102 {strides = array<i32>} : memref<22x1x128xf32, #tpu.memory_space<vmem>>, vector<1x1x16xf32>,
      %103 = vector.extract_strided_slice %21 {offsets = [0, 160], sizes = [1, 16], strides = [1, 1]} : vector<1x256xf32> to vector<1x16xf32>
      %c13 = arith.constant 13 : index
      %c0_77 = arith.constant 0 : index
      %c0_78 = arith.constant 0 : index
      %104 = vector.load %arg7[%c13, %c0_77, %c0_78] : memref<22x1x128xf32, #tpu.memory_space<vmem>>, vector<1x1x16xf32>
      %105 = vector.shape_cast %104 : vector<1x1x16xf32> to vector<1x16xf32>
      %106 = vector.shape_cast %103 : vector<1x16xf32> to vector<1x1x16xf32>
      tpu.vector_store %arg7[%c13, %c0_77, %c0_78], %106 {strides = array<i32>} : memref<22x1x128xf32, #tpu.memory_space<vmem>>, vector<1x1x16xf32>,
      %107 = vector.extract_strided_slice %22 {offsets = [0, 160], sizes = [1, 16], strides = [1, 1]} : vector<1x256xf32> to vector<1x16xf32>
      %c13_79 = arith.constant 13 : index
      %c0_80 = arith.constant 0 : index
      %c0_81 = arith.constant 0 : index
      %108 = vector.load %arg8[%c13_79, %c0_80, %c0_81] : memref<22x1x128xf32, #tpu.memory_space<vmem>>, vector<1x1x16xf32>
      %109 = vector.shape_cast %108 : vector<1x1x16xf32> to vector<1x16xf32>
      %110 = vector.shape_cast %107 : vector<1x16xf32> to vector<1x1x16xf32>
      tpu.vector_store %arg8[%c13_79, %c0_80, %c0_81], %110 {strides = array<i32>} : memref<22x1x128xf32, #tpu.memory_space<vmem>>, vector<1x1x16xf32>,
      %111 = vector.extract_strided_slice %21 {offsets = [0, 176], sizes = [1, 16], strides = [1, 1]} : vector<1x256xf32> to vector<1x16xf32>
      %c14 = arith.constant 14 : index
      %c0_82 = arith.constant 0 : index
      %c0_83 = arith.constant 0 : index
      %112 = vector.load %arg7[%c14, %c0_82, %c0_83] : memref<22x1x128xf32, #tpu.memory_space<vmem>>, vector<1x1x16xf32>
      %113 = vector.shape_cast %112 : vector<1x1x16xf32> to vector<1x16xf32>
      %114 = vector.shape_cast %111 : vector<1x16xf32> to vector<1x1x16xf32>
      tpu.vector_store %arg7[%c14, %c0_82, %c0_83], %114 {strides = array<i32>} : memref<22x1x128xf32, #tpu.memory_space<vmem>>, vector<1x1x16xf32>,
      %115 = vector.extract_strided_slice %22 {offsets = [0, 176], sizes = [1, 16], strides = [1, 1]} : vector<1x256xf32> to vector<1x16xf32>
      %c14_84 = arith.constant 14 : index
      %c0_85 = arith.constant 0 : index
      %c0_86 = arith.constant 0 : index
      %116 = vector.load %arg8[%c14_84, %c0_85, %c0_86] : memref<22x1x128xf32, #tpu.memory_space<vmem>>, vector<1x1x16xf32>
      %117 = vector.shape_cast %116 : vector<1x1x16xf32> to vector<1x16xf32>
      %118 = vector.shape_cast %115 : vector<1x16xf32> to vector<1x1x16xf32>
      tpu.vector_store %arg8[%c14_84, %c0_85, %c0_86], %118 {strides = array<i32>} : memref<22x1x128xf32, #tpu.memory_space<vmem>>, vector<1x1x16xf32>,
      %119 = vector.extract_strided_slice %21 {offsets = [0, 192], sizes = [1, 16], strides = [1, 1]} : vector<1x256xf32> to vector<1x16xf32>
      %c15 = arith.constant 15 : index
      %c0_87 = arith.constant 0 : index
      %c0_88 = arith.constant 0 : index
      %120 = vector.load %arg7[%c15, %c0_87, %c0_88] : memref<22x1x128xf32, #tpu.memory_space<vmem>>, vector<1x1x16xf32>
      %121 = vector.shape_cast %120 : vector<1x1x16xf32> to vector<1x16xf32>
      %122 = vector.shape_cast %119 : vector<1x16xf32> to vector<1x1x16xf32>
      tpu.vector_store %arg7[%c15, %c0_87, %c0_88], %122 {strides = array<i32>} : memref<22x1x128xf32, #tpu.memory_space<vmem>>, vector<1x1x16xf32>,
      %123 = vector.extract_strided_slice %22 {offsets = [0, 192], sizes = [1, 16], strides = [1, 1]} : vector<1x256xf32> to vector<1x16xf32>
      %c15_89 = arith.constant 15 : index
      %c0_90 = arith.constant 0 : index
      %c0_91 = arith.constant 0 : index
      %124 = vector.load %arg8[%c15_89, %c0_90, %c0_91] : memref<22x1x128xf32, #tpu.memory_space<vmem>>, vector<1x1x16xf32>
      %125 = vector.shape_cast %124 : vector<1x1x16xf32> to vector<1x16xf32>
      %126 = vector.shape_cast %123 : vector<1x16xf32> to vector<1x1x16xf32>
      tpu.vector_store %arg8[%c15_89, %c0_90, %c0_91], %126 {strides = array<i32>} : memref<22x1x128xf32, #tpu.memory_space<vmem>>, vector<1x1x16xf32>,
      %127 = vector.extract_strided_slice %21 {offsets = [0, 208], sizes = [1, 16], strides = [1, 1]} : vector<1x256xf32> to vector<1x16xf32>
      %c16 = arith.constant 16 : index
      %c0_92 = arith.constant 0 : index
      %c0_93 = arith.constant 0 : index
      %128 = vector.load %arg7[%c16, %c0_92, %c0_93] : memref<22x1x128xf32, #tpu.memory_space<vmem>>, vector<1x1x16xf32>
      %129 = vector.shape_cast %128 : vector<1x1x16xf32> to vector<1x16xf32>
      %130 = vector.shape_cast %127 : vector<1x16xf32> to vector<1x1x16xf32>
      tpu.vector_store %arg7[%c16, %c0_92, %c0_93], %130 {strides = array<i32>} : memref<22x1x128xf32, #tpu.memory_space<vmem>>, vector<1x1x16xf32>,
      %131 = vector.extract_strided_slice %22 {offsets = [0, 208], sizes = [1, 16], strides = [1, 1]} : vector<1x256xf32> to vector<1x16xf32>
      %c16_94 = arith.constant 16 : index
      %c0_95 = arith.constant 0 : index
      %c0_96 = arith.constant 0 : index
      %132 = vector.load %arg8[%c16_94, %c0_95, %c0_96] : memref<22x1x128xf32, #tpu.memory_space<vmem>>, vector<1x1x16xf32>
      %133 = vector.shape_cast %132 : vector<1x1x16xf32> to vector<1x16xf32>
      %134 = vector.shape_cast %131 : vector<1x16xf32> to vector<1x1x16xf32>
      tpu.vector_store %arg8[%c16_94, %c0_95, %c0_96], %134 {strides = array<i32>} : memref<22x1x128xf32, #tpu.memory_space<vmem>>, vector<1x1x16xf32>,
      %135 = vector.extract_strided_slice %21 {offsets = [0, 224], sizes = [1, 16], strides = [1, 1]} : vector<1x256xf32> to vector<1x16xf32>
      %c17 = arith.constant 17 : index
      %c0_97 = arith.constant 0 : index
      %c0_98 = arith.constant 0 : index
      %136 = vector.load %arg7[%c17, %c0_97, %c0_98] : memref<22x1x128xf32, #tpu.memory_space<vmem>>, vector<1x1x16xf32>
      %137 = vector.shape_cast %136 : vector<1x1x16xf32> to vector<1x16xf32>
      %138 = vector.shape_cast %135 : vector<1x16xf32> to vector<1x1x16xf32>
      tpu.vector_store %arg7[%c17, %c0_97, %c0_98], %138 {strides = array<i32>} : memref<22x1x128xf32, #tpu.memory_space<vmem>>, vector<1x1x16xf32>,
      %139 = vector.extract_strided_slice %22 {offsets = [0, 224], sizes = [1, 16], strides = [1, 1]} : vector<1x256xf32> to vector<1x16xf32>
      %c17_99 = arith.constant 17 : index
      %c0_100 = arith.constant 0 : index
      %c0_101 = arith.constant 0 : index
      %140 = vector.load %arg8[%c17_99, %c0_100, %c0_101] : memref<22x1x128xf32, #tpu.memory_space<vmem>>, vector<1x1x16xf32>
      %141 = vector.shape_cast %140 : vector<1x1x16xf32> to vector<1x16xf32>
      %142 = vector.shape_cast %139 : vector<1x16xf32> to vector<1x1x16xf32>
      tpu.vector_store %arg8[%c17_99, %c0_100, %c0_101], %142 {strides = array<i32>} : memref<22x1x128xf32, #tpu.memory_space<vmem>>, vector<1x1x16xf32>,
      %143 = vector.extract_strided_slice %21 {offsets = [0, 240], sizes = [1, 16], strides = [1, 1]} : vector<1x256xf32> to vector<1x16xf32>
      %c18 = arith.constant 18 : index
      %c0_102 = arith.constant 0 : index
      %c0_103 = arith.constant 0 : index
      %144 = vector.load %arg7[%c18, %c0_102, %c0_103] : memref<22x1x128xf32, #tpu.memory_space<vmem>>, vector<1x1x16xf32>
      %145 = vector.shape_cast %144 : vector<1x1x16xf32> to vector<1x16xf32>
      %146 = vector.shape_cast %143 : vector<1x16xf32> to vector<1x1x16xf32>
      tpu.vector_store %arg7[%c18, %c0_102, %c0_103], %146 {strides = array<i32>} : memref<22x1x128xf32, #tpu.memory_space<vmem>>, vector<1x1x16xf32>,
      %147 = vector.extract_strided_slice %22 {offsets = [0, 240], sizes = [1, 16], strides = [1, 1]} : vector<1x256xf32> to vector<1x16xf32>
      %c18_104 = arith.constant 18 : index
      %c0_105 = arith.constant 0 : index
      %c0_106 = arith.constant 0 : index
      %148 = vector.load %arg8[%c18_104, %c0_105, %c0_106] : memref<22x1x128xf32, #tpu.memory_space<vmem>>, vector<1x1x16xf32>
      %149 = vector.shape_cast %148 : vector<1x1x16xf32> to vector<1x16xf32>
      %150 = vector.shape_cast %147 : vector<1x16xf32> to vector<1x1x16xf32>
      tpu.vector_store %arg8[%c18_104, %c0_105, %c0_106], %150 {strides = array<i32>} : memref<22x1x128xf32, #tpu.memory_space<vmem>>, vector<1x1x16xf32>,
      %c0_107 = arith.constant 0 : index
      %151 = memref.load %arg2[%c0_107] : memref<98xf32, #tpu.memory_space<smem>>
      %c1 = arith.constant 1 : index
      %152 = memref.load %arg2[%c1] : memref<98xf32, #tpu.memory_space<smem>>
      %c2 = arith.constant 2 : index
      %153 = memref.load %arg2[%c2] : memref<98xf32, #tpu.memory_space<smem>>
      %c3_108 = arith.constant 3 : index
      %154 = memref.load %arg2[%c3_108] : memref<98xf32, #tpu.memory_space<smem>>
      %c4_109 = arith.constant 4 : index
      %155 = memref.load %arg2[%c4_109] : memref<98xf32, #tpu.memory_space<smem>>
      %c5_110 = arith.constant 5 : index
      %156 = memref.load %arg2[%c5_110] : memref<98xf32, #tpu.memory_space<smem>>
      %c6_111 = arith.constant 6 : index
      %157 = memref.load %arg2[%c6_111] : memref<98xf32, #tpu.memory_space<smem>>
      %c7_112 = arith.constant 7 : index
      %158 = memref.load %arg2[%c7_112] : memref<98xf32, #tpu.memory_space<smem>>
      %c8_113 = arith.constant 8 : index
      %159 = memref.load %arg2[%c8_113] : memref<98xf32, #tpu.memory_space<smem>>
      %c9_114 = arith.constant 9 : index
      %160 = memref.load %arg2[%c9_114] : memref<98xf32, #tpu.memory_space<smem>>
      %c10_115 = arith.constant 10 : index
      %161 = memref.load %arg2[%c10_115] : memref<98xf32, #tpu.memory_space<smem>>
      %c11_116 = arith.constant 11 : index
      %162 = memref.load %arg2[%c11_116] : memref<98xf32, #tpu.memory_space<smem>>
      %c12_117 = arith.constant 12 : index
      %163 = memref.load %arg2[%c12_117] : memref<98xf32, #tpu.memory_space<smem>>
      %c13_118 = arith.constant 13 : index
      %164 = memref.load %arg2[%c13_118] : memref<98xf32, #tpu.memory_space<smem>>
      %c14_119 = arith.constant 14 : index
      %165 = memref.load %arg2[%c14_119] : memref<98xf32, #tpu.memory_space<smem>>
      %c15_120 = arith.constant 15 : index
      %166 = memref.load %arg2[%c15_120] : memref<98xf32, #tpu.memory_space<smem>>
      %c16_121 = arith.constant 16 : index
      %167 = memref.load %arg2[%c16_121] : memref<98xf32, #tpu.memory_space<smem>>
      %c17_122 = arith.constant 17 : index
      %168 = memref.load %arg2[%c17_122] : memref<98xf32, #tpu.memory_space<smem>>
      %c18_123 = arith.constant 18 : index
      %169 = memref.load %arg2[%c18_123] : memref<98xf32, #tpu.memory_space<smem>>
      %c19 = arith.constant 19 : index
      %170 = memref.load %arg2[%c19] : memref<98xf32, #tpu.memory_space<smem>>
      %c20 = arith.constant 20 : index
      %171 = memref.load %arg2[%c20] : memref<98xf32, #tpu.memory_space<smem>>
      %c21 = arith.constant 21 : index
      %172 = memref.load %arg2[%c21] : memref<98xf32, #tpu.memory_space<smem>>
      %c22 = arith.constant 22 : index
      %173 = memref.load %arg2[%c22] : memref<98xf32, #tpu.memory_space<smem>>
      %c23 = arith.constant 23 : index
      %174 = memref.load %arg2[%c23] : memref<98xf32, #tpu.memory_space<smem>>
      %c24 = arith.constant 24 : index
      %175 = memref.load %arg2[%c24] : memref<98xf32, #tpu.memory_space<smem>>
      %c25 = arith.constant 25 : index
      %176 = memref.load %arg2[%c25] : memref<98xf32, #tpu.memory_space<smem>>
      %c26 = arith.constant 26 : index
      %177 = memref.load %arg2[%c26] : memref<98xf32, #tpu.memory_space<smem>>
      %c27 = arith.constant 27 : index
      %178 = memref.load %arg2[%c27] : memref<98xf32, #tpu.memory_space<smem>>
      %c28 = arith.constant 28 : index
      %179 = memref.load %arg2[%c28] : memref<98xf32, #tpu.memory_space<smem>>
      %c29 = arith.constant 29 : index
      %180 = memref.load %arg2[%c29] : memref<98xf32, #tpu.memory_space<smem>>
      %c30 = arith.constant 30 : index
      %181 = memref.load %arg2[%c30] : memref<98xf32, #tpu.memory_space<smem>>
      %c31 = arith.constant 31 : index
      %182 = memref.load %arg2[%c31] : memref<98xf32, #tpu.memory_space<smem>>
      %c32 = arith.constant 32 : index
      %183 = memref.load %arg2[%c32] : memref<98xf32, #tpu.memory_space<smem>>
      %c33 = arith.constant 33 : index
      %184 = memref.load %arg2[%c33] : memref<98xf32, #tpu.memory_space<smem>>
      %c34 = arith.constant 34 : index
      %185 = memref.load %arg2[%c34] : memref<98xf32, #tpu.memory_space<smem>>
      %c35 = arith.constant 35 : index
      %186 = memref.load %arg2[%c35] : memref<98xf32, #tpu.memory_space<smem>>
      %c36 = arith.constant 36 : index
      %187 = memref.load %arg2[%c36] : memref<98xf32, #tpu.memory_space<smem>>
      %c37 = arith.constant 37 : index
      %188 = memref.load %arg2[%c37] : memref<98xf32, #tpu.memory_space<smem>>
      %c38 = arith.constant 38 : index
      %189 = memref.load %arg2[%c38] : memref<98xf32, #tpu.memory_space<smem>>
      %c39 = arith.constant 39 : index
      %190 = memref.load %arg2[%c39] : memref<98xf32, #tpu.memory_space<smem>>
      %c40 = arith.constant 40 : index
      %191 = memref.load %arg2[%c40] : memref<98xf32, #tpu.memory_space<smem>>
      %c41 = arith.constant 41 : index
      %192 = memref.load %arg2[%c41] : memref<98xf32, #tpu.memory_space<smem>>
      %c42 = arith.constant 42 : index
      %193 = memref.load %arg2[%c42] : memref<98xf32, #tpu.memory_space<smem>>
      %c43 = arith.constant 43 : index
      %194 = memref.load %arg2[%c43] : memref<98xf32, #tpu.memory_space<smem>>
      %c44 = arith.constant 44 : index
      %195 = memref.load %arg2[%c44] : memref<98xf32, #tpu.memory_space<smem>>
      %c45 = arith.constant 45 : index
      %196 = memref.load %arg2[%c45] : memref<98xf32, #tpu.memory_space<smem>>
      %c46 = arith.constant 46 : index
      %197 = memref.load %arg2[%c46] : memref<98xf32, #tpu.memory_space<smem>>
      %c47 = arith.constant 47 : index
      %198 = memref.load %arg2[%c47] : memref<98xf32, #tpu.memory_space<smem>>
      %c48 = arith.constant 48 : index
      %199 = memref.load %arg2[%c48] : memref<98xf32, #tpu.memory_space<smem>>
      %c49 = arith.constant 49 : index
      %200 = memref.load %arg2[%c49] : memref<98xf32, #tpu.memory_space<smem>>
      %c50 = arith.constant 50 : index
      %201 = memref.load %arg2[%c50] : memref<98xf32, #tpu.memory_space<smem>>
      %c51 = arith.constant 51 : index
      %202 = memref.load %arg2[%c51] : memref<98xf32, #tpu.memory_space<smem>>
      %c52 = arith.constant 52 : index
      %203 = memref.load %arg2[%c52] : memref<98xf32, #tpu.memory_space<smem>>
      %c53 = arith.constant 53 : index
      %204 = memref.load %arg2[%c53] : memref<98xf32, #tpu.memory_space<smem>>
      %c54 = arith.constant 54 : index
      %205 = memref.load %arg2[%c54] : memref<98xf32, #tpu.memory_space<smem>>
      %c55 = arith.constant 55 : index
      %206 = memref.load %arg2[%c55] : memref<98xf32, #tpu.memory_space<smem>>
      %c56 = arith.constant 56 : index
      %207 = memref.load %arg2[%c56] : memref<98xf32, #tpu.memory_space<smem>>
      %c57 = arith.constant 57 : index
      %208 = memref.load %arg2[%c57] : memref<98xf32, #tpu.memory_space<smem>>
      %c58 = arith.constant 58 : index
      %209 = memref.load %arg2[%c58] : memref<98xf32, #tpu.memory_space<smem>>
      %c59 = arith.constant 59 : index
      %210 = memref.load %arg2[%c59] : memref<98xf32, #tpu.memory_space<smem>>
      %c60 = arith.constant 60 : index
      %211 = memref.load %arg2[%c60] : memref<98xf32, #tpu.memory_space<smem>>
      %c61 = arith.constant 61 : index
      %212 = memref.load %arg2[%c61] : memref<98xf32, #tpu.memory_space<smem>>
      %c62 = arith.constant 62 : index
      %213 = memref.load %arg2[%c62] : memref<98xf32, #tpu.memory_space<smem>>
      %c63 = arith.constant 63 : index
      %214 = memref.load %arg2[%c63] : memref<98xf32, #tpu.memory_space<smem>>
      %c64 = arith.constant 64 : index
      %215 = memref.load %arg2[%c64] : memref<98xf32, #tpu.memory_space<smem>>
      %c65 = arith.constant 65 : index
      %216 = memref.load %arg2[%c65] : memref<98xf32, #tpu.memory_space<smem>>
      %c66 = arith.constant 66 : index
      %217 = memref.load %arg2[%c66] : memref<98xf32, #tpu.memory_space<smem>>
      %c67 = arith.constant 67 : index
      %218 = memref.load %arg2[%c67] : memref<98xf32, #tpu.memory_space<smem>>
      %c68 = arith.constant 68 : index
      %219 = memref.load %arg2[%c68] : memref<98xf32, #tpu.memory_space<smem>>
      %c69 = arith.constant 69 : index
      %220 = memref.load %arg2[%c69] : memref<98xf32, #tpu.memory_space<smem>>
      %c70 = arith.constant 70 : index
      %221 = memref.load %arg2[%c70] : memref<98xf32, #tpu.memory_space<smem>>
      %c71 = arith.constant 71 : index
      %222 = memref.load %arg2[%c71] : memref<98xf32, #tpu.memory_space<smem>>
      %c72 = arith.constant 72 : index
      %223 = memref.load %arg2[%c72] : memref<98xf32, #tpu.memory_space<smem>>
      %c73 = arith.constant 73 : index
      %224 = memref.load %arg2[%c73] : memref<98xf32, #tpu.memory_space<smem>>
      %c74 = arith.constant 74 : index
      %225 = memref.load %arg2[%c74] : memref<98xf32, #tpu.memory_space<smem>>
      %c75 = arith.constant 75 : index
      %226 = memref.load %arg2[%c75] : memref<98xf32, #tpu.memory_space<smem>>
      %c76 = arith.constant 76 : index
      %227 = memref.load %arg2[%c76] : memref<98xf32, #tpu.memory_space<smem>>
      %c77 = arith.constant 77 : index
      %228 = memref.load %arg2[%c77] : memref<98xf32, #tpu.memory_space<smem>>
      %c78 = arith.constant 78 : index
      %229 = memref.load %arg2[%c78] : memref<98xf32, #tpu.memory_space<smem>>
      %c79 = arith.constant 79 : index
      %230 = memref.load %arg2[%c79] : memref<98xf32, #tpu.memory_space<smem>>
      %c80 = arith.constant 80 : index
      %231 = memref.load %arg2[%c80] : memref<98xf32, #tpu.memory_space<smem>>
      %c81 = arith.constant 81 : index
      %232 = memref.load %arg2[%c81] : memref<98xf32, #tpu.memory_space<smem>>
      %c82 = arith.constant 82 : index
      %233 = memref.load %arg2[%c82] : memref<98xf32, #tpu.memory_space<smem>>
      %c83 = arith.constant 83 : index
      %234 = memref.load %arg2[%c83] : memref<98xf32, #tpu.memory_space<smem>>
      %c84 = arith.constant 84 : index
      %235 = memref.load %arg2[%c84] : memref<98xf32, #tpu.memory_space<smem>>
      %c85 = arith.constant 85 : index
      %236 = memref.load %arg2[%c85] : memref<98xf32, #tpu.memory_space<smem>>
      %c86 = arith.constant 86 : index
      %237 = memref.load %arg2[%c86] : memref<98xf32, #tpu.memory_space<smem>>
      %c87 = arith.constant 87 : index
      %238 = memref.load %arg2[%c87] : memref<98xf32, #tpu.memory_space<smem>>
      %c88 = arith.constant 88 : index
      %239 = memref.load %arg2[%c88] : memref<98xf32, #tpu.memory_space<smem>>
      %c89 = arith.constant 89 : index
      %240 = memref.load %arg2[%c89] : memref<98xf32, #tpu.memory_space<smem>>
      %c90 = arith.constant 90 : index
      %241 = memref.load %arg2[%c90] : memref<98xf32, #tpu.memory_space<smem>>
      %c91 = arith.constant 91 : index
      %242 = memref.load %arg2[%c91] : memref<98xf32, #tpu.memory_space<smem>>
      %c92 = arith.constant 92 : index
      %243 = memref.load %arg2[%c92] : memref<98xf32, #tpu.memory_space<smem>>
      %c93 = arith.constant 93 : index
      %244 = memref.load %arg2[%c93] : memref<98xf32, #tpu.memory_space<smem>>
      %c94 = arith.constant 94 : index
      %245 = memref.load %arg2[%c94] : memref<98xf32, #tpu.memory_space<smem>>
      %c95 = arith.constant 95 : index
      %246 = memref.load %arg2[%c95] : memref<98xf32, #tpu.memory_space<smem>>
      %c96 = arith.constant 96 : index
      %247 = memref.load %arg2[%c96] : memref<98xf32, #tpu.memory_space<smem>>
      %c97 = arith.constant 97 : index
      %248 = memref.load %arg2[%c97] : memref<98xf32, #tpu.memory_space<smem>>
      %c0_124 = arith.constant 0 : index
      %c0_125 = arith.constant 0 : index
      %c0_126 = arith.constant 0 : index
      %249 = vector.load %arg7[%c0_124, %c0_125, %c0_126] : memref<22x1x128xf32, #tpu.memory_space<vmem>>, vector<22x1x128xf32>
      %250 = vector.extract_strided_slice %249 {offsets = [0, 0, 0], sizes = [16, 1, 128], strides = [1, 1, 1]} : vector<22x1x128xf32> to vector<16x1x128xf32>
      %c3_i32 = arith.constant 3 : i32
      %251 = tpu.dynamic_rotate %250 by %c3_i32 dim 2 : vector<16x1x128xf32>, i32 -> vector<16x1x128xf32>
      %252 = vector.broadcast %151 : f32 to vector<16x1x128xf32>
      %253 = arith.mulf %252, %251 : vector<16x1x128xf32>
      %c2_i32 = arith.constant 2 : i32
      %254 = tpu.dynamic_rotate %250 by %c2_i32 dim 2 : vector<16x1x128xf32>, i32 -> vector<16x1x128xf32>
      %255 = vector.broadcast %152 : f32 to vector<16x1x128xf32>
      %256 = arith.mulf %255, %254 : vector<16x1x128xf32>
      %257 = arith.addf %253, %256 : vector<16x1x128xf32>
      %c1_i32 = arith.constant 1 : i32
      %258 = tpu.dynamic_rotate %250 by %c1_i32 dim 2 : vector<16x1x128xf32>, i32 -> vector<16x1x128xf32>
      %259 = vector.broadcast %153 : f32 to vector<16x1x128xf32>
      %260 = arith.mulf %259, %258 : vector<16x1x128xf32>
      %261 = arith.addf %257, %260 : vector<16x1x128xf32>
      %262 = vector.broadcast %154 : f32 to vector<16x1x128xf32>
      %263 = arith.mulf %262, %250 : vector<16x1x128xf32>
      %264 = arith.addf %261, %263 : vector<16x1x128xf32>
      %c127_i32 = arith.constant 127 : i32
      %265 = tpu.dynamic_rotate %250 by %c127_i32 dim 2 : vector<16x1x128xf32>, i32 -> vector<16x1x128xf32>
      %266 = vector.broadcast %155 : f32 to vector<16x1x128xf32>
      %267 = arith.mulf %266, %265 : vector<16x1x128xf32>
      %268 = arith.addf %264, %267 : vector<16x1x128xf32>
      %c126_i32 = arith.constant 126 : i32
      %269 = tpu.dynamic_rotate %250 by %c126_i32 dim 2 : vector<16x1x128xf32>, i32 -> vector<16x1x128xf32>
      %270 = vector.broadcast %156 : f32 to vector<16x1x128xf32>
      %271 = arith.mulf %270, %269 : vector<16x1x128xf32>
      %272 = arith.addf %268, %271 : vector<16x1x128xf32>
      %c125_i32 = arith.constant 125 : i32
      %273 = tpu.dynamic_rotate %250 by %c125_i32 dim 2 : vector<16x1x128xf32>, i32 -> vector<16x1x128xf32>
      %274 = vector.broadcast %157 : f32 to vector<16x1x128xf32>
      %275 = arith.mulf %274, %273 : vector<16x1x128xf32>
      %276 = arith.addf %272, %275 : vector<16x1x128xf32>
      %277 = vector.extract_strided_slice %249 {offsets = [1, 0, 0], sizes = [16, 1, 128], strides = [1, 1, 1]} : vector<22x1x128xf32> to vector<16x1x128xf32>
      %c3_i32_127 = arith.constant 3 : i32
      %278 = tpu.dynamic_rotate %277 by %c3_i32_127 dim 2 : vector<16x1x128xf32>, i32 -> vector<16x1x128xf32>
      %279 = vector.broadcast %158 : f32 to vector<16x1x128xf32>
      %280 = arith.mulf %279, %278 : vector<16x1x128xf32>
      %c2_i32_128 = arith.constant 2 : i32
      %281 = tpu.dynamic_rotate %277 by %c2_i32_128 dim 2 : vector<16x1x128xf32>, i32 -> vector<16x1x128xf32>
      %282 = vector.broadcast %159 : f32 to vector<16x1x128xf32>
      %283 = arith.mulf %282, %281 : vector<16x1x128xf32>
      %284 = arith.addf %280, %283 : vector<16x1x128xf32>
      %c1_i32_129 = arith.constant 1 : i32
      %285 = tpu.dynamic_rotate %277 by %c1_i32_129 dim 2 : vector<16x1x128xf32>, i32 -> vector<16x1x128xf32>
      %286 = vector.broadcast %160 : f32 to vector<16x1x128xf32>
      %287 = arith.mulf %286, %285 : vector<16x1x128xf32>
      %288 = arith.addf %284, %287 : vector<16x1x128xf32>
      %289 = vector.broadcast %161 : f32 to vector<16x1x128xf32>
      %290 = arith.mulf %289, %277 : vector<16x1x128xf32>
      %291 = arith.addf %288, %290 : vector<16x1x128xf32>
      %c127_i32_130 = arith.constant 127 : i32
      %292 = tpu.dynamic_rotate %277 by %c127_i32_130 dim 2 : vector<16x1x128xf32>, i32 -> vector<16x1x128xf32>
      %293 = vector.broadcast %162 : f32 to vector<16x1x128xf32>
      %294 = arith.mulf %293, %292 : vector<16x1x128xf32>
      %295 = arith.addf %291, %294 : vector<16x1x128xf32>
      %c126_i32_131 = arith.constant 126 : i32
      %296 = tpu.dynamic_rotate %277 by %c126_i32_131 dim 2 : vector<16x1x128xf32>, i32 -> vector<16x1x128xf32>
      %297 = vector.broadcast %163 : f32 to vector<16x1x128xf32>
      %298 = arith.mulf %297, %296 : vector<16x1x128xf32>
      %299 = arith.addf %295, %298 : vector<16x1x128xf32>
      %c125_i32_132 = arith.constant 125 : i32
      %300 = tpu.dynamic_rotate %277 by %c125_i32_132 dim 2 : vector<16x1x128xf32>, i32 -> vector<16x1x128xf32>
      %301 = vector.broadcast %164 : f32 to vector<16x1x128xf32>
      %302 = arith.mulf %301, %300 : vector<16x1x128xf32>
      %303 = arith.addf %299, %302 : vector<16x1x128xf32>
      %304 = arith.addf %276, %303 : vector<16x1x128xf32>
      %305 = vector.extract_strided_slice %249 {offsets = [2, 0, 0], sizes = [16, 1, 128], strides = [1, 1, 1]} : vector<22x1x128xf32> to vector<16x1x128xf32>
      %c3_i32_133 = arith.constant 3 : i32
      %306 = tpu.dynamic_rotate %305 by %c3_i32_133 dim 2 : vector<16x1x128xf32>, i32 -> vector<16x1x128xf32>
      %307 = vector.broadcast %165 : f32 to vector<16x1x128xf32>
      %308 = arith.mulf %307, %306 : vector<16x1x128xf32>
      %c2_i32_134 = arith.constant 2 : i32
      %309 = tpu.dynamic_rotate %305 by %c2_i32_134 dim 2 : vector<16x1x128xf32>, i32 -> vector<16x1x128xf32>
      %310 = vector.broadcast %166 : f32 to vector<16x1x128xf32>
      %311 = arith.mulf %310, %309 : vector<16x1x128xf32>
      %312 = arith.addf %308, %311 : vector<16x1x128xf32>
      %c1_i32_135 = arith.constant 1 : i32
      %313 = tpu.dynamic_rotate %305 by %c1_i32_135 dim 2 : vector<16x1x128xf32>, i32 -> vector<16x1x128xf32>
      %314 = vector.broadcast %167 : f32 to vector<16x1x128xf32>
      %315 = arith.mulf %314, %313 : vector<16x1x128xf32>
      %316 = arith.addf %312, %315 : vector<16x1x128xf32>
      %317 = vector.broadcast %168 : f32 to vector<16x1x128xf32>
      %318 = arith.mulf %317, %305 : vector<16x1x128xf32>
      %319 = arith.addf %316, %318 : vector<16x1x128xf32>
      %c127_i32_136 = arith.constant 127 : i32
      %320 = tpu.dynamic_rotate %305 by %c127_i32_136 dim 2 : vector<16x1x128xf32>, i32 -> vector<16x1x128xf32>
      %321 = vector.broadcast %169 : f32 to vector<16x1x128xf32>
      %322 = arith.mulf %321, %320 : vector<16x1x128xf32>
      %323 = arith.addf %319, %322 : vector<16x1x128xf32>
      %c126_i32_137 = arith.constant 126 : i32
      %324 = tpu.dynamic_rotate %305 by %c126_i32_137 dim 2 : vector<16x1x128xf32>, i32 -> vector<16x1x128xf32>
      %325 = vector.broadcast %170 : f32 to vector<16x1x128xf32>
      %326 = arith.mulf %325, %324 : vector<16x1x128xf32>
      %327 = arith.addf %323, %326 : vector<16x1x128xf32>
      %c125_i32_138 = arith.constant 125 : i32
      %328 = tpu.dynamic_rotate %305 by %c125_i32_138 dim 2 : vector<16x1x128xf32>, i32 -> vector<16x1x128xf32>
      %329 = vector.broadcast %171 : f32 to vector<16x1x128xf32>
      %330 = arith.mulf %329, %328 : vector<16x1x128xf32>
      %331 = arith.addf %327, %330 : vector<16x1x128xf32>
      %332 = arith.addf %304, %331 : vector<16x1x128xf32>
      %333 = vector.extract_strided_slice %249 {offsets = [3, 0, 0], sizes = [16, 1, 128], strides = [1, 1, 1]} : vector<22x1x128xf32> to vector<16x1x128xf32>
      %c3_i32_139 = arith.constant 3 : i32
      %334 = tpu.dynamic_rotate %333 by %c3_i32_139 dim 2 : vector<16x1x128xf32>, i32 -> vector<16x1x128xf32>
      %335 = vector.broadcast %172 : f32 to vector<16x1x128xf32>
      %336 = arith.mulf %335, %334 : vector<16x1x128xf32>
      %c2_i32_140 = arith.constant 2 : i32
      %337 = tpu.dynamic_rotate %333 by %c2_i32_140 dim 2 : vector<16x1x128xf32>, i32 -> vector<16x1x128xf32>
      %338 = vector.broadcast %173 : f32 to vector<16x1x128xf32>
      %339 = arith.mulf %338, %337 : vector<16x1x128xf32>
      %340 = arith.addf %336, %339 : vector<16x1x128xf32>
      %c1_i32_141 = arith.constant 1 : i32
      %341 = tpu.dynamic_rotate %333 by %c1_i32_141 dim 2 : vector<16x1x128xf32>, i32 -> vector<16x1x128xf32>
      %342 = vector.broadcast %174 : f32 to vector<16x1x128xf32>
      %343 = arith.mulf %342, %341 : vector<16x1x128xf32>
      %344 = arith.addf %340, %343 : vector<16x1x128xf32>
      %345 = vector.broadcast %175 : f32 to vector<16x1x128xf32>
      %346 = arith.mulf %345, %333 : vector<16x1x128xf32>
      %347 = arith.addf %344, %346 : vector<16x1x128xf32>
      %c127_i32_142 = arith.constant 127 : i32
      %348 = tpu.dynamic_rotate %333 by %c127_i32_142 dim 2 : vector<16x1x128xf32>, i32 -> vector<16x1x128xf32>
      %349 = vector.broadcast %176 : f32 to vector<16x1x128xf32>
      %350 = arith.mulf %349, %348 : vector<16x1x128xf32>
      %351 = arith.addf %347, %350 : vector<16x1x128xf32>
      %c126_i32_143 = arith.constant 126 : i32
      %352 = tpu.dynamic_rotate %333 by %c126_i32_143 dim 2 : vector<16x1x128xf32>, i32 -> vector<16x1x128xf32>
      %353 = vector.broadcast %177 : f32 to vector<16x1x128xf32>
      %354 = arith.mulf %353, %352 : vector<16x1x128xf32>
      %355 = arith.addf %351, %354 : vector<16x1x128xf32>
      %c125_i32_144 = arith.constant 125 : i32
      %356 = tpu.dynamic_rotate %333 by %c125_i32_144 dim 2 : vector<16x1x128xf32>, i32 -> vector<16x1x128xf32>
      %357 = vector.broadcast %178 : f32 to vector<16x1x128xf32>
      %358 = arith.mulf %357, %356 : vector<16x1x128xf32>
      %359 = arith.addf %355, %358 : vector<16x1x128xf32>
      %360 = arith.addf %332, %359 : vector<16x1x128xf32>
      %361 = vector.extract_strided_slice %249 {offsets = [4, 0, 0], sizes = [16, 1, 128], strides = [1, 1, 1]} : vector<22x1x128xf32> to vector<16x1x128xf32>
      %c3_i32_145 = arith.constant 3 : i32
      %362 = tpu.dynamic_rotate %361 by %c3_i32_145 dim 2 : vector<16x1x128xf32>, i32 -> vector<16x1x128xf32>
      %363 = vector.broadcast %179 : f32 to vector<16x1x128xf32>
      %364 = arith.mulf %363, %362 : vector<16x1x128xf32>
      %c2_i32_146 = arith.constant 2 : i32
      %365 = tpu.dynamic_rotate %361 by %c2_i32_146 dim 2 : vector<16x1x128xf32>, i32 -> vector<16x1x128xf32>
      %366 = vector.broadcast %180 : f32 to vector<16x1x128xf32>
      %367 = arith.mulf %366, %365 : vector<16x1x128xf32>
      %368 = arith.addf %364, %367 : vector<16x1x128xf32>
      %c1_i32_147 = arith.constant 1 : i32
      %369 = tpu.dynamic_rotate %361 by %c1_i32_147 dim 2 : vector<16x1x128xf32>, i32 -> vector<16x1x128xf32>
      %370 = vector.broadcast %181 : f32 to vector<16x1x128xf32>
      %371 = arith.mulf %370, %369 : vector<16x1x128xf32>
      %372 = arith.addf %368, %371 : vector<16x1x128xf32>
      %373 = vector.broadcast %182 : f32 to vector<16x1x128xf32>
      %374 = arith.mulf %373, %361 : vector<16x1x128xf32>
      %375 = arith.addf %372, %374 : vector<16x1x128xf32>
      %c127_i32_148 = arith.constant 127 : i32
      %376 = tpu.dynamic_rotate %361 by %c127_i32_148 dim 2 : vector<16x1x128xf32>, i32 -> vector<16x1x128xf32>
      %377 = vector.broadcast %183 : f32 to vector<16x1x128xf32>
      %378 = arith.mulf %377, %376 : vector<16x1x128xf32>
      %379 = arith.addf %375, %378 : vector<16x1x128xf32>
      %c126_i32_149 = arith.constant 126 : i32
      %380 = tpu.dynamic_rotate %361 by %c126_i32_149 dim 2 : vector<16x1x128xf32>, i32 -> vector<16x1x128xf32>
      %381 = vector.broadcast %184 : f32 to vector<16x1x128xf32>
      %382 = arith.mulf %381, %380 : vector<16x1x128xf32>
      %383 = arith.addf %379, %382 : vector<16x1x128xf32>
      %c125_i32_150 = arith.constant 125 : i32
      %384 = tpu.dynamic_rotate %361 by %c125_i32_150 dim 2 : vector<16x1x128xf32>, i32 -> vector<16x1x128xf32>
      %385 = vector.broadcast %185 : f32 to vector<16x1x128xf32>
      %386 = arith.mulf %385, %384 : vector<16x1x128xf32>
      %387 = arith.addf %383, %386 : vector<16x1x128xf32>
      %388 = arith.addf %360, %387 : vector<16x1x128xf32>
      %389 = vector.extract_strided_slice %249 {offsets = [5, 0, 0], sizes = [16, 1, 128], strides = [1, 1, 1]} : vector<22x1x128xf32> to vector<16x1x128xf32>
      %c3_i32_151 = arith.constant 3 : i32
      %390 = tpu.dynamic_rotate %389 by %c3_i32_151 dim 2 : vector<16x1x128xf32>, i32 -> vector<16x1x128xf32>
      %391 = vector.broadcast %186 : f32 to vector<16x1x128xf32>
      %392 = arith.mulf %391, %390 : vector<16x1x128xf32>
      %c2_i32_152 = arith.constant 2 : i32
      %393 = tpu.dynamic_rotate %389 by %c2_i32_152 dim 2 : vector<16x1x128xf32>, i32 -> vector<16x1x128xf32>
      %394 = vector.broadcast %187 : f32 to vector<16x1x128xf32>
      %395 = arith.mulf %394, %393 : vector<16x1x128xf32>
      %396 = arith.addf %392, %395 : vector<16x1x128xf32>
      %c1_i32_153 = arith.constant 1 : i32
      %397 = tpu.dynamic_rotate %389 by %c1_i32_153 dim 2 : vector<16x1x128xf32>, i32 -> vector<16x1x128xf32>
      %398 = vector.broadcast %188 : f32 to vector<16x1x128xf32>
      %399 = arith.mulf %398, %397 : vector<16x1x128xf32>
      %400 = arith.addf %396, %399 : vector<16x1x128xf32>
      %401 = vector.broadcast %189 : f32 to vector<16x1x128xf32>
      %402 = arith.mulf %401, %389 : vector<16x1x128xf32>
      %403 = arith.addf %400, %402 : vector<16x1x128xf32>
      %c127_i32_154 = arith.constant 127 : i32
      %404 = tpu.dynamic_rotate %389 by %c127_i32_154 dim 2 : vector<16x1x128xf32>, i32 -> vector<16x1x128xf32>
      %405 = vector.broadcast %190 : f32 to vector<16x1x128xf32>
      %406 = arith.mulf %405, %404 : vector<16x1x128xf32>
      %407 = arith.addf %403, %406 : vector<16x1x128xf32>
      %c126_i32_155 = arith.constant 126 : i32
      %408 = tpu.dynamic_rotate %389 by %c126_i32_155 dim 2 : vector<16x1x128xf32>, i32 -> vector<16x1x128xf32>
      %409 = vector.broadcast %191 : f32 to vector<16x1x128xf32>
      %410 = arith.mulf %409, %408 : vector<16x1x128xf32>
      %411 = arith.addf %407, %410 : vector<16x1x128xf32>
      %c125_i32_156 = arith.constant 125 : i32
      %412 = tpu.dynamic_rotate %389 by %c125_i32_156 dim 2 : vector<16x1x128xf32>, i32 -> vector<16x1x128xf32>
      %413 = vector.broadcast %192 : f32 to vector<16x1x128xf32>
      %414 = arith.mulf %413, %412 : vector<16x1x128xf32>
      %415 = arith.addf %411, %414 : vector<16x1x128xf32>
      %416 = arith.addf %388, %415 : vector<16x1x128xf32>
      %417 = vector.extract_strided_slice %249 {offsets = [6, 0, 0], sizes = [16, 1, 128], strides = [1, 1, 1]} : vector<22x1x128xf32> to vector<16x1x128xf32>
      %c3_i32_157 = arith.constant 3 : i32
      %418 = tpu.dynamic_rotate %417 by %c3_i32_157 dim 2 : vector<16x1x128xf32>, i32 -> vector<16x1x128xf32>
      %419 = vector.broadcast %193 : f32 to vector<16x1x128xf32>
      %420 = arith.mulf %419, %418 : vector<16x1x128xf32>
      %c2_i32_158 = arith.constant 2 : i32
      %421 = tpu.dynamic_rotate %417 by %c2_i32_158 dim 2 : vector<16x1x128xf32>, i32 -> vector<16x1x128xf32>
      %422 = vector.broadcast %194 : f32 to vector<16x1x128xf32>
      %423 = arith.mulf %422, %421 : vector<16x1x128xf32>
      %424 = arith.addf %420, %423 : vector<16x1x128xf32>
      %c1_i32_159 = arith.constant 1 : i32
      %425 = tpu.dynamic_rotate %417 by %c1_i32_159 dim 2 : vector<16x1x128xf32>, i32 -> vector<16x1x128xf32>
      %426 = vector.broadcast %195 : f32 to vector<16x1x128xf32>
      %427 = arith.mulf %426, %425 : vector<16x1x128xf32>
      %428 = arith.addf %424, %427 : vector<16x1x128xf32>
      %429 = vector.broadcast %196 : f32 to vector<16x1x128xf32>
      %430 = arith.mulf %429, %417 : vector<16x1x128xf32>
      %431 = arith.addf %428, %430 : vector<16x1x128xf32>
      %c127_i32_160 = arith.constant 127 : i32
      %432 = tpu.dynamic_rotate %417 by %c127_i32_160 dim 2 : vector<16x1x128xf32>, i32 -> vector<16x1x128xf32>
      %433 = vector.broadcast %197 : f32 to vector<16x1x128xf32>
      %434 = arith.mulf %433, %432 : vector<16x1x128xf32>
      %435 = arith.addf %431, %434 : vector<16x1x128xf32>
      %c126_i32_161 = arith.constant 126 : i32
      %436 = tpu.dynamic_rotate %417 by %c126_i32_161 dim 2 : vector<16x1x128xf32>, i32 -> vector<16x1x128xf32>
      %437 = vector.broadcast %198 : f32 to vector<16x1x128xf32>
      %438 = arith.mulf %437, %436 : vector<16x1x128xf32>
      %439 = arith.addf %435, %438 : vector<16x1x128xf32>
      %c125_i32_162 = arith.constant 125 : i32
      %440 = tpu.dynamic_rotate %417 by %c125_i32_162 dim 2 : vector<16x1x128xf32>, i32 -> vector<16x1x128xf32>
      %441 = vector.broadcast %199 : f32 to vector<16x1x128xf32>
      %442 = arith.mulf %441, %440 : vector<16x1x128xf32>
      %443 = arith.addf %439, %442 : vector<16x1x128xf32>
      %444 = arith.addf %416, %443 : vector<16x1x128xf32>
      %c0_163 = arith.constant 0 : index
      %c0_164 = arith.constant 0 : index
      %c0_165 = arith.constant 0 : index
      %445 = vector.load %arg8[%c0_163, %c0_164, %c0_165] : memref<22x1x128xf32, #tpu.memory_space<vmem>>, vector<22x1x128xf32>
      %446 = vector.extract_strided_slice %445 {offsets = [0, 0, 0], sizes = [16, 1, 128], strides = [1, 1, 1]} : vector<22x1x128xf32> to vector<16x1x128xf32>
      %c3_i32_166 = arith.constant 3 : i32
      %447 = tpu.dynamic_rotate %446 by %c3_i32_166 dim 2 : vector<16x1x128xf32>, i32 -> vector<16x1x128xf32>
      %448 = vector.broadcast %200 : f32 to vector<16x1x128xf32>
      %449 = arith.mulf %448, %447 : vector<16x1x128xf32>
      %c2_i32_167 = arith.constant 2 : i32
      %450 = tpu.dynamic_rotate %446 by %c2_i32_167 dim 2 : vector<16x1x128xf32>, i32 -> vector<16x1x128xf32>
      %451 = vector.broadcast %201 : f32 to vector<16x1x128xf32>
      %452 = arith.mulf %451, %450 : vector<16x1x128xf32>
      %453 = arith.addf %449, %452 : vector<16x1x128xf32>
      %c1_i32_168 = arith.constant 1 : i32
      %454 = tpu.dynamic_rotate %446 by %c1_i32_168 dim 2 : vector<16x1x128xf32>, i32 -> vector<16x1x128xf32>
      %455 = vector.broadcast %202 : f32 to vector<16x1x128xf32>
      %456 = arith.mulf %455, %454 : vector<16x1x128xf32>
      %457 = arith.addf %453, %456 : vector<16x1x128xf32>
      %458 = vector.broadcast %203 : f32 to vector<16x1x128xf32>
      %459 = arith.mulf %458, %446 : vector<16x1x128xf32>
      %460 = arith.addf %457, %459 : vector<16x1x128xf32>
      %c127_i32_169 = arith.constant 127 : i32
      %461 = tpu.dynamic_rotate %446 by %c127_i32_169 dim 2 : vector<16x1x128xf32>, i32 -> vector<16x1x128xf32>
      %462 = vector.broadcast %204 : f32 to vector<16x1x128xf32>
      %463 = arith.mulf %462, %461 : vector<16x1x128xf32>
      %464 = arith.addf %460, %463 : vector<16x1x128xf32>
      %c126_i32_170 = arith.constant 126 : i32
      %465 = tpu.dynamic_rotate %446 by %c126_i32_170 dim 2 : vector<16x1x128xf32>, i32 -> vector<16x1x128xf32>
      %466 = vector.broadcast %205 : f32 to vector<16x1x128xf32>
      %467 = arith.mulf %466, %465 : vector<16x1x128xf32>
      %468 = arith.addf %464, %467 : vector<16x1x128xf32>
      %c125_i32_171 = arith.constant 125 : i32
      %469 = tpu.dynamic_rotate %446 by %c125_i32_171 dim 2 : vector<16x1x128xf32>, i32 -> vector<16x1x128xf32>
      %470 = vector.broadcast %206 : f32 to vector<16x1x128xf32>
      %471 = arith.mulf %470, %469 : vector<16x1x128xf32>
      %472 = arith.addf %468, %471 : vector<16x1x128xf32>
      %473 = arith.addf %444, %472 : vector<16x1x128xf32>
      %474 = vector.extract_strided_slice %445 {offsets = [1, 0, 0], sizes = [16, 1, 128], strides = [1, 1, 1]} : vector<22x1x128xf32> to vector<16x1x128xf32>
      %c3_i32_172 = arith.constant 3 : i32
      %475 = tpu.dynamic_rotate %474 by %c3_i32_172 dim 2 : vector<16x1x128xf32>, i32 -> vector<16x1x128xf32>
      %476 = vector.broadcast %207 : f32 to vector<16x1x128xf32>
      %477 = arith.mulf %476, %475 : vector<16x1x128xf32>
      %c2_i32_173 = arith.constant 2 : i32
      %478 = tpu.dynamic_rotate %474 by %c2_i32_173 dim 2 : vector<16x1x128xf32>, i32 -> vector<16x1x128xf32>
      %479 = vector.broadcast %208 : f32 to vector<16x1x128xf32>
      %480 = arith.mulf %479, %478 : vector<16x1x128xf32>
      %481 = arith.addf %477, %480 : vector<16x1x128xf32>
      %c1_i32_174 = arith.constant 1 : i32
      %482 = tpu.dynamic_rotate %474 by %c1_i32_174 dim 2 : vector<16x1x128xf32>, i32 -> vector<16x1x128xf32>
      %483 = vector.broadcast %209 : f32 to vector<16x1x128xf32>
      %484 = arith.mulf %483, %482 : vector<16x1x128xf32>
      %485 = arith.addf %481, %484 : vector<16x1x128xf32>
      %486 = vector.broadcast %210 : f32 to vector<16x1x128xf32>
      %487 = arith.mulf %486, %474 : vector<16x1x128xf32>
      %488 = arith.addf %485, %487 : vector<16x1x128xf32>
      %c127_i32_175 = arith.constant 127 : i32
      %489 = tpu.dynamic_rotate %474 by %c127_i32_175 dim 2 : vector<16x1x128xf32>, i32 -> vector<16x1x128xf32>
      %490 = vector.broadcast %211 : f32 to vector<16x1x128xf32>
      %491 = arith.mulf %490, %489 : vector<16x1x128xf32>
      %492 = arith.addf %488, %491 : vector<16x1x128xf32>
      %c126_i32_176 = arith.constant 126 : i32
      %493 = tpu.dynamic_rotate %474 by %c126_i32_176 dim 2 : vector<16x1x128xf32>, i32 -> vector<16x1x128xf32>
      %494 = vector.broadcast %212 : f32 to vector<16x1x128xf32>
      %495 = arith.mulf %494, %493 : vector<16x1x128xf32>
      %496 = arith.addf %492, %495 : vector<16x1x128xf32>
      %c125_i32_177 = arith.constant 125 : i32
      %497 = tpu.dynamic_rotate %474 by %c125_i32_177 dim 2 : vector<16x1x128xf32>, i32 -> vector<16x1x128xf32>
      %498 = vector.broadcast %213 : f32 to vector<16x1x128xf32>
      %499 = arith.mulf %498, %497 : vector<16x1x128xf32>
      %500 = arith.addf %496, %499 : vector<16x1x128xf32>
      %501 = arith.addf %473, %500 : vector<16x1x128xf32>
      %502 = vector.extract_strided_slice %445 {offsets = [2, 0, 0], sizes = [16, 1, 128], strides = [1, 1, 1]} : vector<22x1x128xf32> to vector<16x1x128xf32>
      %c3_i32_178 = arith.constant 3 : i32
      %503 = tpu.dynamic_rotate %502 by %c3_i32_178 dim 2 : vector<16x1x128xf32>, i32 -> vector<16x1x128xf32>
      %504 = vector.broadcast %214 : f32 to vector<16x1x128xf32>
      %505 = arith.mulf %504, %503 : vector<16x1x128xf32>
      %c2_i32_179 = arith.constant 2 : i32
      %506 = tpu.dynamic_rotate %502 by %c2_i32_179 dim 2 : vector<16x1x128xf32>, i32 -> vector<16x1x128xf32>
      %507 = vector.broadcast %215 : f32 to vector<16x1x128xf32>
      %508 = arith.mulf %507, %506 : vector<16x1x128xf32>
      %509 = arith.addf %505, %508 : vector<16x1x128xf32>
      %c1_i32_180 = arith.constant 1 : i32
      %510 = tpu.dynamic_rotate %502 by %c1_i32_180 dim 2 : vector<16x1x128xf32>, i32 -> vector<16x1x128xf32>
      %511 = vector.broadcast %216 : f32 to vector<16x1x128xf32>
      %512 = arith.mulf %511, %510 : vector<16x1x128xf32>
      %513 = arith.addf %509, %512 : vector<16x1x128xf32>
      %514 = vector.broadcast %217 : f32 to vector<16x1x128xf32>
      %515 = arith.mulf %514, %502 : vector<16x1x128xf32>
      %516 = arith.addf %513, %515 : vector<16x1x128xf32>
      %c127_i32_181 = arith.constant 127 : i32
      %517 = tpu.dynamic_rotate %502 by %c127_i32_181 dim 2 : vector<16x1x128xf32>, i32 -> vector<16x1x128xf32>
      %518 = vector.broadcast %218 : f32 to vector<16x1x128xf32>
      %519 = arith.mulf %518, %517 : vector<16x1x128xf32>
      %520 = arith.addf %516, %519 : vector<16x1x128xf32>
      %c126_i32_182 = arith.constant 126 : i32
      %521 = tpu.dynamic_rotate %502 by %c126_i32_182 dim 2 : vector<16x1x128xf32>, i32 -> vector<16x1x128xf32>
      %522 = vector.broadcast %219 : f32 to vector<16x1x128xf32>
      %523 = arith.mulf %522, %521 : vector<16x1x128xf32>
      %524 = arith.addf %520, %523 : vector<16x1x128xf32>
      %c125_i32_183 = arith.constant 125 : i32
      %525 = tpu.dynamic_rotate %502 by %c125_i32_183 dim 2 : vector<16x1x128xf32>, i32 -> vector<16x1x128xf32>
      %526 = vector.broadcast %220 : f32 to vector<16x1x128xf32>
      %527 = arith.mulf %526, %525 : vector<16x1x128xf32>
      %528 = arith.addf %524, %527 : vector<16x1x128xf32>
      %529 = arith.addf %501, %528 : vector<16x1x128xf32>
      %530 = vector.extract_strided_slice %445 {offsets = [3, 0, 0], sizes = [16, 1, 128], strides = [1, 1, 1]} : vector<22x1x128xf32> to vector<16x1x128xf32>
      %c3_i32_184 = arith.constant 3 : i32
      %531 = tpu.dynamic_rotate %530 by %c3_i32_184 dim 2 : vector<16x1x128xf32>, i32 -> vector<16x1x128xf32>
      %532 = vector.broadcast %221 : f32 to vector<16x1x128xf32>
      %533 = arith.mulf %532, %531 : vector<16x1x128xf32>
      %c2_i32_185 = arith.constant 2 : i32
      %534 = tpu.dynamic_rotate %530 by %c2_i32_185 dim 2 : vector<16x1x128xf32>, i32 -> vector<16x1x128xf32>
      %535 = vector.broadcast %222 : f32 to vector<16x1x128xf32>
      %536 = arith.mulf %535, %534 : vector<16x1x128xf32>
      %537 = arith.addf %533, %536 : vector<16x1x128xf32>
      %c1_i32_186 = arith.constant 1 : i32
      %538 = tpu.dynamic_rotate %530 by %c1_i32_186 dim 2 : vector<16x1x128xf32>, i32 -> vector<16x1x128xf32>
      %539 = vector.broadcast %223 : f32 to vector<16x1x128xf32>
      %540 = arith.mulf %539, %538 : vector<16x1x128xf32>
      %541 = arith.addf %537, %540 : vector<16x1x128xf32>
      %542 = vector.broadcast %224 : f32 to vector<16x1x128xf32>
      %543 = arith.mulf %542, %530 : vector<16x1x128xf32>
      %544 = arith.addf %541, %543 : vector<16x1x128xf32>
      %c127_i32_187 = arith.constant 127 : i32
      %545 = tpu.dynamic_rotate %530 by %c127_i32_187 dim 2 : vector<16x1x128xf32>, i32 -> vector<16x1x128xf32>
      %546 = vector.broadcast %225 : f32 to vector<16x1x128xf32>
      %547 = arith.mulf %546, %545 : vector<16x1x128xf32>
      %548 = arith.addf %544, %547 : vector<16x1x128xf32>
      %c126_i32_188 = arith.constant 126 : i32
      %549 = tpu.dynamic_rotate %530 by %c126_i32_188 dim 2 : vector<16x1x128xf32>, i32 -> vector<16x1x128xf32>
      %550 = vector.broadcast %226 : f32 to vector<16x1x128xf32>
      %551 = arith.mulf %550, %549 : vector<16x1x128xf32>
      %552 = arith.addf %548, %551 : vector<16x1x128xf32>
      %c125_i32_189 = arith.constant 125 : i32
      %553 = tpu.dynamic_rotate %530 by %c125_i32_189 dim 2 : vector<16x1x128xf32>, i32 -> vector<16x1x128xf32>
      %554 = vector.broadcast %227 : f32 to vector<16x1x128xf32>
      %555 = arith.mulf %554, %553 : vector<16x1x128xf32>
      %556 = arith.addf %552, %555 : vector<16x1x128xf32>
      %557 = arith.addf %529, %556 : vector<16x1x128xf32>
      %558 = vector.extract_strided_slice %445 {offsets = [4, 0, 0], sizes = [16, 1, 128], strides = [1, 1, 1]} : vector<22x1x128xf32> to vector<16x1x128xf32>
      %c3_i32_190 = arith.constant 3 : i32
      %559 = tpu.dynamic_rotate %558 by %c3_i32_190 dim 2 : vector<16x1x128xf32>, i32 -> vector<16x1x128xf32>
      %560 = vector.broadcast %228 : f32 to vector<16x1x128xf32>
      %561 = arith.mulf %560, %559 : vector<16x1x128xf32>
      %c2_i32_191 = arith.constant 2 : i32
      %562 = tpu.dynamic_rotate %558 by %c2_i32_191 dim 2 : vector<16x1x128xf32>, i32 -> vector<16x1x128xf32>
      %563 = vector.broadcast %229 : f32 to vector<16x1x128xf32>
      %564 = arith.mulf %563, %562 : vector<16x1x128xf32>
      %565 = arith.addf %561, %564 : vector<16x1x128xf32>
      %c1_i32_192 = arith.constant 1 : i32
      %566 = tpu.dynamic_rotate %558 by %c1_i32_192 dim 2 : vector<16x1x128xf32>, i32 -> vector<16x1x128xf32>
      %567 = vector.broadcast %230 : f32 to vector<16x1x128xf32>
      %568 = arith.mulf %567, %566 : vector<16x1x128xf32>
      %569 = arith.addf %565, %568 : vector<16x1x128xf32>
      %570 = vector.broadcast %231 : f32 to vector<16x1x128xf32>
      %571 = arith.mulf %570, %558 : vector<16x1x128xf32>
      %572 = arith.addf %569, %571 : vector<16x1x128xf32>
      %c127_i32_193 = arith.constant 127 : i32
      %573 = tpu.dynamic_rotate %558 by %c127_i32_193 dim 2 : vector<16x1x128xf32>, i32 -> vector<16x1x128xf32>
      %574 = vector.broadcast %232 : f32 to vector<16x1x128xf32>
      %575 = arith.mulf %574, %573 : vector<16x1x128xf32>
      %576 = arith.addf %572, %575 : vector<16x1x128xf32>
      %c126_i32_194 = arith.constant 126 : i32
      %577 = tpu.dynamic_rotate %558 by %c126_i32_194 dim 2 : vector<16x1x128xf32>, i32 -> vector<16x1x128xf32>
      %578 = vector.broadcast %233 : f32 to vector<16x1x128xf32>
      %579 = arith.mulf %578, %577 : vector<16x1x128xf32>
      %580 = arith.addf %576, %579 : vector<16x1x128xf32>
      %c125_i32_195 = arith.constant 125 : i32
      %581 = tpu.dynamic_rotate %558 by %c125_i32_195 dim 2 : vector<16x1x128xf32>, i32 -> vector<16x1x128xf32>
      %582 = vector.broadcast %234 : f32 to vector<16x1x128xf32>
      %583 = arith.mulf %582, %581 : vector<16x1x128xf32>
      %584 = arith.addf %580, %583 : vector<16x1x128xf32>
      %585 = arith.addf %557, %584 : vector<16x1x128xf32>
      %586 = vector.extract_strided_slice %445 {offsets = [5, 0, 0], sizes = [16, 1, 128], strides = [1, 1, 1]} : vector<22x1x128xf32> to vector<16x1x128xf32>
      %c3_i32_196 = arith.constant 3 : i32
      %587 = tpu.dynamic_rotate %586 by %c3_i32_196 dim 2 : vector<16x1x128xf32>, i32 -> vector<16x1x128xf32>
      %588 = vector.broadcast %235 : f32 to vector<16x1x128xf32>
      %589 = arith.mulf %588, %587 : vector<16x1x128xf32>
      %c2_i32_197 = arith.constant 2 : i32
      %590 = tpu.dynamic_rotate %586 by %c2_i32_197 dim 2 : vector<16x1x128xf32>, i32 -> vector<16x1x128xf32>
      %591 = vector.broadcast %236 : f32 to vector<16x1x128xf32>
      %592 = arith.mulf %591, %590 : vector<16x1x128xf32>
      %593 = arith.addf %589, %592 : vector<16x1x128xf32>
      %c1_i32_198 = arith.constant 1 : i32
      %594 = tpu.dynamic_rotate %586 by %c1_i32_198 dim 2 : vector<16x1x128xf32>, i32 -> vector<16x1x128xf32>
      %595 = vector.broadcast %237 : f32 to vector<16x1x128xf32>
      %596 = arith.mulf %595, %594 : vector<16x1x128xf32>
      %597 = arith.addf %593, %596 : vector<16x1x128xf32>
      %598 = vector.broadcast %238 : f32 to vector<16x1x128xf32>
      %599 = arith.mulf %598, %586 : vector<16x1x128xf32>
      %600 = arith.addf %597, %599 : vector<16x1x128xf32>
      %c127_i32_199 = arith.constant 127 : i32
      %601 = tpu.dynamic_rotate %586 by %c127_i32_199 dim 2 : vector<16x1x128xf32>, i32 -> vector<16x1x128xf32>
      %602 = vector.broadcast %239 : f32 to vector<16x1x128xf32>
      %603 = arith.mulf %602, %601 : vector<16x1x128xf32>
      %604 = arith.addf %600, %603 : vector<16x1x128xf32>
      %c126_i32_200 = arith.constant 126 : i32
      %605 = tpu.dynamic_rotate %586 by %c126_i32_200 dim 2 : vector<16x1x128xf32>, i32 -> vector<16x1x128xf32>
      %606 = vector.broadcast %240 : f32 to vector<16x1x128xf32>
      %607 = arith.mulf %606, %605 : vector<16x1x128xf32>
      %608 = arith.addf %604, %607 : vector<16x1x128xf32>
      %c125_i32_201 = arith.constant 125 : i32
      %609 = tpu.dynamic_rotate %586 by %c125_i32_201 dim 2 : vector<16x1x128xf32>, i32 -> vector<16x1x128xf32>
      %610 = vector.broadcast %241 : f32 to vector<16x1x128xf32>
      %611 = arith.mulf %610, %609 : vector<16x1x128xf32>
      %612 = arith.addf %608, %611 : vector<16x1x128xf32>
      %613 = arith.addf %585, %612 : vector<16x1x128xf32>
      %614 = vector.extract_strided_slice %445 {offsets = [6, 0, 0], sizes = [16, 1, 128], strides = [1, 1, 1]} : vector<22x1x128xf32> to vector<16x1x128xf32>
      %c3_i32_202 = arith.constant 3 : i32
      %615 = tpu.dynamic_rotate %614 by %c3_i32_202 dim 2 : vector<16x1x128xf32>, i32 -> vector<16x1x128xf32>
      %616 = vector.broadcast %242 : f32 to vector<16x1x128xf32>
      %617 = arith.mulf %616, %615 : vector<16x1x128xf32>
      %c2_i32_203 = arith.constant 2 : i32
      %618 = tpu.dynamic_rotate %614 by %c2_i32_203 dim 2 : vector<16x1x128xf32>, i32 -> vector<16x1x128xf32>
      %619 = vector.broadcast %243 : f32 to vector<16x1x128xf32>
      %620 = arith.mulf %619, %618 : vector<16x1x128xf32>
      %621 = arith.addf %617, %620 : vector<16x1x128xf32>
      %c1_i32_204 = arith.constant 1 : i32
      %622 = tpu.dynamic_rotate %614 by %c1_i32_204 dim 2 : vector<16x1x128xf32>, i32 -> vector<16x1x128xf32>
      %623 = vector.broadcast %244 : f32 to vector<16x1x128xf32>
      %624 = arith.mulf %623, %622 : vector<16x1x128xf32>
      %625 = arith.addf %621, %624 : vector<16x1x128xf32>
      %626 = vector.broadcast %245 : f32 to vector<16x1x128xf32>
      %627 = arith.mulf %626, %614 : vector<16x1x128xf32>
      %628 = arith.addf %625, %627 : vector<16x1x128xf32>
      %c127_i32_205 = arith.constant 127 : i32
      %629 = tpu.dynamic_rotate %614 by %c127_i32_205 dim 2 : vector<16x1x128xf32>, i32 -> vector<16x1x128xf32>
      %630 = vector.broadcast %246 : f32 to vector<16x1x128xf32>
      %631 = arith.mulf %630, %629 : vector<16x1x128xf32>
      %632 = arith.addf %628, %631 : vector<16x1x128xf32>
      %c126_i32_206 = arith.constant 126 : i32
      %633 = tpu.dynamic_rotate %614 by %c126_i32_206 dim 2 : vector<16x1x128xf32>, i32 -> vector<16x1x128xf32>
      %634 = vector.broadcast %247 : f32 to vector<16x1x128xf32>
      %635 = arith.mulf %634, %633 : vector<16x1x128xf32>
      %636 = arith.addf %632, %635 : vector<16x1x128xf32>
      %c125_i32_207 = arith.constant 125 : i32
      %637 = tpu.dynamic_rotate %614 by %c125_i32_207 dim 2 : vector<16x1x128xf32>, i32 -> vector<16x1x128xf32>
      %638 = vector.broadcast %248 : f32 to vector<16x1x128xf32>
      %639 = arith.mulf %638, %637 : vector<16x1x128xf32>
      %640 = arith.addf %636, %639 : vector<16x1x128xf32>
      %641 = arith.addf %613, %640 : vector<16x1x128xf32>
      %642 = vector.extract_strided_slice %641 {offsets = [0, 0, 0], sizes = [1, 1, 16], strides = [1, 1, 1]} : vector<16x1x128xf32> to vector<1x1x16xf32>
      %643 = vector.shape_cast %642 : vector<1x1x16xf32> to vector<1x16xf32>
      %644 = vector.extract_strided_slice %641 {offsets = [1, 0, 0], sizes = [1, 1, 16], strides = [1, 1, 1]} : vector<16x1x128xf32> to vector<1x1x16xf32>
      %645 = vector.shape_cast %644 : vector<1x1x16xf32> to vector<1x16xf32>
      %646 = vector.extract_strided_slice %641 {offsets = [2, 0, 0], sizes = [1, 1, 16], strides = [1, 1, 1]} : vector<16x1x128xf32> to vector<1x1x16xf32>
      %647 = vector.shape_cast %646 : vector<1x1x16xf32> to vector<1x16xf32>
      %648 = vector.extract_strided_slice %641 {offsets = [3, 0, 0], sizes = [1, 1, 16], strides = [1, 1, 1]} : vector<16x1x128xf32> to vector<1x1x16xf32>
      %649 = vector.shape_cast %648 : vector<1x1x16xf32> to vector<1x16xf32>
      %650 = vector.extract_strided_slice %641 {offsets = [4, 0, 0], sizes = [1, 1, 16], strides = [1, 1, 1]} : vector<16x1x128xf32> to vector<1x1x16xf32>
      %651 = vector.shape_cast %650 : vector<1x1x16xf32> to vector<1x16xf32>
      %652 = vector.extract_strided_slice %641 {offsets = [5, 0, 0], sizes = [1, 1, 16], strides = [1, 1, 1]} : vector<16x1x128xf32> to vector<1x1x16xf32>
      %653 = vector.shape_cast %652 : vector<1x1x16xf32> to vector<1x16xf32>
      %654 = vector.extract_strided_slice %641 {offsets = [6, 0, 0], sizes = [1, 1, 16], strides = [1, 1, 1]} : vector<16x1x128xf32> to vector<1x1x16xf32>
      %655 = vector.shape_cast %654 : vector<1x1x16xf32> to vector<1x16xf32>
      %656 = vector.extract_strided_slice %641 {offsets = [7, 0, 0], sizes = [1, 1, 16], strides = [1, 1, 1]} : vector<16x1x128xf32> to vector<1x1x16xf32>
      %657 = vector.shape_cast %656 : vector<1x1x16xf32> to vector<1x16xf32>
      %658 = vector.extract_strided_slice %641 {offsets = [8, 0, 0], sizes = [1, 1, 16], strides = [1, 1, 1]} : vector<16x1x128xf32> to vector<1x1x16xf32>
      %659 = vector.shape_cast %658 : vector<1x1x16xf32> to vector<1x16xf32>
      %660 = vector.extract_strided_slice %641 {offsets = [9, 0, 0], sizes = [1, 1, 16], strides = [1, 1, 1]} : vector<16x1x128xf32> to vector<1x1x16xf32>
      %661 = vector.shape_cast %660 : vector<1x1x16xf32> to vector<1x16xf32>
      %662 = vector.extract_strided_slice %641 {offsets = [10, 0, 0], sizes = [1, 1, 16], strides = [1, 1, 1]} : vector<16x1x128xf32> to vector<1x1x16xf32>
      %663 = vector.shape_cast %662 : vector<1x1x16xf32> to vector<1x16xf32>
      %664 = vector.extract_strided_slice %641 {offsets = [11, 0, 0], sizes = [1, 1, 16], strides = [1, 1, 1]} : vector<16x1x128xf32> to vector<1x1x16xf32>
      %665 = vector.shape_cast %664 : vector<1x1x16xf32> to vector<1x16xf32>
      %666 = vector.extract_strided_slice %641 {offsets = [12, 0, 0], sizes = [1, 1, 16], strides = [1, 1, 1]} : vector<16x1x128xf32> to vector<1x1x16xf32>
      %667 = vector.shape_cast %666 : vector<1x1x16xf32> to vector<1x16xf32>
      %668 = vector.extract_strided_slice %641 {offsets = [13, 0, 0], sizes = [1, 1, 16], strides = [1, 1, 1]} : vector<16x1x128xf32> to vector<1x1x16xf32>
      %669 = vector.shape_cast %668 : vector<1x1x16xf32> to vector<1x16xf32>
      %670 = vector.extract_strided_slice %641 {offsets = [14, 0, 0], sizes = [1, 1, 16], strides = [1, 1, 1]} : vector<16x1x128xf32> to vector<1x1x16xf32>
      %671 = vector.shape_cast %670 : vector<1x1x16xf32> to vector<1x16xf32>
      %672 = vector.extract_strided_slice %641 {offsets = [15, 0, 0], sizes = [1, 1, 16], strides = [1, 1, 1]} : vector<16x1x128xf32> to vector<1x1x16xf32>
      %673 = vector.shape_cast %672 : vector<1x1x16xf32> to vector<1x16xf32>
      %674 = tpu.concatenate %643, %645, %647, %649, %651, %653, %655, %657, %659, %661, %663, %665, %667, %669, %671, %673 in 1 : vector<1x16xf32>, vector<1x16xf32>, vector<1x16xf32>, vector<1x16xf32>, vector<1x16xf32>, vector<1x16xf32>, vector<1x16xf32>, vector<1x16xf32>, vector<1x16xf32>, vector<1x16xf32>, vector<1x16xf32>, vector<1x16xf32>, vector<1x16xf32>, vector<1x16xf32>, vector<1x16xf32>, vector<1x16xf32> -> vector<1x256xf32>
      %675 = arith.negf %674 : vector<1x256xf32>
      %676 = math.exp %675 : vector<1x256xf32>
      %cst_208 = arith.constant 1.000000e+00 : f32
      %677 = vector.broadcast %cst_208 : f32 to vector<1x256xf32>
      %678 = arith.addf %677, %676 : vector<1x256xf32>
      %679 = arith.divf %677, %678 : vector<1x256xf32>
      %c0_209 = arith.constant 0 : index
      %c0_210 = arith.constant 0 : index
      %c0_211 = arith.constant 0 : index
      %680 = vector.load %arg4[%c0_209, %c0_210, %c0_211] : memref<1x1x256xf32, #tpu.memory_space<vmem>>, vector<1x1x256xf32>
      %681 = vector.shape_cast %680 : vector<1x1x256xf32> to vector<1x256xf32>
      %682 = vector.shape_cast %679 : vector<1x256xf32> to vector<1x1x256xf32>
      tpu.vector_store %arg4[%c0_209, %c0_210, %c0_211], %682 {strides = array<i32>} : memref<1x1x256xf32, #tpu.memory_space<vmem>>, vector<1x1x256xf32>,
    } else {
    }
    return
  }
  func.func @transform_0(%arg0: i32, %arg1: i32) -> i32 {
    %c0_i32 = arith.constant 0 : i32
    %c0_i32_0 = arith.constant 0 : i32
    return %c0_i32 : i32
  }
  func.func @transform_1(%arg0: i32, %arg1: i32) -> (i32, i32, i32) {
    %c0_i32 = arith.constant 0 : i32
    %c0_i32_0 = arith.constant 0 : i32
    return %arg0, %arg1, %c0_i32 : i32, i32, i32
  }
  func.func @transform_2(%arg0: i32, %arg1: i32) -> (i32, i32, i32) {
    %c0_i32 = arith.constant 0 : i32
    %c0_i32_0 = arith.constant 0 : i32
    %c0_i32_1 = arith.constant 0 : i32
    return %arg0, %c0_i32, %c0_i32_0 : i32, i32, i32
  }
}

</mosaic_0001>

<llo_original>
// kernel: tpu_custom_call.1
$region0: #{tpu_custom_call.1}
  #allocation0 [shape = 'u32[]', space=smem, size = 0x4, offset = 0x4, fixed_abs, tag = 'smem constant byte address 0x4 - core index']
  #allocation1 [shape = 'u32[144,128]{1,0:T(1,128)}', space=vmem, size = 0x12000, scoped, tag = 'internal scratch']
  #allocation2 [shape = 'f32[1,256]{1,0:T(1,128)}', space=vmem, size = 0x400, scoped, tag = 'scratch operand']
  #allocation3 [shape = 'f32[1,256]{1,0:T(1,128)}', space=vmem, size = 0x400, scoped, tag = 'scratch operand']
  #allocation4 [shape = 'f32[22,1,128]{2,1,0:T(1,128)}', space=vmem, size = 0x2c00, scoped, tag = 'scratch operand']
  #allocation5 [shape = 'f32[22,1,128]{2,1,0:T(1,128)}', space=vmem, size = 0x2c00, scoped, tag = 'scratch operand']
  %s0 = inlined_call_operand.hbm [shape: f32[98], index: 0, kind: input, shape index: {}]
  %s1 = inlined_call_operand.hbm [shape: f32[2,4,256], index: 1, kind: input, shape index: {}]
  %s2 = inlined_call_operand.hbm [shape: f32[2,1,256], index: 2, kind: output, shape index: {}]
  %s3 = sld [smem:[#allocation0]]
  $region57: #{tpu_custom_call.1} parent=0
    _
  %s5 = ssub.s32 1, %s3
  %s6 = scalar_select 0, %s5, %s3
  $region1: #{tpu_custom_call.1} parent=0
    #allocation6 [shape = 'u8[512]{0}', space=smem, size = 0x200, scoped, tag = 'input window, operand 0, single buffered']
    #allocation7 [shape = 's32[2]{0}', space=sflag, size = 0x8, scoped, tag = 'scoped memory for tpu_custom_call.1']
    #allocation8 [shape = 's32[2]{0}', space=sflag, size = 0x8, scoped, tag = 'scoped memory for tpu_custom_call.1']
    #allocation9 [shape = 's32[2]{0}', space=sflag, size = 0x8, scoped, tag = 'scoped memory for tpu_custom_call.1']
    #allocation10 [shape = 'u8[8192]{0}', space=vmem, size = 0x2000, scoped, tag = 'input window, operand 1']
    #allocation11 [shape = 'u8[2048]{0}', space=vmem, size = 0x800, scoped, tag = 'output window, operand 0']
    %7 = vsyncpa [#allocation9], 0
    %8 = vsyncpa [#allocation7], 0
    %s9 = scalar_lea.sflag [#allocation7], 1
    %10 = vsyncpa %s9, 0
    %11 = vsyncpa [#allocation8], 0
    %s12 = scalar_lea.sflag [#allocation8], 1
    %13 = vsyncpa %s12, 0
    loop: start=0, step=1, limit=4
    $region2: #{tpu_custom_call.1} parent=1 // loop_pre_header
      _
    $region3: #{tpu_custom_call.1} parent=1 // loop_header
      %s15 = sphi 0, %s19
      %p16 = scmp.ge.s32.totalorder %s15, 4
      %s22 = sphi 0, %s34
      %s23 = sphi 0, %s30
      %s24 = sphi 0, %s22
      %s25 = sphi 0, %s23
      %s26 = sphi 0, %s24
      %s27 = sphi 0, %s25
      %s35 = sphi 0, %s35
      %s37 = sphi 0, %s35
      %s38 = sphi 0, %s37
      %s52 = sphi 0, %s38
      %s60 = sphi 0, %s62
      %s63 = sphi 0, %s60
      %s64 = sphi 0, %s63
      %s80 = sphi 0, %s64
      %s86 = sphi 0, %s88
      %s89 = sphi 0, %s86
      %s90 = sphi 0, %s89
      %s106 = sphi 0, %s90
    $region4: #{tpu_custom_call.1} parent=1 // loop_header_branch
      %18 = sbr.rel (%p16) target = $region8
    $region5: #{tpu_custom_call.1} parent=1 // loop_body
      %s20 = ssub.s32 %s15, 1
      %s21 = ssub.s32 %s15, 2
      %s28 = sadd.s32 1, %s23
      %p29 = scmp.ge.s32.totalorder %s28, 1
      %s30 = scalar_select %p29, 0, %s28
      %s31 = sadd.s32 1, %s22
      %s32 = scalar_select %p29, %s31, %s22
      %p33 = scmp.ge.s32.totalorder %s32, 2
      %s34 = scalar_select %p33, 0, %s32
      %s36 = sadd.s32 %s35, 1
      %p39 = scmp.eq.s32.totalorder %s15, 1
      %p40 = scmp.ne.s32.totalorder %s35, %s37
      %p41 = scmp.eq.s32.totalorder %s15, 0
      %p42 = por %p40, %p41
      %p43 = scmp.ne.s32.totalorder %s35, %s37
      %p44 = scmp.eq.s32.totalorder %s20, 1
      %p45 = por %p43, %p44
      %p46 = scmp.ne.s32.totalorder %s37, %s38
      %p47 = scmp.eq.s32.totalorder %s20, 0
      %p48 = por %p46, %p47
      %p49 = scmp.ne.s32.totalorder %s37, %s38
      %p50 = scmp.eq.s32.totalorder %s21, 1
      %p51 = por %p49, %p50
      %p53 = scmp.ne.s32.totalorder %s38, %s52
      %p54 = scmp.eq.s32.totalorder %s21, 0
      %p55 = por %p53, %p54
      %s56 = ssub.s32 %s22, %s34
      %s57 = ssub.s32 %s23, %s30
      %s58 = sor.u32 %s56, %s57
      %p59 = scmp.eq.s32.totalorder %s58, 0
      %s61 = sadd.s32 %s60, 1
      %s62 = scalar_select %p59, %s60, %s61
      %p65 = pneg %p59
      %p66 = scmp.eq.s32.totalorder %s15, 1
      %p67 = por %p65, %p66
      %p68 = scmp.ne.s32.totalorder %s60, %s63
      %p69 = scmp.eq.s32.totalorder %s15, 0
      %p70 = por %p68, %p69
      %p71 = scmp.ne.s32.totalorder %s60, %s63
      %p72 = scmp.eq.s32.totalorder %s20, 1
      %p73 = por %p71, %p72
      %p74 = scmp.ne.s32.totalorder %s63, %s64
      %p75 = scmp.eq.s32.totalorder %s20, 0
      %p76 = por %p74, %p75
      %p77 = scmp.ne.s32.totalorder %s63, %s64
      %p78 = scmp.eq.s32.totalorder %s21, 1
      %p79 = por %p77, %p78
      %p81 = scmp.ne.s32.totalorder %s64, %s80
      %p82 = scmp.eq.s32.totalorder %s21, 0
      %p83 = por %p81, %p82
      %s84 = ssub.s32 %s22, %s34
      %p85 = scmp.eq.s32.totalorder %s84, 0
      %s87 = sadd.s32 %s86, 1
      %s88 = scalar_select %p85, %s86, %s87
      %p91 = pneg %p85
      %p92 = scmp.eq.s32.totalorder %s15, 1
      %p93 = por %p91, %p92
      %p94 = scmp.ne.s32.totalorder %s86, %s89
      %p95 = scmp.eq.s32.totalorder %s15, 0
      %p96 = por %p94, %p95
      %p97 = scmp.ne.s32.totalorder %s86, %s89
      %p98 = scmp.eq.s32.totalorder %s20, 1
      %p99 = por %p97, %p98
      %p100 = scmp.ne.s32.totalorder %s89, %s90
      %p101 = scmp.eq.s32.totalorder %s20, 0
      %p102 = por %p100, %p101
      %p103 = scmp.ne.s32.totalorder %s89, %s90
      %p104 = scmp.eq.s32.totalorder %s21, 1
      %p105 = por %p103, %p104
      %p107 = scmp.ne.s32.totalorder %s90, %s106
      %p108 = scmp.eq.s32.totalorder %s21, 0
      %p109 = por %p107, %p108
      %p110 = scmp.le.s32.totalorder 1, %s15
      %p111 = scmp.lt.s32.totalorder %s15, 3
      %p112 = pnand %p110, %p111
      %p113 = pneg %p112
      // Predicated region
      $region9: #{tpu_custom_call.1} parent=5 // pred_check
        _
      $region10: #{tpu_custom_call.1} parent=5 // pred_check_branch
        %115 = sbr.rel (%p112) target = $region12
      $region11: #{tpu_custom_call.1} parent=5 // pred_region
        %s116 = ssub.s32 %s15, 1
        // Predicated region
        $region13: #{tpu_custom_call.1} parent=11 // pred_check
          %p117 = pneg %p48
        $region14: #{tpu_custom_call.1} parent=11 // pred_check_branch
          %119 = sbr.rel (%p117) target = $region16
        $region15: #{tpu_custom_call.1} parent=11 // pred_region
          %s121 = ssub.s32 16, 16
          %122 = vsyncadd [#allocation9], %s121
          %125 = dma.hbm_to_smem %s0, 16, [#allocation6], [#allocation9]
        $region16: #{tpu_custom_call.1} parent=11 // pred_fallthru
          _
      $region12: #{tpu_custom_call.1} parent=5 // pred_fallthru
        _
      %p126 = scmp.lt.s32.totalorder %s15, 2
      // Predicated region
      $region17: #{tpu_custom_call.1} parent=5 // pred_check
        %p127 = pneg %p126
      $region18: #{tpu_custom_call.1} parent=5 // pred_check_branch
        %129 = sbr.rel (%p127) target = $region20
      $region19: #{tpu_custom_call.1} parent=5 // pred_region
        // Predicated region
        $region21: #{tpu_custom_call.1} parent=19 // pred_check
          %p130 = pneg %p70
        $region22: #{tpu_custom_call.1} parent=19 // pred_check_branch
          %132 = sbr.rel (%p130) target = $region24
        $region23: #{tpu_custom_call.1} parent=19 // pred_region
          %s133 = sand.u32 %s60, 1
          %s134 = scalar_lea.sflag [#allocation7], %s133
          %s135 = sand.u32 %s60, 1
          %s136 = smul.addr %s135, 8
          %s137 = scalar_lea.vmem [#allocation10], %s136
          %s139 = ssub.s32 128, 128
          %140 = vsyncadd %s134, %s139
          %s141 = smul.addr %s23, 2
          %s142 = smul.addr %s22, 2
          %s143 = sadd.s32 %s141, %s142
          %s144 = smul.addr %s143, 64
          %s145 = scalar_lea.hbm %s1, %s144
          %s147 = sshll.u32 %s137, 4
          %s148 = int_to_ptr.vmem [resolvable:$true] %s147
          %150 = dma.hbm_to_vmem [thread:$0]  %s145, 128, %s148, %s134
        $region24: #{tpu_custom_call.1} parent=19 // pred_fallthru
          _
      $region20: #{tpu_custom_call.1} parent=5 // pred_fallthru
        _
      %p151 = scmp.le.s32.totalorder 1, %s15
      %p152 = scmp.lt.s32.totalorder %s15, 3
      %p153 = pnand %p151, %p152
      %p154 = pneg %p153
      // Predicated region
      $region25: #{tpu_custom_call.1} parent=5 // pred_check
        _
      $region26: #{tpu_custom_call.1} parent=5 // pred_check_branch
        %156 = sbr.rel (%p153) target = $region28
      $region27: #{tpu_custom_call.1} parent=5 // pred_region
        %s157 = ssub.s32 %s15, 1
        // Predicated region
        $region29: #{tpu_custom_call.1} parent=27 // pred_check
          %p158 = pneg %p48
        $region30: #{tpu_custom_call.1} parent=27 // pred_check_branch
          %160 = sbr.rel (%p158) target = $region32
        $region31: #{tpu_custom_call.1} parent=27 // pred_region
          %161 = dma.done [#allocation9], 16
        $region32: #{tpu_custom_call.1} parent=27 // pred_fallthru
          _
        %s162 = sand.u32 %s63, 1
        %s163 = scalar_lea.sflag [#allocation7], %s162
        %s164 = sand.u32 %s63, 1
        %s165 = smul.addr %s164, 8
        %s166 = scalar_lea.vmem [#allocation10], %s165
        // Predicated region
        $region33: #{tpu_custom_call.1} parent=27 // pred_check
          %p167 = pneg %p76
        $region34: #{tpu_custom_call.1} parent=27 // pred_check_branch
          %169 = sbr.rel (%p167) target = $region36
        $region35: #{tpu_custom_call.1} parent=27 // pred_region
          %170 = dma.done %s163, 128
        $region36: #{tpu_custom_call.1} parent=27 // pred_fallthru
          _
        %171 = sfence
        %p172 = pneg %p48
        %p173 = pneg %p45
        %s174 = sand.u32 %s63, 1
        %s175 = scalar_lea.sflag [#allocation7], %s174
        %s176 = sand.u32 %s63, 1
        %s177 = smul.addr %s176, 8
        %s178 = scalar_lea.vmem [#allocation10], %s177
        %p179 = pneg %p76
        %p180 = pneg %p73
        %p181 = pneg %p102
        %p182 = pneg %p99
        %s183 = sand.u32 %s89, 1
        %s184 = scalar_lea.sflag [#allocation8], %s183
        %s185 = sand.u32 %s89, 1
        %s186 = smul.addr %s185, 2
        %s187 = scalar_lea.vmem [#allocation11], %s186
        %p188 = scmp.eq.s32.totalorder %s25, 0
        // Predicated region
        $region37: #{tpu_custom_call.1} parent=27 // pred_check
          %p189 = pneg %p188
        $region38: #{tpu_custom_call.1} parent=27 // pred_check_branch
          %191 = sbr.rel (%p189) target = $region40
        $region39: #{tpu_custom_call.1} parent=27 // pred_region
          %v192 = vlaneseq
          %vm193 = vcmp.ge.s32.totalorder %v192, 0
          %vm194 = vcmp.lt.s32.totalorder %v192, 256
          %vm195 = vmand %vm193, %vm194
          %196 = vst.msk [vmem:[#allocation2] sm:$0x3] %vm195, 0.0
          %197 = vst.msk [vmem:[#allocation3] sm:$0x3] %vm195, -inf
        $region40: #{tpu_custom_call.1} parent=27 // pred_fallthru
          _
        %v198 = vld [vmem:[%s166] sm:$0xff]
        %v199 = vld [vmem:[#allocation2] sm:$0x3]
        %v201 = vcombine.high %v198, %v198
        %vm203 = vcmask 1043456
        %v204 = vsel %vm203, %v198, 0.0
        %v205 = vrot.slane %v204, 4
        %v206 = vadd.f32 %v204, %v205
        %v207 = vrot.slane %v206, 2
        %v208 = vadd.f32 %v206, %v207
        %v209 = vrot.slane %v208, 1
        %v210 = vadd.f32 %v208, %v209
        %v211 = vsel %vm203, %v201, 0.0
        %v212 = vrot.slane %v211, 4
        %v213 = vadd.f32 %v211, %v212
        %v214 = vrot.slane %v213, 2
        %v215 = vadd.f32 %v213, %v214
        %v216 = vrot.slane %v215, 1
        %v217 = vadd.f32 %v215, %v216
        %v220 = vcombine.low %v210, %v217
        %v222 = vunpack.c.l.s4 1966171168
        %v223 = vunpack.c.0.s8 %v222
        %v224 = vlaneseq
        %v225 = vshrl.u32 %v224, 7
        %v226 = vsub.s32 %v223, %v225
        %v227 = vrot.slane %v220, %v226
        %v229 = vunpack.c.l.s4 1966171168
        %v230 = vunpack.c.0.s8 %v229
        %v231 = vlaneseq
        %v232 = vshrl.u32 %v231, 7
        %v233 = vsub.s32 %v230, %v232
        %v234 = vrot.slane %v227, %v233
        %v236 = vadd.f32 %v199, %v234
        %v237 = vlaneseq
        %vm238 = vcmp.ge.s32.totalorder %v237, 0
        %vm239 = vcmp.lt.s32.totalorder %v237, 256
        %vm240 = vmand %vm238, %vm239
        %241 = vst.msk [vmem:[#allocation2] sm:$0x3] %vm240, %v236
        %v242 = vld [vmem:[#allocation3] sm:$0x3]
        %v243 = vsel %vm203, %v198, -inf
        %v244 = vrot.slane %v243, 4
        %v245 = vmax.f32 %v243, %v244
        %v246 = vrot.slane %v245, 2
        %v247 = vmax.f32 %v245, %v246
        %v248 = vrot.slane %v247, 1
        %v249 = vmax.f32 %v247, %v248
        %v250 = vsel %vm203, %v201, -inf
        %v251 = vrot.slane %v250, 4
        %v252 = vmax.f32 %v250, %v251
        %v253 = vrot.slane %v252, 2
        %v254 = vmax.f32 %v252, %v253
        %v255 = vrot.slane %v254, 1
        %v256 = vmax.f32 %v254, %v255
        %v259 = vcombine.low %v249, %v256
        %v261 = vunpack.c.l.s4 1966171168
        %v262 = vunpack.c.0.s8 %v261
        %v263 = vlaneseq
        %v264 = vshrl.u32 %v263, 7
        %v265 = vsub.s32 %v262, %v264
        %v266 = vrot.slane %v259, %v265
        %v268 = vunpack.c.l.s4 1966171168
        %v269 = vunpack.c.0.s8 %v268
        %v270 = vlaneseq
        %v271 = vshrl.u32 %v270, 7
        %v272 = vsub.s32 %v269, %v271
        %v273 = vrot.slane %v266, %v272
        %v275 = vmax.f32 %v242, %v273
        %276 = vst.msk [vmem:[#allocation3] sm:$0x3] %vm240, %v275
        // Predicated region
        $region41: #{tpu_custom_call.1} parent=27 // pred_check
          %p277 = pneg %p188
        $region42: #{tpu_custom_call.1} parent=27 // pred_check_branch
          %279 = sbr.rel (%p277) target = $region44
        $region43: #{tpu_custom_call.1} parent=27 // pred_region
          %280 = vst [vmem:[#allocation4] sm:$0x1] 0.0
          %281 = vst [vmem:[#allocation4 + $0x1] sm:$0x1] 0.0
          %282 = vst [vmem:[#allocation4 + $0x2] sm:$0x1] 0.0
          %283 = vst [vmem:[#allocation4 + $0x3] sm:$0x1] 0.0
          %284 = vst [vmem:[#allocation4 + $0x4] sm:$0x1] 0.0
          %285 = vst [vmem:[#allocation4 + $0x5] sm:$0x1] 0.0
          %286 = vst [vmem:[#allocation4 + $0x6] sm:$0x1] 0.0
          %287 = vst [vmem:[#allocation4 + $0x7] sm:$0x1] 0.0
          %288 = vst [vmem:[#allocation4 + $0x8] sm:$0x1] 0.0
          %289 = vst [vmem:[#allocation4 + $0x9] sm:$0x1] 0.0
          %290 = vst [vmem:[#allocation4 + $0xa] sm:$0x1] 0.0
          %291 = vst [vmem:[#allocation4 + $0xb] sm:$0x1] 0.0
          %292 = vst [vmem:[#allocation4 + $0xc] sm:$0x1] 0.0
          %293 = vst [vmem:[#allocation4 + $0xd] sm:$0x1] 0.0
          %294 = vst [vmem:[#allocation4 + $0xe] sm:$0x1] 0.0
          %295 = vst [vmem:[#allocation4 + $0xf] sm:$0x1] 0.0
          %296 = vst [vmem:[#allocation4 + $0x10] sm:$0x1] 0.0
          %297 = vst [vmem:[#allocation4 + $0x11] sm:$0x1] 0.0
          %298 = vst [vmem:[#allocation4 + $0x12] sm:$0x1] 0.0
          %299 = vst [vmem:[#allocation4 + $0x13] sm:$0x1] 0.0
          %300 = vst [vmem:[#allocation4 + $0x14] sm:$0x1] 0.0
          %301 = vst [vmem:[#allocation4 + $0x15] sm:$0x1] 0.0
          %302 = vst [vmem:[#allocation5] sm:$0x1] 0.0
          %303 = vst [vmem:[#allocation5 + $0x1] sm:$0x1] 0.0
          %304 = vst [vmem:[#allocation5 + $0x2] sm:$0x1] 0.0
          %305 = vst [vmem:[#allocation5 + $0x3] sm:$0x1] 0.0
          %306 = vst [vmem:[#allocation5 + $0x4] sm:$0x1] 0.0
          %307 = vst [vmem:[#allocation5 + $0x5] sm:$0x1] 0.0
          %308 = vst [vmem:[#allocation5 + $0x6] sm:$0x1] 0.0
          %309 = vst [vmem:[#allocation5 + $0x7] sm:$0x1] 0.0
          %310 = vst [vmem:[#allocation5 + $0x8] sm:$0x1] 0.0
          %311 = vst [vmem:[#allocation5 + $0x9] sm:$0x1] 0.0
          %312 = vst [vmem:[#allocation5 + $0xa] sm:$0x1] 0.0
          %313 = vst [vmem:[#allocation5 + $0xb] sm:$0x1] 0.0
          %314 = vst [vmem:[#allocation5 + $0xc] sm:$0x1] 0.0
          %315 = vst [vmem:[#allocation5 + $0xd] sm:$0x1] 0.0
          %316 = vst [vmem:[#allocation5 + $0xe] sm:$0x1] 0.0
          %317 = vst [vmem:[#allocation5 + $0xf] sm:$0x1] 0.0
          %318 = vst [vmem:[#allocation5 + $0x10] sm:$0x1] 0.0
          %319 = vst [vmem:[#allocation5 + $0x11] sm:$0x1] 0.0
          %320 = vst [vmem:[#allocation5 + $0x12] sm:$0x1] 0.0
          %321 = vst [vmem:[#allocation5 + $0x13] sm:$0x1] 0.0
          %322 = vst [vmem:[#allocation5 + $0x14] sm:$0x1] 0.0
          %323 = vst [vmem:[#allocation5 + $0x15] sm:$0x1] 0.0
          %v324 = vld [vmem:[#allocation2] sm:$0x3]
          %v325 = vmul.f32 %v324, 0.25
          %v326 = vld [vmem:[#allocation3] sm:$0x3]
          %s327 = scalar_lea.vmem [#allocation4], 3
          %vm328 = vcmask 122880
          %329 = vst.msk [vmem:[%s327] sm:$0x1] %vm328, %v325
          %s330 = scalar_lea.vmem [#allocation5], 3
          %331 = vst.msk [vmem:[%s330] sm:$0x1] %vm328, %v326
          %v333 = vlaneseq
          %v334 = vshrl.u32 %v333, 7
          %v335 = vsub.s32 0, %v334
          %v336 = vrot.slane %v325, %v335
          %337 = vrot.lane.b32.xlu0 %v336, 112
          %v338 = vpop.permute.xlu0 %337
          %s340 = scalar_lea.vmem [#allocation4], 4
          %341 = vst.msk [vmem:[%s340] sm:$0x1] %vm328, %v338
          %v343 = vlaneseq
          %v344 = vshrl.u32 %v343, 7
          %v345 = vsub.s32 0, %v344
          %v346 = vrot.slane %v326, %v345
          %347 = vrot.lane.b32.xlu0 %v346, 112
          %v348 = vpop.permute.xlu0 %347
          %s350 = scalar_lea.vmem [#allocation5], 4
          %351 = vst.msk [vmem:[%s350] sm:$0x1] %vm328, %v348
          %352 = vrot.lane.b32.xlu0 %v336, 96
          %v353 = vpop.permute.xlu0 %352
          %s355 = scalar_lea.vmem [#allocation4], 5
          %356 = vst.msk [vmem:[%s355] sm:$0x1] %vm328, %v353
          %357 = vrot.lane.b32.xlu0 %v346, 96
          %v358 = vpop.permute.xlu0 %357
          %s360 = scalar_lea.vmem [#allocation5], 5
          %361 = vst.msk [vmem:[%s360] sm:$0x1] %vm328, %v358
          %362 = vrot.lane.b32.xlu0 %v336, 80
          %v363 = vpop.permute.xlu0 %362
          %s365 = scalar_lea.vmem [#allocation4], 6
          %366 = vst.msk [vmem:[%s365] sm:$0x1] %vm328, %v363
          %367 = vrot.lane.b32.xlu0 %v346, 80
          %v368 = vpop.permute.xlu0 %367
          %s370 = scalar_lea.vmem [#allocation5], 6
          %371 = vst.msk [vmem:[%s370] sm:$0x1] %vm328, %v368
          %372 = vrot.lane.b32.xlu0 %v336, 64
          %v373 = vpop.permute.xlu0 %372
          %s375 = scalar_lea.vmem [#allocation4], 7
          %376 = vst.msk [vmem:[%s375] sm:$0x1] %vm328, %v373
          %377 = vrot.lane.b32.xlu0 %v346, 64
          %v378 = vpop.permute.xlu0 %377
          %s380 = scalar_lea.vmem [#allocation5], 7
          %381 = vst.msk [vmem:[%s380] sm:$0x1] %vm328, %v378
          %382 = vrot.lane.b32.xlu0 %v336, 48
          %v383 = vpop.permute.xlu0 %382
          %s385 = scalar_lea.vmem [#allocation4], 8
          %386 = vst.msk [vmem:[%s385] sm:$0x1] %vm328, %v383
          %387 = vrot.lane.b32.xlu0 %v346, 48
          %v388 = vpop.permute.xlu0 %387
          %s390 = scalar_lea.vmem [#allocation5], 8
          %391 = vst.msk [vmem:[%s390] sm:$0x1] %vm328, %v388
          %392 = vrot.lane.b32.xlu0 %v336, 32
          %v393 = vpop.permute.xlu0 %392
          %s395 = scalar_lea.vmem [#allocation4], 9
          %396 = vst.msk [vmem:[%s395] sm:$0x1] %vm328, %v393
          %397 = vrot.lane.b32.xlu0 %v346, 32
          %v398 = vpop.permute.xlu0 %397
          %s400 = scalar_lea.vmem [#allocation5], 9
          %401 = vst.msk [vmem:[%s400] sm:$0x1] %vm328, %v398
          %402 = vrot.lane.b32.xlu0 %v336, 16
          %v403 = vpop.permute.xlu0 %402
          %s405 = scalar_lea.vmem [#allocation4], 10
          %406 = vst.msk [vmem:[%s405] sm:$0x1] %vm328, %v403
          %407 = vrot.lane.b32.xlu0 %v346, 16
          %v408 = vpop.permute.xlu0 %407
          %s410 = scalar_lea.vmem [#allocation5], 10
          %411 = vst.msk [vmem:[%s410] sm:$0x1] %vm328, %v408
          %v412 = vrot.slane %v325, 1
          %s414 = scalar_lea.vmem [#allocation4], 11
          %415 = vst.msk [vmem:[%s414] sm:$0x1] %vm328, %v412
          %v416 = vrot.slane %v326, 1
          %s418 = scalar_lea.vmem [#allocation5], 11
          %419 = vst.msk [vmem:[%s418] sm:$0x1] %vm328, %v416
          %420 = vrot.lane.b32.xlu0 %v325, 112
          %v421 = vpop.permute.xlu0 %420
          %v422 = vrot.slane %v421, 1
          %s424 = scalar_lea.vmem [#allocation4], 12
          %425 = vst.msk [vmem:[%s424] sm:$0x1] %vm328, %v422
          %426 = vrot.lane.b32.xlu0 %v326, 112
          %v427 = vpop.permute.xlu0 %426
          %v428 = vrot.slane %v427, 1
          %s430 = scalar_lea.vmem [#allocation5], 12
          %431 = vst.msk [vmem:[%s430] sm:$0x1] %vm328, %v428
          %432 = vrot.lane.b32.xlu0 %v325, 96
          %v433 = vpop.permute.xlu0 %432
          %v434 = vrot.slane %v433, 1
          %s436 = scalar_lea.vmem [#allocation4], 13
          %437 = vst.msk [vmem:[%s436] sm:$0x1] %vm328, %v434
          %438 = vrot.lane.b32.xlu0 %v326, 96
          %v439 = vpop.permute.xlu0 %438
          %v440 = vrot.slane %v439, 1
          %s442 = scalar_lea.vmem [#allocation5], 13
          %443 = vst.msk [vmem:[%s442] sm:$0x1] %vm328, %v440
          %444 = vrot.lane.b32.xlu0 %v325, 80
          %v445 = vpop.permute.xlu0 %444
          %v446 = vrot.slane %v445, 1
          %s448 = scalar_lea.vmem [#allocation4], 14
          %449 = vst.msk [vmem:[%s448] sm:$0x1] %vm328, %v446
          %450 = vrot.lane.b32.xlu0 %v326, 80
          %v451 = vpop.permute.xlu0 %450
          %v452 = vrot.slane %v451, 1
          %s454 = scalar_lea.vmem [#allocation5], 14
          %455 = vst.msk [vmem:[%s454] sm:$0x1] %vm328, %v452
          %456 = vrot.lane.b32.xlu0 %v325, 64
          %v457 = vpop.permute.xlu0 %456
          %v458 = vrot.slane %v457, 1
          %s460 = scalar_lea.vmem [#allocation4], 15
          %461 = vst.msk [vmem:[%s460] sm:$0x1] %vm328, %v458
          %462 = vrot.lane.b32.xlu0 %v326, 64
          %v463 = vpop.permute.xlu0 %462
          %v464 = vrot.slane %v463, 1
          %s466 = scalar_lea.vmem [#allocation5], 15
          %467 = vst.msk [vmem:[%s466] sm:$0x1] %vm328, %v464
          %468 = vrot.lane.b32.xlu0 %v325, 48
          %v469 = vpop.permute.xlu0 %468
          %v470 = vrot.slane %v469, 1
          %s472 = scalar_lea.vmem [#allocation4], 16
          %473 = vst.msk [vmem:[%s472] sm:$0x1] %vm328, %v470
          %474 = vrot.lane.b32.xlu0 %v326, 48
          %v475 = vpop.permute.xlu0 %474
          %v476 = vrot.slane %v475, 1
          %s478 = scalar_lea.vmem [#allocation5], 16
          %479 = vst.msk [vmem:[%s478] sm:$0x1] %vm328, %v476
          %480 = vrot.lane.b32.xlu0 %v325, 32
          %v481 = vpop.permute.xlu0 %480
          %v482 = vrot.slane %v481, 1
          %s484 = scalar_lea.vmem [#allocation4], 17
          %485 = vst.msk [vmem:[%s484] sm:$0x1] %vm328, %v482
          %486 = vrot.lane.b32.xlu0 %v326, 32
          %v487 = vpop.permute.xlu0 %486
          %v488 = vrot.slane %v487, 1
          %s490 = scalar_lea.vmem [#allocation5], 17
          %491 = vst.msk [vmem:[%s490] sm:$0x1] %vm328, %v488
          %492 = vrot.lane.b32.xlu0 %v325, 16
          %v493 = vpop.permute.xlu0 %492
          %v494 = vrot.slane %v493, 1
          %s496 = scalar_lea.vmem [#allocation4], 18
          %497 = vst.msk [vmem:[%s496] sm:$0x1] %vm328, %v494
          %498 = vrot.lane.b32.xlu0 %v326, 16
          %v499 = vpop.permute.xlu0 %498
          %v500 = vrot.slane %v499, 1
          %s502 = scalar_lea.vmem [#allocation5], 18
          %503 = vst.msk [vmem:[%s502] sm:$0x1] %vm328, %v500
          %s504 = sld [smem:[#allocation6]]
          %s505 = sld [smem:[#allocation6 + $0x1]]
          %s506 = sld [smem:[#allocation6 + $0x2]]
          %s507 = sld [smem:[#allocation6 + $0x3]]
          %s508 = sld [smem:[#allocation6 + $0x4]]
          %s509 = sld [smem:[#allocation6 + $0x5]]
          %s510 = sld [smem:[#allocation6 + $0x6]]
          %s511 = sld [smem:[#allocation6 + $0x7]]
          %s512 = sld [smem:[#allocation6 + $0x8]]
          %s513 = sld [smem:[#allocation6 + $0x9]]
          %s514 = sld [smem:[#allocation6 + $0xa]]
          %s515 = sld [smem:[#allocation6 + $0xb]]
          %s516 = sld [smem:[#allocation6 + $0xc]]
          %s517 = sld [smem:[#allocation6 + $0xd]]
          %s518 = sld [smem:[#allocation6 + $0xe]]
          %s519 = sld [smem:[#allocation6 + $0xf]]
          %s520 = sld [smem:[#allocation6 + $0x10]]
          %s521 = sld [smem:[#allocation6 + $0x11]]
          %s522 = sld [smem:[#allocation6 + $0x12]]
          %s523 = sld [smem:[#allocation6 + $0x13]]
          %s524 = sld [smem:[#allocation6 + $0x14]]
          %s525 = sld [smem:[#allocation6 + $0x15]]
          %s526 = sld [smem:[#allocation6 + $0x16]]
          %s527 = sld [smem:[#allocation6 + $0x17]]
          %s528 = sld [smem:[#allocation6 + $0x18]]
          %s529 = sld [smem:[#allocation6 + $0x19]]
          %s530 = sld [smem:[#allocation6 + $0x1a]]
          %s531 = sld [smem:[#allocation6 + $0x1b]]
          %s532 = sld [smem:[#allocation6 + $0x1c]]
          %s533 = sld [smem:[#allocation6 + $0x1d]]
          %s534 = sld [smem:[#allocation6 + $0x1e]]
          %s535 = sld [smem:[#allocation6 + $0x1f]]
          %s536 = sld [smem:[#allocation6 + $0x20]]
          %s537 = sld [smem:[#allocation6 + $0x21]]
          %s538 = sld [smem:[#allocation6 + $0x22]]
          %s539 = sld [smem:[#allocation6 + $0x23]]
          %s540 = sld [smem:[#allocation6 + $0x24]]
          %s541 = sld [smem:[#allocation6 + $0x25]]
          %s542 = sld [smem:[#allocation6 + $0x26]]
          %s543 = sld [smem:[#allocation6 + $0x27]]
          %s544 = sld [smem:[#allocation6 + $0x28]]
          %s545 = sld [smem:[#allocation6 + $0x29]]
          %s546 = sld [smem:[#allocation6 + $0x2a]]
          %s547 = sld [smem:[#allocation6 + $0x2b]]
          %s548 = sld [smem:[#allocation6 + $0x2c]]
          %s549 = sld [smem:[#allocation6 + $0x2d]]
          %s550 = sld [smem:[#allocation6 + $0x2e]]
          %s551 = sld [smem:[#allocation6 + $0x2f]]
          %s552 = sld [smem:[#allocation6 + $0x30]]
          %s553 = sld [smem:[#allocation6 + $0x31]]
          %s554 = sld [smem:[#allocation6 + $0x32]]
          %s555 = sld [smem:[#allocation6 + $0x33]]
          %s556 = sld [smem:[#allocation6 + $0x34]]
          %s557 = sld [smem:[#allocation6 + $0x35]]
          %s558 = sld [smem:[#allocation6 + $0x36]]
          %s559 = sld [smem:[#allocation6 + $0x37]]
          %s560 = sld [smem:[#allocation6 + $0x38]]
          %s561 = sld [smem:[#allocation6 + $0x39]]
          %s562 = sld [smem:[#allocation6 + $0x3a]]
          %s563 = sld [smem:[#allocation6 + $0x3b]]
          %s564 = sld [smem:[#allocation6 + $0x3c]]
          %s565 = sld [smem:[#allocation6 + $0x3d]]
          %s566 = sld [smem:[#allocation6 + $0x3e]]
          %s567 = sld [smem:[#allocation6 + $0x3f]]
          %s568 = sld [smem:[#allocation6 + $0x40]]
          %s569 = sld [smem:[#allocation6 + $0x41]]
          %s570 = sld [smem:[#allocation6 + $0x42]]
          %s571 = sld [smem:[#allocation6 + $0x43]]
          %s572 = sld [smem:[#allocation6 + $0x44]]
          %s573 = sld [smem:[#allocation6 + $0x45]]
          %s574 = sld [smem:[#allocation6 + $0x46]]
          %s575 = sld [smem:[#allocation6 + $0x47]]
          %s576 = sld [smem:[#allocation6 + $0x48]]
          %s577 = sld [smem:[#allocation6 + $0x49]]
          %s578 = sld [smem:[#allocation6 + $0x4a]]
          %s579 = sld [smem:[#allocation6 + $0x4b]]
          %s580 = sld [smem:[#allocation6 + $0x4c]]
          %s581 = sld [smem:[#allocation6 + $0x4d]]
          %s582 = sld [smem:[#allocation6 + $0x4e]]
          %s583 = sld [smem:[#allocation6 + $0x4f]]
          %s584 = sld [smem:[#allocation6 + $0x50]]
          %s585 = sld [smem:[#allocation6 + $0x51]]
          %s586 = sld [smem:[#allocation6 + $0x52]]
          %s587 = sld [smem:[#allocation6 + $0x53]]
          %s588 = sld [smem:[#allocation6 + $0x54]]
          %s589 = sld [smem:[#allocation6 + $0x55]]
          %s590 = sld [smem:[#allocation6 + $0x56]]
          %s591 = sld [smem:[#allocation6 + $0x57]]
          %s592 = sld [smem:[#allocation6 + $0x58]]
          %s593 = sld [smem:[#allocation6 + $0x59]]
          %s594 = sld [smem:[#allocation6 + $0x5a]]
          %s595 = sld [smem:[#allocation6 + $0x5b]]
          %s596 = sld [smem:[#allocation6 + $0x5c]]
          %s597 = sld [smem:[#allocation6 + $0x5d]]
          %s598 = sld [smem:[#allocation6 + $0x5e]]
          %s599 = sld [smem:[#allocation6 + $0x5f]]
          %s600 = sld [smem:[#allocation6 + $0x60]]
          %s601 = sld [smem:[#allocation6 + $0x61]]
          %v602 = vld [vmem:[#allocation4] sm:$0x1]
          %v603 = vld [vmem:[#allocation4 + $0x1] sm:$0x1]
          %v604 = vld [vmem:[#allocation4 + $0x2] sm:$0x1]
          %v605 = vld [vmem:[#allocation4 + $0x3] sm:$0x1]
          %v606 = vld [vmem:[#allocation4 + $0x4] sm:$0x1]
          %v607 = vld [vmem:[#allocation4 + $0x5] sm:$0x1]
          %v608 = vld [vmem:[#allocation4 + $0x6] sm:$0x1]
          %v609 = vld [vmem:[#allocation4 + $0x7] sm:$0x1]
          %v610 = vld [vmem:[#allocation4 + $0x8] sm:$0x1]
          %v611 = vld [vmem:[#allocation4 + $0x9] sm:$0x1]
          %v612 = vld [vmem:[#allocation4 + $0xa] sm:$0x1]
          %v613 = vld [vmem:[#allocation4 + $0xb] sm:$0x1]
          %v614 = vld [vmem:[#allocation4 + $0xc] sm:$0x1]
          %v615 = vld [vmem:[#allocation4 + $0xd] sm:$0x1]
          %v616 = vld [vmem:[#allocation4 + $0xe] sm:$0x1]
          %v617 = vld [vmem:[#allocation4 + $0xf] sm:$0x1]
          %v618 = vld [vmem:[#allocation4 + $0x10] sm:$0x1]
          %v619 = vld [vmem:[#allocation4 + $0x11] sm:$0x1]
          %v620 = vld [vmem:[#allocation4 + $0x12] sm:$0x1]
          %v621 = vld [vmem:[#allocation4 + $0x13] sm:$0x1]
          %v622 = vld [vmem:[#allocation4 + $0x14] sm:$0x1]
          %v623 = vld [vmem:[#allocation4 + $0x15] sm:$0x1]
          %624 = vrot.lane.b32.xlu0 %v602, 3
          %v625 = vpop.permute.xlu0 %624
          %626 = vrot.lane.b32.xlu0 %v603, 3
          %v627 = vpop.permute.xlu0 %626
          %628 = vrot.lane.b32.xlu0 %v604, 3
          %v629 = vpop.permute.xlu0 %628
          %630 = vrot.lane.b32.xlu0 %v605, 3
          %v631 = vpop.permute.xlu0 %630
          %632 = vrot.lane.b32.xlu0 %v606, 3
          %v633 = vpop.permute.xlu0 %632
          %634 = vrot.lane.b32.xlu0 %v607, 3
          %v635 = vpop.permute.xlu0 %634
          %636 = vrot.lane.b32.xlu0 %v608, 3
          %v637 = vpop.permute.xlu0 %636
          %638 = vrot.lane.b32.xlu0 %v609, 3
          %v639 = vpop.permute.xlu0 %638
          %640 = vrot.lane.b32.xlu0 %v610, 3
          %v641 = vpop.permute.xlu0 %640
          %642 = vrot.lane.b32.xlu0 %v611, 3
          %v643 = vpop.permute.xlu0 %642
          %644 = vrot.lane.b32.xlu0 %v612, 3
          %v645 = vpop.permute.xlu0 %644
          %646 = vrot.lane.b32.xlu0 %v613, 3
          %v647 = vpop.permute.xlu0 %646
          %648 = vrot.lane.b32.xlu0 %v614, 3
          %v649 = vpop.permute.xlu0 %648
          %650 = vrot.lane.b32.xlu0 %v615, 3
          %v651 = vpop.permute.xlu0 %650
          %652 = vrot.lane.b32.xlu0 %v616, 3
          %v653 = vpop.permute.xlu0 %652
          %654 = vrot.lane.b32.xlu0 %v617, 3
          %v655 = vpop.permute.xlu0 %654
          %v656 = vstv %s504
          %v657 = vmul.f32 %v656, %v625
          %v658 = vmul.f32 %v656, %v627
          %v659 = vmul.f32 %v656, %v629
          %v660 = vmul.f32 %v656, %v631
          %v661 = vmul.f32 %v656, %v633
          %v662 = vmul.f32 %v656, %v635
          %v663 = vmul.f32 %v656, %v637
          %v664 = vmul.f32 %v656, %v639
          %v665 = vmul.f32 %v656, %v641
          %v666 = vmul.f32 %v656, %v643
          %v667 = vmul.f32 %v656, %v645
          %v668 = vmul.f32 %v656, %v647
          %v669 = vmul.f32 %v656, %v649
          %v670 = vmul.f32 %v656, %v651
          %v671 = vmul.f32 %v656, %v653
          %v672 = vmul.f32 %v656, %v655
          %673 = vrot.lane.b32.xlu0 %v602, 2
          %v674 = vpop.permute.xlu0 %673
          %675 = vrot.lane.b32.xlu0 %v603, 2
          %v676 = vpop.permute.xlu0 %675
          %677 = vrot.lane.b32.xlu0 %v604, 2
          %v678 = vpop.permute.xlu0 %677
          %679 = vrot.lane.b32.xlu0 %v605, 2
          %v680 = vpop.permute.xlu0 %679
          %681 = vrot.lane.b32.xlu0 %v606, 2
          %v682 = vpop.permute.xlu0 %681
          %683 = vrot.lane.b32.xlu0 %v607, 2
          %v684 = vpop.permute.xlu0 %683
          %685 = vrot.lane.b32.xlu0 %v608, 2
          %v686 = vpop.permute.xlu0 %685
          %687 = vrot.lane.b32.xlu0 %v609, 2
          %v688 = vpop.permute.xlu0 %687
          %689 = vrot.lane.b32.xlu0 %v610, 2
          %v690 = vpop.permute.xlu0 %689
          %691 = vrot.lane.b32.xlu0 %v611, 2
          %v692 = vpop.permute.xlu0 %691
          %693 = vrot.lane.b32.xlu0 %v612, 2
          %v694 = vpop.permute.xlu0 %693
          %695 = vrot.lane.b32.xlu0 %v613, 2
          %v696 = vpop.permute.xlu0 %695
          %697 = vrot.lane.b32.xlu0 %v614, 2
          %v698 = vpop.permute.xlu0 %697
          %699 = vrot.lane.b32.xlu0 %v615, 2
          %v700 = vpop.permute.xlu0 %699
          %701 = vrot.lane.b32.xlu0 %v616, 2
          %v702 = vpop.permute.xlu0 %701
          %703 = vrot.lane.b32.xlu0 %v617, 2
          %v704 = vpop.permute.xlu0 %703
          %v705 = vstv %s505
          %v706 = vmul.f32 %v705, %v674
          %v707 = vmul.f32 %v705, %v676
          %v708 = vmul.f32 %v705, %v678
          %v709 = vmul.f32 %v705, %v680
          %v710 = vmul.f32 %v705, %v682
          %v711 = vmul.f32 %v705, %v684
          %v712 = vmul.f32 %v705, %v686
          %v713 = vmul.f32 %v705, %v688
          %v714 = vmul.f32 %v705, %v690
          %v715 = vmul.f32 %v705, %v692
          %v716 = vmul.f32 %v705, %v694
          %v717 = vmul.f32 %v705, %v696
          %v718 = vmul.f32 %v705, %v698
          %v719 = vmul.f32 %v705, %v700
          %v720 = vmul.f32 %v705, %v702
          %v721 = vmul.f32 %v705, %v704
          %v722 = vadd.f32 %v657, %v706
          %v723 = vadd.f32 %v658, %v707
          %v724 = vadd.f32 %v659, %v708
          %v725 = vadd.f32 %v660, %v709
          %v726 = vadd.f32 %v661, %v710
          %v727 = vadd.f32 %v662, %v711
          %v728 = vadd.f32 %v663, %v712
          %v729 = vadd.f32 %v664, %v713
          %v730 = vadd.f32 %v665, %v714
          %v731 = vadd.f32 %v666, %v715
          %v732 = vadd.f32 %v667, %v716
          %v733 = vadd.f32 %v668, %v717
          %v734 = vadd.f32 %v669, %v718
          %v735 = vadd.f32 %v670, %v719
          %v736 = vadd.f32 %v671, %v720
          %v737 = vadd.f32 %v672, %v721
          %738 = vrot.lane.b32.xlu0 %v602, 1
          %v739 = vpop.permute.xlu0 %738
          %740 = vrot.lane.b32.xlu0 %v603, 1
          %v741 = vpop.permute.xlu0 %740
          %742 = vrot.lane.b32.xlu0 %v604, 1
          %v743 = vpop.permute.xlu0 %742
          %744 = vrot.lane.b32.xlu0 %v605, 1
          %v745 = vpop.permute.xlu0 %744
          %746 = vrot.lane.b32.xlu0 %v606, 1
          %v747 = vpop.permute.xlu0 %746
          %748 = vrot.lane.b32.xlu0 %v607, 1
          %v749 = vpop.permute.xlu0 %748
          %750 = vrot.lane.b32.xlu0 %v608, 1
          %v751 = vpop.permute.xlu0 %750
          %752 = vrot.lane.b32.xlu0 %v609, 1
          %v753 = vpop.permute.xlu0 %752
          %754 = vrot.lane.b32.xlu0 %v610, 1
          %v755 = vpop.permute.xlu0 %754
          %756 = vrot.lane.b32.xlu0 %v611, 1
          %v757 = vpop.permute.xlu0 %756
          %758 = vrot.lane.b32.xlu0 %v612, 1
          %v759 = vpop.permute.xlu0 %758
          %760 = vrot.lane.b32.xlu0 %v613, 1
          %v761 = vpop.permute.xlu0 %760
          %762 = vrot.lane.b32.xlu0 %v614, 1
          %v763 = vpop.permute.xlu0 %762
          %764 = vrot.lane.b32.xlu0 %v615, 1
          %v765 = vpop.permute.xlu0 %764
          %766 = vrot.lane.b32.xlu0 %v616, 1
          %v767 = vpop.permute.xlu0 %766
          %768 = vrot.lane.b32.xlu0 %v617, 1
          %v769 = vpop.permute.xlu0 %768
          %v770 = vstv %s506
          %v771 = vmul.f32 %v770, %v739
          %v772 = vmul.f32 %v770, %v741
          %v773 = vmul.f32 %v770, %v743
          %v774 = vmul.f32 %v770, %v745
          %v775 = vmul.f32 %v770, %v747
          %v776 = vmul.f32 %v770, %v749
          %v777 = vmul.f32 %v770, %v751
          %v778 = vmul.f32 %v770, %v753
          %v779 = vmul.f32 %v770, %v755
          %v780 = vmul.f32 %v770, %v757
          %v781 = vmul.f32 %v770, %v759
          %v782 = vmul.f32 %v770, %v761
          %v783 = vmul.f32 %v770, %v763
          %v784 = vmul.f32 %v770, %v765
          %v785 = vmul.f32 %v770, %v767
          %v786 = vmul.f32 %v770, %v769
          %v787 = vadd.f32 %v722, %v771
          %v788 = vadd.f32 %v723, %v772
          %v789 = vadd.f32 %v724, %v773
          %v790 = vadd.f32 %v725, %v774
          %v791 = vadd.f32 %v726, %v775
          %v792 = vadd.f32 %v727, %v776
          %v793 = vadd.f32 %v728, %v777
          %v794 = vadd.f32 %v729, %v778
          %v795 = vadd.f32 %v730, %v779
          %v796 = vadd.f32 %v731, %v780
          %v797 = vadd.f32 %v732, %v781
          %v798 = vadd.f32 %v733, %v782
          %v799 = vadd.f32 %v734, %v783
          %v800 = vadd.f32 %v735, %v784
          %v801 = vadd.f32 %v736, %v785
          %v802 = vadd.f32 %v737, %v786
          %v803 = vstv %s507
          %v804 = vmul.f32 %v803, %v602
          %v805 = vmul.f32 %v803, %v603
          %v806 = vmul.f32 %v803, %v604
          %v807 = vmul.f32 %v803, %v605
          %v808 = vmul.f32 %v803, %v606
          %v809 = vmul.f32 %v803, %v607
          %v810 = vmul.f32 %v803, %v608
          %v811 = vmul.f32 %v803, %v609
          %v812 = vmul.f32 %v803, %v610
          %v813 = vmul.f32 %v803, %v611
          %v814 = vmul.f32 %v803, %v612
          %v815 = vmul.f32 %v803, %v613
          %v816 = vmul.f32 %v803, %v614
          %v817 = vmul.f32 %v803, %v615
          %v818 = vmul.f32 %v803, %v616
          %v819 = vmul.f32 %v803, %v617
          %v820 = vadd.f32 %v787, %v804
          %v821 = vadd.f32 %v788, %v805
          %v822 = vadd.f32 %v789, %v806
          %v823 = vadd.f32 %v790, %v807
          %v824 = vadd.f32 %v791, %v808
          %v825 = vadd.f32 %v792, %v809
          %v826 = vadd.f32 %v793, %v810
          %v827 = vadd.f32 %v794, %v811
          %v828 = vadd.f32 %v795, %v812
          %v829 = vadd.f32 %v796, %v813
          %v830 = vadd.f32 %v797, %v814
          %v831 = vadd.f32 %v798, %v815
          %v832 = vadd.f32 %v799, %v816
          %v833 = vadd.f32 %v800, %v817
          %v834 = vadd.f32 %v801, %v818
          %v835 = vadd.f32 %v802, %v819
          %836 = vrot.lane.b32.xlu0 %v602, 127
          %v837 = vpop.permute.xlu0 %836
          %838 = vrot.lane.b32.xlu0 %v603, 127
          %v839 = vpop.permute.xlu0 %838
          %840 = vrot.lane.b32.xlu0 %v604, 127
          %v841 = vpop.permute.xlu0 %840
          %842 = vrot.lane.b32.xlu0 %v605, 127
          %v843 = vpop.permute.xlu0 %842
          %844 = vrot.lane.b32.xlu0 %v606, 127
          %v845 = vpop.permute.xlu0 %844
          %846 = vrot.lane.b32.xlu0 %v607, 127
          %v847 = vpop.permute.xlu0 %846
          %848 = vrot.lane.b32.xlu0 %v608, 127
          %v849 = vpop.permute.xlu0 %848
          %850 = vrot.lane.b32.xlu0 %v609, 127
          %v851 = vpop.permute.xlu0 %850
          %852 = vrot.lane.b32.xlu0 %v610, 127
          %v853 = vpop.permute.xlu0 %852
          %854 = vrot.lane.b32.xlu0 %v611, 127
          %v855 = vpop.permute.xlu0 %854
          %856 = vrot.lane.b32.xlu0 %v612, 127
          %v857 = vpop.permute.xlu0 %856
          %858 = vrot.lane.b32.xlu0 %v613, 127
          %v859 = vpop.permute.xlu0 %858
          %860 = vrot.lane.b32.xlu0 %v614, 127
          %v861 = vpop.permute.xlu0 %860
          %862 = vrot.lane.b32.xlu0 %v615, 127
          %v863 = vpop.permute.xlu0 %862
          %864 = vrot.lane.b32.xlu0 %v616, 127
          %v865 = vpop.permute.xlu0 %864
          %866 = vrot.lane.b32.xlu0 %v617, 127
          %v867 = vpop.permute.xlu0 %866
          %v868 = vstv %s508
          %v869 = vmul.f32 %v868, %v837
          %v870 = vmul.f32 %v868, %v839
          %v871 = vmul.f32 %v868, %v841
          %v872 = vmul.f32 %v868, %v843
          %v873 = vmul.f32 %v868, %v845
          %v874 = vmul.f32 %v868, %v847
          %v875 = vmul.f32 %v868, %v849
          %v876 = vmul.f32 %v868, %v851
          %v877 = vmul.f32 %v868, %v853
          %v878 = vmul.f32 %v868, %v855
          %v879 = vmul.f32 %v868, %v857
          %v880 = vmul.f32 %v868, %v859
          %v881 = vmul.f32 %v868, %v861
          %v882 = vmul.f32 %v868, %v863
          %v883 = vmul.f32 %v868, %v865
          %v884 = vmul.f32 %v868, %v867
          %v885 = vadd.f32 %v820, %v869
          %v886 = vadd.f32 %v821, %v870
          %v887 = vadd.f32 %v822, %v871
          %v888 = vadd.f32 %v823, %v872
          %v889 = vadd.f32 %v824, %v873
          %v890 = vadd.f32 %v825, %v874
          %v891 = vadd.f32 %v826, %v875
          %v892 = vadd.f32 %v827, %v876
          %v893 = vadd.f32 %v828, %v877
          %v894 = vadd.f32 %v829, %v878
          %v895 = vadd.f32 %v830, %v879
          %v896 = vadd.f32 %v831, %v880
          %v897 = vadd.f32 %v832, %v881
          %v898 = vadd.f32 %v833, %v882
          %v899 = vadd.f32 %v834, %v883
          %v900 = vadd.f32 %v835, %v884
          %901 = vrot.lane.b32.xlu0 %v602, 126
          %v902 = vpop.permute.xlu0 %901
          %903 = vrot.lane.b32.xlu0 %v603, 126
          %v904 = vpop.permute.xlu0 %903
          %905 = vrot.lane.b32.xlu0 %v604, 126
          %v906 = vpop.permute.xlu0 %905
          %907 = vrot.lane.b32.xlu0 %v605, 126
          %v908 = vpop.permute.xlu0 %907
          %909 = vrot.lane.b32.xlu0 %v606, 126
          %v910 = vpop.permute.xlu0 %909
          %911 = vrot.lane.b32.xlu0 %v607, 126
          %v912 = vpop.permute.xlu0 %911
          %913 = vrot.lane.b32.xlu0 %v608, 126
          %v914 = vpop.permute.xlu0 %913
          %915 = vrot.lane.b32.xlu0 %v609, 126
          %v916 = vpop.permute.xlu0 %915
          %917 = vrot.lane.b32.xlu0 %v610, 126
          %v918 = vpop.permute.xlu0 %917
          %919 = vrot.lane.b32.xlu0 %v611, 126
          %v920 = vpop.permute.xlu0 %919
          %921 = vrot.lane.b32.xlu0 %v612, 126
          %v922 = vpop.permute.xlu0 %921
          %923 = vrot.lane.b32.xlu0 %v613, 126
          %v924 = vpop.permute.xlu0 %923
          %925 = vrot.lane.b32.xlu0 %v614, 126
          %v926 = vpop.permute.xlu0 %925
          %927 = vrot.lane.b32.xlu0 %v615, 126
          %v928 = vpop.permute.xlu0 %927
          %929 = vrot.lane.b32.xlu0 %v616, 126
          %v930 = vpop.permute.xlu0 %929
          %931 = vrot.lane.b32.xlu0 %v617, 126
          %v932 = vpop.permute.xlu0 %931
          %v933 = vstv %s509
          %v934 = vmul.f32 %v933, %v902
          %v935 = vmul.f32 %v933, %v904
          %v936 = vmul.f32 %v933, %v906
          %v937 = vmul.f32 %v933, %v908
          %v938 = vmul.f32 %v933, %v910
          %v939 = vmul.f32 %v933, %v912
          %v940 = vmul.f32 %v933, %v914
          %v941 = vmul.f32 %v933, %v916
          %v942 = vmul.f32 %v933, %v918
          %v943 = vmul.f32 %v933, %v920
          %v944 = vmul.f32 %v933, %v922
          %v945 = vmul.f32 %v933, %v924
          %v946 = vmul.f32 %v933, %v926
          %v947 = vmul.f32 %v933, %v928
          %v948 = vmul.f32 %v933, %v930
          %v949 = vmul.f32 %v933, %v932
          %v950 = vadd.f32 %v885, %v934
          %v951 = vadd.f32 %v886, %v935
          %v952 = vadd.f32 %v887, %v936
          %v953 = vadd.f32 %v888, %v937
          %v954 = vadd.f32 %v889, %v938
          %v955 = vadd.f32 %v890, %v939
          %v956 = vadd.f32 %v891, %v940
          %v957 = vadd.f32 %v892, %v941
          %v958 = vadd.f32 %v893, %v942
          %v959 = vadd.f32 %v894, %v943
          %v960 = vadd.f32 %v895, %v944
          %v961 = vadd.f32 %v896, %v945
          %v962 = vadd.f32 %v897, %v946
          %v963 = vadd.f32 %v898, %v947
          %v964 = vadd.f32 %v899, %v948
          %v965 = vadd.f32 %v900, %v949
          %966 = vrot.lane.b32.xlu0 %v602, 125
          %v967 = vpop.permute.xlu0 %966
          %968 = vrot.lane.b32.xlu0 %v603, 125
          %v969 = vpop.permute.xlu0 %968
          %970 = vrot.lane.b32.xlu0 %v604, 125
          %v971 = vpop.permute.xlu0 %970
          %972 = vrot.lane.b32.xlu0 %v605, 125
          %v973 = vpop.permute.xlu0 %972
          %974 = vrot.lane.b32.xlu0 %v606, 125
          %v975 = vpop.permute.xlu0 %974
          %976 = vrot.lane.b32.xlu0 %v607, 125
          %v977 = vpop.permute.xlu0 %976
          %978 = vrot.lane.b32.xlu0 %v608, 125
          %v979 = vpop.permute.xlu0 %978
          %980 = vrot.lane.b32.xlu0 %v609, 125
          %v981 = vpop.permute.xlu0 %980
          %982 = vrot.lane.b32.xlu0 %v610, 125
          %v983 = vpop.permute.xlu0 %982
          %984 = vrot.lane.b32.xlu0 %v611, 125
          %v985 = vpop.permute.xlu0 %984
          %986 = vrot.lane.b32.xlu0 %v612, 125
          %v987 = vpop.permute.xlu0 %986
          %988 = vrot.lane.b32.xlu0 %v613, 125
          %v989 = vpop.permute.xlu0 %988
          %990 = vrot.lane.b32.xlu0 %v614, 125
          %v991 = vpop.permute.xlu0 %990
          %992 = vrot.lane.b32.xlu0 %v615, 125
          %v993 = vpop.permute.xlu0 %992
          %994 = vrot.lane.b32.xlu0 %v616, 125
          %v995 = vpop.permute.xlu0 %994
          %996 = vrot.lane.b32.xlu0 %v617, 125
          %v997 = vpop.permute.xlu0 %996
          %v998 = vstv %s510
          %v999 = vmul.f32 %v998, %v967
          %v1000 = vmul.f32 %v998, %v969
          %v1001 = vmul.f32 %v998, %v971
          %v1002 = vmul.f32 %v998, %v973
          %v1003 = vmul.f32 %v998, %v975
          %v1004 = vmul.f32 %v998, %v977
          %v1005 = vmul.f32 %v998, %v979
          %v1006 = vmul.f32 %v998, %v981
          %v1007 = vmul.f32 %v998, %v983
          %v1008 = vmul.f32 %v998, %v985
          %v1009 = vmul.f32 %v998, %v987
          %v1010 = vmul.f32 %v998, %v989
          %v1011 = vmul.f32 %v998, %v991
          %v1012 = vmul.f32 %v998, %v993
          %v1013 = vmul.f32 %v998, %v995
          %v1014 = vmul.f32 %v998, %v997
          %v1015 = vadd.f32 %v950, %v999
          %v1016 = vadd.f32 %v951, %v1000
          %v1017 = vadd.f32 %v952, %v1001
          %v1018 = vadd.f32 %v953, %v1002
          %v1019 = vadd.f32 %v954, %v1003
          %v1020 = vadd.f32 %v955, %v1004
          %v1021 = vadd.f32 %v956, %v1005
          %v1022 = vadd.f32 %v957, %v1006
          %v1023 = vadd.f32 %v958, %v1007
          %v1024 = vadd.f32 %v959, %v1008
          %v1025 = vadd.f32 %v960, %v1009
          %v1026 = vadd.f32 %v961, %v1010
          %v1027 = vadd.f32 %v962, %v1011
          %v1028 = vadd.f32 %v963, %v1012
          %v1029 = vadd.f32 %v964, %v1013
          %v1030 = vadd.f32 %v965, %v1014
          %1031 = vrot.lane.b32.xlu0 %v618, 3
          %v1032 = vpop.permute.xlu0 %1031
          %v1033 = vstv %s511
          %v1034 = vmul.f32 %v1033, %v627
          %v1035 = vmul.f32 %v1033, %v629
          %v1036 = vmul.f32 %v1033, %v631
          %v1037 = vmul.f32 %v1033, %v633
          %v1038 = vmul.f32 %v1033, %v635
          %v1039 = vmul.f32 %v1033, %v637
          %v1040 = vmul.f32 %v1033, %v639
          %v1041 = vmul.f32 %v1033, %v641
          %v1042 = vmul.f32 %v1033, %v643
          %v1043 = vmul.f32 %v1033, %v645
          %v1044 = vmul.f32 %v1033, %v647
          %v1045 = vmul.f32 %v1033, %v649
          %v1046 = vmul.f32 %v1033, %v651
          %v1047 = vmul.f32 %v1033, %v653
          %v1048 = vmul.f32 %v1033, %v655
          %v1049 = vmul.f32 %v1033, %v1032
          %1050 = vrot.lane.b32.xlu0 %v618, 2
          %v1051 = vpop.permute.xlu0 %1050
          %v1052 = vstv %s512
          %v1053 = vmul.f32 %v1052, %v676
          %v1054 = vmul.f32 %v1052, %v678
          %v1055 = vmul.f32 %v1052, %v680
          %v1056 = vmul.f32 %v1052, %v682
          %v1057 = vmul.f32 %v1052, %v684
          %v1058 = vmul.f32 %v1052, %v686
          %v1059 = vmul.f32 %v1052, %v688
          %v1060 = vmul.f32 %v1052, %v690
          %v1061 = vmul.f32 %v1052, %v692
          %v1062 = vmul.f32 %v1052, %v694
          %v1063 = vmul.f32 %v1052, %v696
          %v1064 = vmul.f32 %v1052, %v698
          %v1065 = vmul.f32 %v1052, %v700
          %v1066 = vmul.f32 %v1052, %v702
          %v1067 = vmul.f32 %v1052, %v704
          %v1068 = vmul.f32 %v1052, %v1051
          %v1069 = vadd.f32 %v1034, %v1053
          %v1070 = vadd.f32 %v1035, %v1054
          %v1071 = vadd.f32 %v1036, %v1055
          %v1072 = vadd.f32 %v1037, %v1056
          %v1073 = vadd.f32 %v1038, %v1057
          %v1074 = vadd.f32 %v1039, %v1058
          %v1075 = vadd.f32 %v1040, %v1059
          %v1076 = vadd.f32 %v1041, %v1060
          %v1077 = vadd.f32 %v1042, %v1061
          %v1078 = vadd.f32 %v1043, %v1062
          %v1079 = vadd.f32 %v1044, %v1063
          %v1080 = vadd.f32 %v1045, %v1064
          %v1081 = vadd.f32 %v1046, %v1065
          %v1082 = vadd.f32 %v1047, %v1066
          %v1083 = vadd.f32 %v1048, %v1067
          %v1084 = vadd.f32 %v1049, %v1068
          %1085 = vrot.lane.b32.xlu0 %v618, 1
          %v1086 = vpop.permute.xlu0 %1085
          %v1087 = vstv %s513
          %v1088 = vmul.f32 %v1087, %v741
          %v1089 = vmul.f32 %v1087, %v743
          %v1090 = vmul.f32 %v1087, %v745
          %v1091 = vmul.f32 %v1087, %v747
          %v1092 = vmul.f32 %v1087, %v749
          %v1093 = vmul.f32 %v1087, %v751
          %v1094 = vmul.f32 %v1087, %v753
          %v1095 = vmul.f32 %v1087, %v755
          %v1096 = vmul.f32 %v1087, %v757
          %v1097 = vmul.f32 %v1087, %v759
          %v1098 = vmul.f32 %v1087, %v761
          %v1099 = vmul.f32 %v1087, %v763
          %v1100 = vmul.f32 %v1087, %v765
          %v1101 = vmul.f32 %v1087, %v767
          %v1102 = vmul.f32 %v1087, %v769
          %v1103 = vmul.f32 %v1087, %v1086
          %v1104 = vadd.f32 %v1069, %v1088
          %v1105 = vadd.f32 %v1070, %v1089
          %v1106 = vadd.f32 %v1071, %v1090
          %v1107 = vadd.f32 %v1072, %v1091
          %v1108 = vadd.f32 %v1073, %v1092
          %v1109 = vadd.f32 %v1074, %v1093
          %v1110 = vadd.f32 %v1075, %v1094
          %v1111 = vadd.f32 %v1076, %v1095
          %v1112 = vadd.f32 %v1077, %v1096
          %v1113 = vadd.f32 %v1078, %v1097
          %v1114 = vadd.f32 %v1079, %v1098
          %v1115 = vadd.f32 %v1080, %v1099
          %v1116 = vadd.f32 %v1081, %v1100
          %v1117 = vadd.f32 %v1082, %v1101
          %v1118 = vadd.f32 %v1083, %v1102
          %v1119 = vadd.f32 %v1084, %v1103
          %v1120 = vstv %s514
          %v1121 = vmul.f32 %v1120, %v603
          %v1122 = vmul.f32 %v1120, %v604
          %v1123 = vmul.f32 %v1120, %v605
          %v1124 = vmul.f32 %v1120, %v606
          %v1125 = vmul.f32 %v1120, %v607
          %v1126 = vmul.f32 %v1120, %v608
          %v1127 = vmul.f32 %v1120, %v609
          %v1128 = vmul.f32 %v1120, %v610
          %v1129 = vmul.f32 %v1120, %v611
          %v1130 = vmul.f32 %v1120, %v612
          %v1131 = vmul.f32 %v1120, %v613
          %v1132 = vmul.f32 %v1120, %v614
          %v1133 = vmul.f32 %v1120, %v615
          %v1134 = vmul.f32 %v1120, %v616
          %v1135 = vmul.f32 %v1120, %v617
          %v1136 = vmul.f32 %v1120, %v618
          %v1137 = vadd.f32 %v1104, %v1121
          %v1138 = vadd.f32 %v1105, %v1122
          %v1139 = vadd.f32 %v1106, %v1123
          %v1140 = vadd.f32 %v1107, %v1124
          %v1141 = vadd.f32 %v1108, %v1125
          %v1142 = vadd.f32 %v1109, %v1126
          %v1143 = vadd.f32 %v1110, %v1127
          %v1144 = vadd.f32 %v1111, %v1128
          %v1145 = vadd.f32 %v1112, %v1129
          %v1146 = vadd.f32 %v1113, %v1130
          %v1147 = vadd.f32 %v1114, %v1131
          %v1148 = vadd.f32 %v1115, %v1132
          %v1149 = vadd.f32 %v1116, %v1133
          %v1150 = vadd.f32 %v1117, %v1134
          %v1151 = vadd.f32 %v1118, %v1135
          %v1152 = vadd.f32 %v1119, %v1136
          %1153 = vrot.lane.b32.xlu0 %v618, 127
          %v1154 = vpop.permute.xlu0 %1153
          %v1155 = vstv %s515
          %v1156 = vmul.f32 %v1155, %v839
          %v1157 = vmul.f32 %v1155, %v841
          %v1158 = vmul.f32 %v1155, %v843
          %v1159 = vmul.f32 %v1155, %v845
          %v1160 = vmul.f32 %v1155, %v847
          %v1161 = vmul.f32 %v1155, %v849
          %v1162 = vmul.f32 %v1155, %v851
          %v1163 = vmul.f32 %v1155, %v853
          %v1164 = vmul.f32 %v1155, %v855
          %v1165 = vmul.f32 %v1155, %v857
          %v1166 = vmul.f32 %v1155, %v859
          %v1167 = vmul.f32 %v1155, %v861
          %v1168 = vmul.f32 %v1155, %v863
          %v1169 = vmul.f32 %v1155, %v865
          %v1170 = vmul.f32 %v1155, %v867
          %v1171 = vmul.f32 %v1155, %v1154
          %v1172 = vadd.f32 %v1137, %v1156
          %v1173 = vadd.f32 %v1138, %v1157
          %v1174 = vadd.f32 %v1139, %v1158
          %v1175 = vadd.f32 %v1140, %v1159
          %v1176 = vadd.f32 %v1141, %v1160
          %v1177 = vadd.f32 %v1142, %v1161
          %v1178 = vadd.f32 %v1143, %v1162
          %v1179 = vadd.f32 %v1144, %v1163
          %v1180 = vadd.f32 %v1145, %v1164
          %v1181 = vadd.f32 %v1146, %v1165
          %v1182 = vadd.f32 %v1147, %v1166
          %v1183 = vadd.f32 %v1148, %v1167
          %v1184 = vadd.f32 %v1149, %v1168
          %v1185 = vadd.f32 %v1150, %v1169
          %v1186 = vadd.f32 %v1151, %v1170
          %v1187 = vadd.f32 %v1152, %v1171
          %1188 = vrot.lane.b32.xlu0 %v618, 126
          %v1189 = vpop.permute.xlu0 %1188
          %v1190 = vstv %s516
          %v1191 = vmul.f32 %v1190, %v904
          %v1192 = vmul.f32 %v1190, %v906
          %v1193 = vmul.f32 %v1190, %v908
          %v1194 = vmul.f32 %v1190, %v910
          %v1195 = vmul.f32 %v1190, %v912
          %v1196 = vmul.f32 %v1190, %v914
          %v1197 = vmul.f32 %v1190, %v916
          %v1198 = vmul.f32 %v1190, %v918
          %v1199 = vmul.f32 %v1190, %v920
          %v1200 = vmul.f32 %v1190, %v922
          %v1201 = vmul.f32 %v1190, %v924
          %v1202 = vmul.f32 %v1190, %v926
          %v1203 = vmul.f32 %v1190, %v928
          %v1204 = vmul.f32 %v1190, %v930
          %v1205 = vmul.f32 %v1190, %v932
          %v1206 = vmul.f32 %v1190, %v1189
          %v1207 = vadd.f32 %v1172, %v1191
          %v1208 = vadd.f32 %v1173, %v1192
          %v1209 = vadd.f32 %v1174, %v1193
          %v1210 = vadd.f32 %v1175, %v1194
          %v1211 = vadd.f32 %v1176, %v1195
          %v1212 = vadd.f32 %v1177, %v1196
          %v1213 = vadd.f32 %v1178, %v1197
          %v1214 = vadd.f32 %v1179, %v1198
          %v1215 = vadd.f32 %v1180, %v1199
          %v1216 = vadd.f32 %v1181, %v1200
          %v1217 = vadd.f32 %v1182, %v1201
          %v1218 = vadd.f32 %v1183, %v1202
          %v1219 = vadd.f32 %v1184, %v1203
          %v1220 = vadd.f32 %v1185, %v1204
          %v1221 = vadd.f32 %v1186, %v1205
          %v1222 = vadd.f32 %v1187, %v1206
          %1223 = vrot.lane.b32.xlu0 %v618, 125
          %v1224 = vpop.permute.xlu0 %1223
          %v1225 = vstv %s517
          %v1226 = vmul.f32 %v1225, %v969
          %v1227 = vmul.f32 %v1225, %v971
          %v1228 = vmul.f32 %v1225, %v973
          %v1229 = vmul.f32 %v1225, %v975
          %v1230 = vmul.f32 %v1225, %v977
          %v1231 = vmul.f32 %v1225, %v979
          %v1232 = vmul.f32 %v1225, %v981
          %v1233 = vmul.f32 %v1225, %v983
          %v1234 = vmul.f32 %v1225, %v985
          %v1235 = vmul.f32 %v1225, %v987
          %v1236 = vmul.f32 %v1225, %v989
          %v1237 = vmul.f32 %v1225, %v991
          %v1238 = vmul.f32 %v1225, %v993
          %v1239 = vmul.f32 %v1225, %v995
          %v1240 = vmul.f32 %v1225, %v997
          %v1241 = vmul.f32 %v1225, %v1224
          %v1242 = vadd.f32 %v1207, %v1226
          %v1243 = vadd.f32 %v1208, %v1227
          %v1244 = vadd.f32 %v1209, %v1228
          %v1245 = vadd.f32 %v1210, %v1229
          %v1246 = vadd.f32 %v1211, %v1230
          %v1247 = vadd.f32 %v1212, %v1231
          %v1248 = vadd.f32 %v1213, %v1232
          %v1249 = vadd.f32 %v1214, %v1233
          %v1250 = vadd.f32 %v1215, %v1234
          %v1251 = vadd.f32 %v1216, %v1235
          %v1252 = vadd.f32 %v1217, %v1236
          %v1253 = vadd.f32 %v1218, %v1237
          %v1254 = vadd.f32 %v1219, %v1238
          %v1255 = vadd.f32 %v1220, %v1239
          %v1256 = vadd.f32 %v1221, %v1240
          %v1257 = vadd.f32 %v1222, %v1241
          %v1258 = vadd.f32 %v1015, %v1242
          %v1259 = vadd.f32 %v1016, %v1243
          %v1260 = vadd.f32 %v1017, %v1244
          %v1261 = vadd.f32 %v1018, %v1245
          %v1262 = vadd.f32 %v1019, %v1246
          %v1263 = vadd.f32 %v1020, %v1247
          %v1264 = vadd.f32 %v1021, %v1248
          %v1265 = vadd.f32 %v1022, %v1249
          %v1266 = vadd.f32 %v1023, %v1250
          %v1267 = vadd.f32 %v1024, %v1251
          %v1268 = vadd.f32 %v1025, %v1252
          %v1269 = vadd.f32 %v1026, %v1253
          %v1270 = vadd.f32 %v1027, %v1254
          %v1271 = vadd.f32 %v1028, %v1255
          %v1272 = vadd.f32 %v1029, %v1256
          %v1273 = vadd.f32 %v1030, %v1257
          %1274 = vrot.lane.b32.xlu0 %v619, 3
          %v1275 = vpop.permute.xlu0 %1274
          %v1276 = vstv %s518
          %v1277 = vmul.f32 %v1276, %v629
          %v1278 = vmul.f32 %v1276, %v631
          %v1279 = vmul.f32 %v1276, %v633
          %v1280 = vmul.f32 %v1276, %v635
          %v1281 = vmul.f32 %v1276, %v637
          %v1282 = vmul.f32 %v1276, %v639
          %v1283 = vmul.f32 %v1276, %v641
          %v1284 = vmul.f32 %v1276, %v643
          %v1285 = vmul.f32 %v1276, %v645
          %v1286 = vmul.f32 %v1276, %v647
          %v1287 = vmul.f32 %v1276, %v649
          %v1288 = vmul.f32 %v1276, %v651
          %v1289 = vmul.f32 %v1276, %v653
          %v1290 = vmul.f32 %v1276, %v655
          %v1291 = vmul.f32 %v1276, %v1032
          %v1292 = vmul.f32 %v1276, %v1275
          %1293 = vrot.lane.b32.xlu0 %v619, 2
          %v1294 = vpop.permute.xlu0 %1293
          %v1295 = vstv %s519
          %v1296 = vmul.f32 %v1295, %v678
          %v1297 = vmul.f32 %v1295, %v680
          %v1298 = vmul.f32 %v1295, %v682
          %v1299 = vmul.f32 %v1295, %v684
          %v1300 = vmul.f32 %v1295, %v686
          %v1301 = vmul.f32 %v1295, %v688
          %v1302 = vmul.f32 %v1295, %v690
          %v1303 = vmul.f32 %v1295, %v692
          %v1304 = vmul.f32 %v1295, %v694
          %v1305 = vmul.f32 %v1295, %v696
          %v1306 = vmul.f32 %v1295, %v698
          %v1307 = vmul.f32 %v1295, %v700
          %v1308 = vmul.f32 %v1295, %v702
          %v1309 = vmul.f32 %v1295, %v704
          %v1310 = vmul.f32 %v1295, %v1051
          %v1311 = vmul.f32 %v1295, %v1294
          %v1312 = vadd.f32 %v1277, %v1296
          %v1313 = vadd.f32 %v1278, %v1297
          %v1314 = vadd.f32 %v1279, %v1298
          %v1315 = vadd.f32 %v1280, %v1299
          %v1316 = vadd.f32 %v1281, %v1300
          %v1317 = vadd.f32 %v1282, %v1301
          %v1318 = vadd.f32 %v1283, %v1302
          %v1319 = vadd.f32 %v1284, %v1303
          %v1320 = vadd.f32 %v1285, %v1304
          %v1321 = vadd.f32 %v1286, %v1305
          %v1322 = vadd.f32 %v1287, %v1306
          %v1323 = vadd.f32 %v1288, %v1307
          %v1324 = vadd.f32 %v1289, %v1308
          %v1325 = vadd.f32 %v1290, %v1309
          %v1326 = vadd.f32 %v1291, %v1310
          %v1327 = vadd.f32 %v1292, %v1311
          %1328 = vrot.lane.b32.xlu0 %v619, 1
          %v1329 = vpop.permute.xlu0 %1328
          %v1330 = vstv %s520
          %v1331 = vmul.f32 %v1330, %v743
          %v1332 = vmul.f32 %v1330, %v745
          %v1333 = vmul.f32 %v1330, %v747
          %v1334 = vmul.f32 %v1330, %v749
          %v1335 = vmul.f32 %v1330, %v751
          %v1336 = vmul.f32 %v1330, %v753
          %v1337 = vmul.f32 %v1330, %v755
          %v1338 = vmul.f32 %v1330, %v757
          %v1339 = vmul.f32 %v1330, %v759
          %v1340 = vmul.f32 %v1330, %v761
          %v1341 = vmul.f32 %v1330, %v763
          %v1342 = vmul.f32 %v1330, %v765
          %v1343 = vmul.f32 %v1330, %v767
          %v1344 = vmul.f32 %v1330, %v769
          %v1345 = vmul.f32 %v1330, %v1086
          %v1346 = vmul.f32 %v1330, %v1329
          %v1347 = vadd.f32 %v1312, %v1331
          %v1348 = vadd.f32 %v1313, %v1332
          %v1349 = vadd.f32 %v1314, %v1333
          %v1350 = vadd.f32 %v1315, %v1334
          %v1351 = vadd.f32 %v1316, %v1335
          %v1352 = vadd.f32 %v1317, %v1336
          %v1353 = vadd.f32 %v1318, %v1337
          %v1354 = vadd.f32 %v1319, %v1338
          %v1355 = vadd.f32 %v1320, %v1339
          %v1356 = vadd.f32 %v1321, %v1340
          %v1357 = vadd.f32 %v1322, %v1341
          %v1358 = vadd.f32 %v1323, %v1342
          %v1359 = vadd.f32 %v1324, %v1343
          %v1360 = vadd.f32 %v1325, %v1344
          %v1361 = vadd.f32 %v1326, %v1345
          %v1362 = vadd.f32 %v1327, %v1346
          %v1363 = vstv %s521
          %v1364 = vmul.f32 %v1363, %v604
          %v1365 = vmul.f32 %v1363, %v605
          %v1366 = vmul.f32 %v1363, %v606
          %v1367 = vmul.f32 %v1363, %v607
          %v1368 = vmul.f32 %v1363, %v608
          %v1369 = vmul.f32 %v1363, %v609
          %v1370 = vmul.f32 %v1363, %v610
          %v1371 = vmul.f32 %v1363, %v611
          %v1372 = vmul.f32 %v1363, %v612
          %v1373 = vmul.f32 %v1363, %v613
          %v1374 = vmul.f32 %v1363, %v614
          %v1375 = vmul.f32 %v1363, %v615
          %v1376 = vmul.f32 %v1363, %v616
          %v1377 = vmul.f32 %v1363, %v617
          %v1378 = vmul.f32 %v1363, %v618
          %v1379 = vmul.f32 %v1363, %v619
          %v1380 = vadd.f32 %v1347, %v1364
          %v1381 = vadd.f32 %v1348, %v1365
          %v1382 = vadd.f32 %v1349, %v1366
          %v1383 = vadd.f32 %v1350, %v1367
          %v1384 = vadd.f32 %v1351, %v1368
          %v1385 = vadd.f32 %v1352, %v1369
          %v1386 = vadd.f32 %v1353, %v1370
          %v1387 = vadd.f32 %v1354, %v1371
          %v1388 = vadd.f32 %v1355, %v1372
          %v1389 = vadd.f32 %v1356, %v1373
          %v1390 = vadd.f32 %v1357, %v1374
          %v1391 = vadd.f32 %v1358, %v1375
          %v1392 = vadd.f32 %v1359, %v1376
          %v1393 = vadd.f32 %v1360, %v1377
          %v1394 = vadd.f32 %v1361, %v1378
          %v1395 = vadd.f32 %v1362, %v1379
          %1396 = vrot.lane.b32.xlu0 %v619, 127
          %v1397 = vpop.permute.xlu0 %1396
          %v1398 = vstv %s522
          %v1399 = vmul.f32 %v1398, %v841
          %v1400 = vmul.f32 %v1398, %v843
          %v1401 = vmul.f32 %v1398, %v845
          %v1402 = vmul.f32 %v1398, %v847
          %v1403 = vmul.f32 %v1398, %v849
          %v1404 = vmul.f32 %v1398, %v851
          %v1405 = vmul.f32 %v1398, %v853
          %v1406 = vmul.f32 %v1398, %v855
          %v1407 = vmul.f32 %v1398, %v857
          %v1408 = vmul.f32 %v1398, %v859
          %v1409 = vmul.f32 %v1398, %v861
          %v1410 = vmul.f32 %v1398, %v863
          %v1411 = vmul.f32 %v1398, %v865
          %v1412 = vmul.f32 %v1398, %v867
          %v1413 = vmul.f32 %v1398, %v1154
          %v1414 = vmul.f32 %v1398, %v1397
          %v1415 = vadd.f32 %v1380, %v1399
          %v1416 = vadd.f32 %v1381, %v1400
          %v1417 = vadd.f32 %v1382, %v1401
          %v1418 = vadd.f32 %v1383, %v1402
          %v1419 = vadd.f32 %v1384, %v1403
          %v1420 = vadd.f32 %v1385, %v1404
          %v1421 = vadd.f32 %v1386, %v1405
          %v1422 = vadd.f32 %v1387, %v1406
          %v1423 = vadd.f32 %v1388, %v1407
          %v1424 = vadd.f32 %v1389, %v1408
          %v1425 = vadd.f32 %v1390, %v1409
          %v1426 = vadd.f32 %v1391, %v1410
          %v1427 = vadd.f32 %v1392, %v1411
          %v1428 = vadd.f32 %v1393, %v1412
          %v1429 = vadd.f32 %v1394, %v1413
          %v1430 = vadd.f32 %v1395, %v1414
          %1431 = vrot.lane.b32.xlu0 %v619, 126
          %v1432 = vpop.permute.xlu0 %1431
          %v1433 = vstv %s523
          %v1434 = vmul.f32 %v1433, %v906
          %v1435 = vmul.f32 %v1433, %v908
          %v1436 = vmul.f32 %v1433, %v910
          %v1437 = vmul.f32 %v1433, %v912
          %v1438 = vmul.f32 %v1433, %v914
          %v1439 = vmul.f32 %v1433, %v916
          %v1440 = vmul.f32 %v1433, %v918
          %v1441 = vmul.f32 %v1433, %v920
          %v1442 = vmul.f32 %v1433, %v922
          %v1443 = vmul.f32 %v1433, %v924
          %v1444 = vmul.f32 %v1433, %v926
          %v1445 = vmul.f32 %v1433, %v928
          %v1446 = vmul.f32 %v1433, %v930
          %v1447 = vmul.f32 %v1433, %v932
          %v1448 = vmul.f32 %v1433, %v1189
          %v1449 = vmul.f32 %v1433, %v1432
          %v1450 = vadd.f32 %v1415, %v1434
          %v1451 = vadd.f32 %v1416, %v1435
          %v1452 = vadd.f32 %v1417, %v1436
          %v1453 = vadd.f32 %v1418, %v1437
          %v1454 = vadd.f32 %v1419, %v1438
          %v1455 = vadd.f32 %v1420, %v1439
          %v1456 = vadd.f32 %v1421, %v1440
          %v1457 = vadd.f32 %v1422, %v1441
          %v1458 = vadd.f32 %v1423, %v1442
          %v1459 = vadd.f32 %v1424, %v1443
          %v1460 = vadd.f32 %v1425, %v1444
          %v1461 = vadd.f32 %v1426, %v1445
          %v1462 = vadd.f32 %v1427, %v1446
          %v1463 = vadd.f32 %v1428, %v1447
          %v1464 = vadd.f32 %v1429, %v1448
          %v1465 = vadd.f32 %v1430, %v1449
          %1466 = vrot.lane.b32.xlu0 %v619, 125
          %v1467 = vpop.permute.xlu0 %1466
          %v1468 = vstv %s524
          %v1469 = vmul.f32 %v1468, %v971
          %v1470 = vmul.f32 %v1468, %v973
          %v1471 = vmul.f32 %v1468, %v975
          %v1472 = vmul.f32 %v1468, %v977
          %v1473 = vmul.f32 %v1468, %v979
          %v1474 = vmul.f32 %v1468, %v981
          %v1475 = vmul.f32 %v1468, %v983
          %v1476 = vmul.f32 %v1468, %v985
          %v1477 = vmul.f32 %v1468, %v987
          %v1478 = vmul.f32 %v1468, %v989
          %v1479 = vmul.f32 %v1468, %v991
          %v1480 = vmul.f32 %v1468, %v993
          %v1481 = vmul.f32 %v1468, %v995
          %v1482 = vmul.f32 %v1468, %v997
          %v1483 = vmul.f32 %v1468, %v1224
          %v1484 = vmul.f32 %v1468, %v1467
          %v1485 = vadd.f32 %v1450, %v1469
          %v1486 = vadd.f32 %v1451, %v1470
          %v1487 = vadd.f32 %v1452, %v1471
          %v1488 = vadd.f32 %v1453, %v1472
          %v1489 = vadd.f32 %v1454, %v1473
          %v1490 = vadd.f32 %v1455, %v1474
          %v1491 = vadd.f32 %v1456, %v1475
          %v1492 = vadd.f32 %v1457, %v1476
          %v1493 = vadd.f32 %v1458, %v1477
          %v1494 = vadd.f32 %v1459, %v1478
          %v1495 = vadd.f32 %v1460, %v1479
          %v1496 = vadd.f32 %v1461, %v1480
          %v1497 = vadd.f32 %v1462, %v1481
          %v1498 = vadd.f32 %v1463, %v1482
          %v1499 = vadd.f32 %v1464, %v1483
          %v1500 = vadd.f32 %v1465, %v1484
          %v1501 = vadd.f32 %v1258, %v1485
          %v1502 = vadd.f32 %v1259, %v1486
          %v1503 = vadd.f32 %v1260, %v1487
          %v1504 = vadd.f32 %v1261, %v1488
          %v1505 = vadd.f32 %v1262, %v1489
          %v1506 = vadd.f32 %v1263, %v1490
          %v1507 = vadd.f32 %v1264, %v1491
          %v1508 = vadd.f32 %v1265, %v1492
          %v1509 = vadd.f32 %v1266, %v1493
          %v1510 = vadd.f32 %v1267, %v1494
          %v1511 = vadd.f32 %v1268, %v1495
          %v1512 = vadd.f32 %v1269, %v1496
          %v1513 = vadd.f32 %v1270, %v1497
          %v1514 = vadd.f32 %v1271, %v1498
          %v1515 = vadd.f32 %v1272, %v1499
          %v1516 = vadd.f32 %v1273, %v1500
          %1517 = vrot.lane.b32.xlu0 %v620, 3
          %v1518 = vpop.permute.xlu0 %1517
          %v1519 = vstv %s525
          %v1520 = vmul.f32 %v1519, %v631
          %v1521 = vmul.f32 %v1519, %v633
          %v1522 = vmul.f32 %v1519, %v635
          %v1523 = vmul.f32 %v1519, %v637
          %v1524 = vmul.f32 %v1519, %v639
          %v1525 = vmul.f32 %v1519, %v641
          %v1526 = vmul.f32 %v1519, %v643
          %v1527 = vmul.f32 %v1519, %v645
          %v1528 = vmul.f32 %v1519, %v647
          %v1529 = vmul.f32 %v1519, %v649
          %v1530 = vmul.f32 %v1519, %v651
          %v1531 = vmul.f32 %v1519, %v653
          %v1532 = vmul.f32 %v1519, %v655
          %v1533 = vmul.f32 %v1519, %v1032
          %v1534 = vmul.f32 %v1519, %v1275
          %v1535 = vmul.f32 %v1519, %v1518
          %1536 = vrot.lane.b32.xlu0 %v620, 2
          %v1537 = vpop.permute.xlu0 %1536
          %v1538 = vstv %s526
          %v1539 = vmul.f32 %v1538, %v680
          %v1540 = vmul.f32 %v1538, %v682
          %v1541 = vmul.f32 %v1538, %v684
          %v1542 = vmul.f32 %v1538, %v686
          %v1543 = vmul.f32 %v1538, %v688
          %v1544 = vmul.f32 %v1538, %v690
          %v1545 = vmul.f32 %v1538, %v692
          %v1546 = vmul.f32 %v1538, %v694
          %v1547 = vmul.f32 %v1538, %v696
          %v1548 = vmul.f32 %v1538, %v698
          %v1549 = vmul.f32 %v1538, %v700
          %v1550 = vmul.f32 %v1538, %v702
          %v1551 = vmul.f32 %v1538, %v704
          %v1552 = vmul.f32 %v1538, %v1051
          %v1553 = vmul.f32 %v1538, %v1294
          %v1554 = vmul.f32 %v1538, %v1537
          %v1555 = vadd.f32 %v1520, %v1539
          %v1556 = vadd.f32 %v1521, %v1540
          %v1557 = vadd.f32 %v1522, %v1541
          %v1558 = vadd.f32 %v1523, %v1542
          %v1559 = vadd.f32 %v1524, %v1543
          %v1560 = vadd.f32 %v1525, %v1544
          %v1561 = vadd.f32 %v1526, %v1545
          %v1562 = vadd.f32 %v1527, %v1546
          %v1563 = vadd.f32 %v1528, %v1547
          %v1564 = vadd.f32 %v1529, %v1548
          %v1565 = vadd.f32 %v1530, %v1549
          %v1566 = vadd.f32 %v1531, %v1550
          %v1567 = vadd.f32 %v1532, %v1551
          %v1568 = vadd.f32 %v1533, %v1552
          %v1569 = vadd.f32 %v1534, %v1553
          %v1570 = vadd.f32 %v1535, %v1554
          %1571 = vrot.lane.b32.xlu0 %v620, 1
          %v1572 = vpop.permute.xlu0 %1571
          %v1573 = vstv %s527
          %v1574 = vmul.f32 %v1573, %v745
          %v1575 = vmul.f32 %v1573, %v747
          %v1576 = vmul.f32 %v1573, %v749
          %v1577 = vmul.f32 %v1573, %v751
          %v1578 = vmul.f32 %v1573, %v753
          %v1579 = vmul.f32 %v1573, %v755
          %v1580 = vmul.f32 %v1573, %v757
          %v1581 = vmul.f32 %v1573, %v759
          %v1582 = vmul.f32 %v1573, %v761
          %v1583 = vmul.f32 %v1573, %v763
          %v1584 = vmul.f32 %v1573, %v765
          %v1585 = vmul.f32 %v1573, %v767
          %v1586 = vmul.f32 %v1573, %v769
          %v1587 = vmul.f32 %v1573, %v1086
          %v1588 = vmul.f32 %v1573, %v1329
          %v1589 = vmul.f32 %v1573, %v1572
          %v1590 = vadd.f32 %v1555, %v1574
          %v1591 = vadd.f32 %v1556, %v1575
          %v1592 = vadd.f32 %v1557, %v1576
          %v1593 = vadd.f32 %v1558, %v1577
          %v1594 = vadd.f32 %v1559, %v1578
          %v1595 = vadd.f32 %v1560, %v1579
          %v1596 = vadd.f32 %v1561, %v1580
          %v1597 = vadd.f32 %v1562, %v1581
          %v1598 = vadd.f32 %v1563, %v1582
          %v1599 = vadd.f32 %v1564, %v1583
          %v1600 = vadd.f32 %v1565, %v1584
          %v1601 = vadd.f32 %v1566, %v1585
          %v1602 = vadd.f32 %v1567, %v1586
          %v1603 = vadd.f32 %v1568, %v1587
          %v1604 = vadd.f32 %v1569, %v1588
          %v1605 = vadd.f32 %v1570, %v1589
          %v1606 = vstv %s528
          %v1607 = vmul.f32 %v1606, %v605
          %v1608 = vmul.f32 %v1606, %v606
          %v1609 = vmul.f32 %v1606, %v607
          %v1610 = vmul.f32 %v1606, %v608
          %v1611 = vmul.f32 %v1606, %v609
          %v1612 = vmul.f32 %v1606, %v610
          %v1613 = vmul.f32 %v1606, %v611
          %v1614 = vmul.f32 %v1606, %v612
          %v1615 = vmul.f32 %v1606, %v613
          %v1616 = vmul.f32 %v1606, %v614
          %v1617 = vmul.f32 %v1606, %v615
          %v1618 = vmul.f32 %v1606, %v616
          %v1619 = vmul.f32 %v1606, %v617
          %v1620 = vmul.f32 %v1606, %v618
          %v1621 = vmul.f32 %v1606, %v619
          %v1622 = vmul.f32 %v1606, %v620
          %v1623 = vadd.f32 %v1590, %v1607
          %v1624 = vadd.f32 %v1591, %v1608
          %v1625 = vadd.f32 %v1592, %v1609
          %v1626 = vadd.f32 %v1593, %v1610
          %v1627 = vadd.f32 %v1594, %v1611
          %v1628 = vadd.f32 %v1595, %v1612
          %v1629 = vadd.f32 %v1596, %v1613
          %v1630 = vadd.f32 %v1597, %v1614
          %v1631 = vadd.f32 %v1598, %v1615
          %v1632 = vadd.f32 %v1599, %v1616
          %v1633 = vadd.f32 %v1600, %v1617
          %v1634 = vadd.f32 %v1601, %v1618
          %v1635 = vadd.f32 %v1602, %v1619
          %v1636 = vadd.f32 %v1603, %v1620
          %v1637 = vadd.f32 %v1604, %v1621
          %v1638 = vadd.f32 %v1605, %v1622
          %1639 = vrot.lane.b32.xlu0 %v620, 127
          %v1640 = vpop.permute.xlu0 %1639
          %v1641 = vstv %s529
          %v1642 = vmul.f32 %v1641, %v843
          %v1643 = vmul.f32 %v1641, %v845
          %v1644 = vmul.f32 %v1641, %v847
          %v1645 = vmul.f32 %v1641, %v849
          %v1646 = vmul.f32 %v1641, %v851
          %v1647 = vmul.f32 %v1641, %v853
          %v1648 = vmul.f32 %v1641, %v855
          %v1649 = vmul.f32 %v1641, %v857
          %v1650 = vmul.f32 %v1641, %v859
          %v1651 = vmul.f32 %v1641, %v861
          %v1652 = vmul.f32 %v1641, %v863
          %v1653 = vmul.f32 %v1641, %v865
          %v1654 = vmul.f32 %v1641, %v867
          %v1655 = vmul.f32 %v1641, %v1154
          %v1656 = vmul.f32 %v1641, %v1397
          %v1657 = vmul.f32 %v1641, %v1640
          %v1658 = vadd.f32 %v1623, %v1642
          %v1659 = vadd.f32 %v1624, %v1643
          %v1660 = vadd.f32 %v1625, %v1644
          %v1661 = vadd.f32 %v1626, %v1645
          %v1662 = vadd.f32 %v1627, %v1646
          %v1663 = vadd.f32 %v1628, %v1647
          %v1664 = vadd.f32 %v1629, %v1648
          %v1665 = vadd.f32 %v1630, %v1649
          %v1666 = vadd.f32 %v1631, %v1650
          %v1667 = vadd.f32 %v1632, %v1651
          %v1668 = vadd.f32 %v1633, %v1652
          %v1669 = vadd.f32 %v1634, %v1653
          %v1670 = vadd.f32 %v1635, %v1654
          %v1671 = vadd.f32 %v1636, %v1655
          %v1672 = vadd.f32 %v1637, %v1656
          %v1673 = vadd.f32 %v1638, %v1657
          %1674 = vrot.lane.b32.xlu0 %v620, 126
          %v1675 = vpop.permute.xlu0 %1674
          %v1676 = vstv %s530
          %v1677 = vmul.f32 %v1676, %v908
          %v1678 = vmul.f32 %v1676, %v910
          %v1679 = vmul.f32 %v1676, %v912
          %v1680 = vmul.f32 %v1676, %v914
          %v1681 = vmul.f32 %v1676, %v916
          %v1682 = vmul.f32 %v1676, %v918
          %v1683 = vmul.f32 %v1676, %v920
          %v1684 = vmul.f32 %v1676, %v922
          %v1685 = vmul.f32 %v1676, %v924
          %v1686 = vmul.f32 %v1676, %v926
          %v1687 = vmul.f32 %v1676, %v928
          %v1688 = vmul.f32 %v1676, %v930
          %v1689 = vmul.f32 %v1676, %v932
          %v1690 = vmul.f32 %v1676, %v1189
          %v1691 = vmul.f32 %v1676, %v1432
          %v1692 = vmul.f32 %v1676, %v1675
          %v1693 = vadd.f32 %v1658, %v1677
          %v1694 = vadd.f32 %v1659, %v1678
          %v1695 = vadd.f32 %v1660, %v1679
          %v1696 = vadd.f32 %v1661, %v1680
          %v1697 = vadd.f32 %v1662, %v1681
          %v1698 = vadd.f32 %v1663, %v1682
          %v1699 = vadd.f32 %v1664, %v1683
          %v1700 = vadd.f32 %v1665, %v1684
          %v1701 = vadd.f32 %v1666, %v1685
          %v1702 = vadd.f32 %v1667, %v1686
          %v1703 = vadd.f32 %v1668, %v1687
          %v1704 = vadd.f32 %v1669, %v1688
          %v1705 = vadd.f32 %v1670, %v1689
          %v1706 = vadd.f32 %v1671, %v1690
          %v1707 = vadd.f32 %v1672, %v1691
          %v1708 = vadd.f32 %v1673, %v1692
          %1709 = vrot.lane.b32.xlu0 %v620, 125
          %v1710 = vpop.permute.xlu0 %1709
          %v1711 = vstv %s531
          %v1712 = vmul.f32 %v1711, %v973
          %v1713 = vmul.f32 %v1711, %v975
          %v1714 = vmul.f32 %v1711, %v977
          %v1715 = vmul.f32 %v1711, %v979
          %v1716 = vmul.f32 %v1711, %v981
          %v1717 = vmul.f32 %v1711, %v983
          %v1718 = vmul.f32 %v1711, %v985
          %v1719 = vmul.f32 %v1711, %v987
          %v1720 = vmul.f32 %v1711, %v989
          %v1721 = vmul.f32 %v1711, %v991
          %v1722 = vmul.f32 %v1711, %v993
          %v1723 = vmul.f32 %v1711, %v995
          %v1724 = vmul.f32 %v1711, %v997
          %v1725 = vmul.f32 %v1711, %v1224
          %v1726 = vmul.f32 %v1711, %v1467
          %v1727 = vmul.f32 %v1711, %v1710
          %v1728 = vadd.f32 %v1693, %v1712
          %v1729 = vadd.f32 %v1694, %v1713
          %v1730 = vadd.f32 %v1695, %v1714
          %v1731 = vadd.f32 %v1696, %v1715
          %v1732 = vadd.f32 %v1697, %v1716
          %v1733 = vadd.f32 %v1698, %v1717
          %v1734 = vadd.f32 %v1699, %v1718
          %v1735 = vadd.f32 %v1700, %v1719
          %v1736 = vadd.f32 %v1701, %v1720
          %v1737 = vadd.f32 %v1702, %v1721
          %v1738 = vadd.f32 %v1703, %v1722
          %v1739 = vadd.f32 %v1704, %v1723
          %v1740 = vadd.f32 %v1705, %v1724
          %v1741 = vadd.f32 %v1706, %v1725
          %v1742 = vadd.f32 %v1707, %v1726
          %v1743 = vadd.f32 %v1708, %v1727
          %v1744 = vadd.f32 %v1501, %v1728
          %v1745 = vadd.f32 %v1502, %v1729
          %v1746 = vadd.f32 %v1503, %v1730
          %v1747 = vadd.f32 %v1504, %v1731
          %v1748 = vadd.f32 %v1505, %v1732
          %v1749 = vadd.f32 %v1506, %v1733
          %v1750 = vadd.f32 %v1507, %v1734
          %v1751 = vadd.f32 %v1508, %v1735
          %v1752 = vadd.f32 %v1509, %v1736
          %v1753 = vadd.f32 %v1510, %v1737
          %v1754 = vadd.f32 %v1511, %v1738
          %v1755 = vadd.f32 %v1512, %v1739
          %v1756 = vadd.f32 %v1513, %v1740
          %v1757 = vadd.f32 %v1514, %v1741
          %v1758 = vadd.f32 %v1515, %v1742
          %v1759 = vadd.f32 %v1516, %v1743
          %1760 = vrot.lane.b32.xlu0 %v621, 3
          %v1761 = vpop.permute.xlu0 %1760
          %v1762 = vstv %s532
          %v1763 = vmul.f32 %v1762, %v633
          %v1764 = vmul.f32 %v1762, %v635
          %v1765 = vmul.f32 %v1762, %v637
          %v1766 = vmul.f32 %v1762, %v639
          %v1767 = vmul.f32 %v1762, %v641
          %v1768 = vmul.f32 %v1762, %v643
          %v1769 = vmul.f32 %v1762, %v645
          %v1770 = vmul.f32 %v1762, %v647
          %v1771 = vmul.f32 %v1762, %v649
          %v1772 = vmul.f32 %v1762, %v651
          %v1773 = vmul.f32 %v1762, %v653
          %v1774 = vmul.f32 %v1762, %v655
          %v1775 = vmul.f32 %v1762, %v1032
          %v1776 = vmul.f32 %v1762, %v1275
          %v1777 = vmul.f32 %v1762, %v1518
          %v1778 = vmul.f32 %v1762, %v1761
          %1779 = vrot.lane.b32.xlu0 %v621, 2
          %v1780 = vpop.permute.xlu0 %1779
          %v1781 = vstv %s533
          %v1782 = vmul.f32 %v1781, %v682
          %v1783 = vmul.f32 %v1781, %v684
          %v1784 = vmul.f32 %v1781, %v686
          %v1785 = vmul.f32 %v1781, %v688
          %v1786 = vmul.f32 %v1781, %v690
          %v1787 = vmul.f32 %v1781, %v692
          %v1788 = vmul.f32 %v1781, %v694
          %v1789 = vmul.f32 %v1781, %v696
          %v1790 = vmul.f32 %v1781, %v698
          %v1791 = vmul.f32 %v1781, %v700
          %v1792 = vmul.f32 %v1781, %v702
          %v1793 = vmul.f32 %v1781, %v704
          %v1794 = vmul.f32 %v1781, %v1051
          %v1795 = vmul.f32 %v1781, %v1294
          %v1796 = vmul.f32 %v1781, %v1537
          %v1797 = vmul.f32 %v1781, %v1780
          %v1798 = vadd.f32 %v1763, %v1782
          %v1799 = vadd.f32 %v1764, %v1783
          %v1800 = vadd.f32 %v1765, %v1784
          %v1801 = vadd.f32 %v1766, %v1785
          %v1802 = vadd.f32 %v1767, %v1786
          %v1803 = vadd.f32 %v1768, %v1787
          %v1804 = vadd.f32 %v1769, %v1788
          %v1805 = vadd.f32 %v1770, %v1789
          %v1806 = vadd.f32 %v1771, %v1790
          %v1807 = vadd.f32 %v1772, %v1791
          %v1808 = vadd.f32 %v1773, %v1792
          %v1809 = vadd.f32 %v1774, %v1793
          %v1810 = vadd.f32 %v1775, %v1794
          %v1811 = vadd.f32 %v1776, %v1795
          %v1812 = vadd.f32 %v1777, %v1796
          %v1813 = vadd.f32 %v1778, %v1797
          %1814 = vrot.lane.b32.xlu0 %v621, 1
          %v1815 = vpop.permute.xlu0 %1814
          %v1816 = vstv %s534
          %v1817 = vmul.f32 %v1816, %v747
          %v1818 = vmul.f32 %v1816, %v749
          %v1819 = vmul.f32 %v1816, %v751
          %v1820 = vmul.f32 %v1816, %v753
          %v1821 = vmul.f32 %v1816, %v755
          %v1822 = vmul.f32 %v1816, %v757
          %v1823 = vmul.f32 %v1816, %v759
          %v1824 = vmul.f32 %v1816, %v761
          %v1825 = vmul.f32 %v1816, %v763
          %v1826 = vmul.f32 %v1816, %v765
          %v1827 = vmul.f32 %v1816, %v767
          %v1828 = vmul.f32 %v1816, %v769
          %v1829 = vmul.f32 %v1816, %v1086
          %v1830 = vmul.f32 %v1816, %v1329
          %v1831 = vmul.f32 %v1816, %v1572
          %v1832 = vmul.f32 %v1816, %v1815
          %v1833 = vadd.f32 %v1798, %v1817
          %v1834 = vadd.f32 %v1799, %v1818
          %v1835 = vadd.f32 %v1800, %v1819
          %v1836 = vadd.f32 %v1801, %v1820
          %v1837 = vadd.f32 %v1802, %v1821
          %v1838 = vadd.f32 %v1803, %v1822
          %v1839 = vadd.f32 %v1804, %v1823
          %v1840 = vadd.f32 %v1805, %v1824
          %v1841 = vadd.f32 %v1806, %v1825
          %v1842 = vadd.f32 %v1807, %v1826
          %v1843 = vadd.f32 %v1808, %v1827
          %v1844 = vadd.f32 %v1809, %v1828
          %v1845 = vadd.f32 %v1810, %v1829
          %v1846 = vadd.f32 %v1811, %v1830
          %v1847 = vadd.f32 %v1812, %v1831
          %v1848 = vadd.f32 %v1813, %v1832
          %v1849 = vstv %s535
          %v1850 = vmul.f32 %v1849, %v606
          %v1851 = vmul.f32 %v1849, %v607
          %v1852 = vmul.f32 %v1849, %v608
          %v1853 = vmul.f32 %v1849, %v609
          %v1854 = vmul.f32 %v1849, %v610
          %v1855 = vmul.f32 %v1849, %v611
          %v1856 = vmul.f32 %v1849, %v612
          %v1857 = vmul.f32 %v1849, %v613
          %v1858 = vmul.f32 %v1849, %v614
          %v1859 = vmul.f32 %v1849, %v615
          %v1860 = vmul.f32 %v1849, %v616
          %v1861 = vmul.f32 %v1849, %v617
          %v1862 = vmul.f32 %v1849, %v618
          %v1863 = vmul.f32 %v1849, %v619
          %v1864 = vmul.f32 %v1849, %v620
          %v1865 = vmul.f32 %v1849, %v621
          %v1866 = vadd.f32 %v1833, %v1850
          %v1867 = vadd.f32 %v1834, %v1851
          %v1868 = vadd.f32 %v1835, %v1852
          %v1869 = vadd.f32 %v1836, %v1853
          %v1870 = vadd.f32 %v1837, %v1854
          %v1871 = vadd.f32 %v1838, %v1855
          %v1872 = vadd.f32 %v1839, %v1856
          %v1873 = vadd.f32 %v1840, %v1857
          %v1874 = vadd.f32 %v1841, %v1858
          %v1875 = vadd.f32 %v1842, %v1859
          %v1876 = vadd.f32 %v1843, %v1860
          %v1877 = vadd.f32 %v1844, %v1861
          %v1878 = vadd.f32 %v1845, %v1862
          %v1879 = vadd.f32 %v1846, %v1863
          %v1880 = vadd.f32 %v1847, %v1864
          %v1881 = vadd.f32 %v1848, %v1865
          %1882 = vrot.lane.b32.xlu0 %v621, 127
          %v1883 = vpop.permute.xlu0 %1882
          %v1884 = vstv %s536
          %v1885 = vmul.f32 %v1884, %v845
          %v1886 = vmul.f32 %v1884, %v847
          %v1887 = vmul.f32 %v1884, %v849
          %v1888 = vmul.f32 %v1884, %v851
          %v1889 = vmul.f32 %v1884, %v853
          %v1890 = vmul.f32 %v1884, %v855
          %v1891 = vmul.f32 %v1884, %v857
          %v1892 = vmul.f32 %v1884, %v859
          %v1893 = vmul.f32 %v1884, %v861
          %v1894 = vmul.f32 %v1884, %v863
          %v1895 = vmul.f32 %v1884, %v865
          %v1896 = vmul.f32 %v1884, %v867
          %v1897 = vmul.f32 %v1884, %v1154
          %v1898 = vmul.f32 %v1884, %v1397
          %v1899 = vmul.f32 %v1884, %v1640
          %v1900 = vmul.f32 %v1884, %v1883
          %v1901 = vadd.f32 %v1866, %v1885
          %v1902 = vadd.f32 %v1867, %v1886
          %v1903 = vadd.f32 %v1868, %v1887
          %v1904 = vadd.f32 %v1869, %v1888
          %v1905 = vadd.f32 %v1870, %v1889
          %v1906 = vadd.f32 %v1871, %v1890
          %v1907 = vadd.f32 %v1872, %v1891
          %v1908 = vadd.f32 %v1873, %v1892
          %v1909 = vadd.f32 %v1874, %v1893
          %v1910 = vadd.f32 %v1875, %v1894
          %v1911 = vadd.f32 %v1876, %v1895
          %v1912 = vadd.f32 %v1877, %v1896
          %v1913 = vadd.f32 %v1878, %v1897
          %v1914 = vadd.f32 %v1879, %v1898
          %v1915 = vadd.f32 %v1880, %v1899
          %v1916 = vadd.f32 %v1881, %v1900
          %1917 = vrot.lane.b32.xlu0 %v621, 126
          %v1918 = vpop.permute.xlu0 %1917
          %v1919 = vstv %s537
          %v1920 = vmul.f32 %v1919, %v910
          %v1921 = vmul.f32 %v1919, %v912
          %v1922 = vmul.f32 %v1919, %v914
          %v1923 = vmul.f32 %v1919, %v916
          %v1924 = vmul.f32 %v1919, %v918
          %v1925 = vmul.f32 %v1919, %v920
          %v1926 = vmul.f32 %v1919, %v922
          %v1927 = vmul.f32 %v1919, %v924
          %v1928 = vmul.f32 %v1919, %v926
          %v1929 = vmul.f32 %v1919, %v928
          %v1930 = vmul.f32 %v1919, %v930
          %v1931 = vmul.f32 %v1919, %v932
          %v1932 = vmul.f32 %v1919, %v1189
          %v1933 = vmul.f32 %v1919, %v1432
          %v1934 = vmul.f32 %v1919, %v1675
          %v1935 = vmul.f32 %v1919, %v1918
          %v1936 = vadd.f32 %v1901, %v1920
          %v1937 = vadd.f32 %v1902, %v1921
          %v1938 = vadd.f32 %v1903, %v1922
          %v1939 = vadd.f32 %v1904, %v1923
          %v1940 = vadd.f32 %v1905, %v1924
          %v1941 = vadd.f32 %v1906, %v1925
          %v1942 = vadd.f32 %v1907, %v1926
          %v1943 = vadd.f32 %v1908, %v1927
          %v1944 = vadd.f32 %v1909, %v1928
          %v1945 = vadd.f32 %v1910, %v1929
          %v1946 = vadd.f32 %v1911, %v1930
          %v1947 = vadd.f32 %v1912, %v1931
          %v1948 = vadd.f32 %v1913, %v1932
          %v1949 = vadd.f32 %v1914, %v1933
          %v1950 = vadd.f32 %v1915, %v1934
          %v1951 = vadd.f32 %v1916, %v1935
          %1952 = vrot.lane.b32.xlu0 %v621, 125
          %v1953 = vpop.permute.xlu0 %1952
          %v1954 = vstv %s538
          %v1955 = vmul.f32 %v1954, %v975
          %v1956 = vmul.f32 %v1954, %v977
          %v1957 = vmul.f32 %v1954, %v979
          %v1958 = vmul.f32 %v1954, %v981
          %v1959 = vmul.f32 %v1954, %v983
          %v1960 = vmul.f32 %v1954, %v985
          %v1961 = vmul.f32 %v1954, %v987
          %v1962 = vmul.f32 %v1954, %v989
          %v1963 = vmul.f32 %v1954, %v991
          %v1964 = vmul.f32 %v1954, %v993
          %v1965 = vmul.f32 %v1954, %v995
          %v1966 = vmul.f32 %v1954, %v997
          %v1967 = vmul.f32 %v1954, %v1224
          %v1968 = vmul.f32 %v1954, %v1467
          %v1969 = vmul.f32 %v1954, %v1710
          %v1970 = vmul.f32 %v1954, %v1953
          %v1971 = vadd.f32 %v1936, %v1955
          %v1972 = vadd.f32 %v1937, %v1956
          %v1973 = vadd.f32 %v1938, %v1957
          %v1974 = vadd.f32 %v1939, %v1958
          %v1975 = vadd.f32 %v1940, %v1959
          %v1976 = vadd.f32 %v1941, %v1960
          %v1977 = vadd.f32 %v1942, %v1961
          %v1978 = vadd.f32 %v1943, %v1962
          %v1979 = vadd.f32 %v1944, %v1963
          %v1980 = vadd.f32 %v1945, %v1964
          %v1981 = vadd.f32 %v1946, %v1965
          %v1982 = vadd.f32 %v1947, %v1966
          %v1983 = vadd.f32 %v1948, %v1967
          %v1984 = vadd.f32 %v1949, %v1968
          %v1985 = vadd.f32 %v1950, %v1969
          %v1986 = vadd.f32 %v1951, %v1970
          %v1987 = vadd.f32 %v1744, %v1971
          %v1988 = vadd.f32 %v1745, %v1972
          %v1989 = vadd.f32 %v1746, %v1973
          %v1990 = vadd.f32 %v1747, %v1974
          %v1991 = vadd.f32 %v1748, %v1975
          %v1992 = vadd.f32 %v1749, %v1976
          %v1993 = vadd.f32 %v1750, %v1977
          %v1994 = vadd.f32 %v1751, %v1978
          %v1995 = vadd.f32 %v1752, %v1979
          %v1996 = vadd.f32 %v1753, %v1980
          %v1997 = vadd.f32 %v1754, %v1981
          %v1998 = vadd.f32 %v1755, %v1982
          %v1999 = vadd.f32 %v1756, %v1983
          %v2000 = vadd.f32 %v1757, %v1984
          %v2001 = vadd.f32 %v1758, %v1985
          %v2002 = vadd.f32 %v1759, %v1986
          %2003 = vrot.lane.b32.xlu0 %v622, 3
          %v2004 = vpop.permute.xlu0 %2003
          %v2005 = vstv %s539
          %v2006 = vmul.f32 %v2005, %v635
          %v2007 = vmul.f32 %v2005, %v637
          %v2008 = vmul.f32 %v2005, %v639
          %v2009 = vmul.f32 %v2005, %v641
          %v2010 = vmul.f32 %v2005, %v643
          %v2011 = vmul.f32 %v2005, %v645
          %v2012 = vmul.f32 %v2005, %v647
          %v2013 = vmul.f32 %v2005, %v649
          %v2014 = vmul.f32 %v2005, %v651
          %v2015 = vmul.f32 %v2005, %v653
          %v2016 = vmul.f32 %v2005, %v655
          %v2017 = vmul.f32 %v2005, %v1032
          %v2018 = vmul.f32 %v2005, %v1275
          %v2019 = vmul.f32 %v2005, %v1518
          %v2020 = vmul.f32 %v2005, %v1761
          %v2021 = vmul.f32 %v2005, %v2004
          %2022 = vrot.lane.b32.xlu0 %v622, 2
          %v2023 = vpop.permute.xlu0 %2022
          %v2024 = vstv %s540
          %v2025 = vmul.f32 %v2024, %v684
          %v2026 = vmul.f32 %v2024, %v686
          %v2027 = vmul.f32 %v2024, %v688
          %v2028 = vmul.f32 %v2024, %v690
          %v2029 = vmul.f32 %v2024, %v692
          %v2030 = vmul.f32 %v2024, %v694
          %v2031 = vmul.f32 %v2024, %v696
          %v2032 = vmul.f32 %v2024, %v698
          %v2033 = vmul.f32 %v2024, %v700
          %v2034 = vmul.f32 %v2024, %v702
          %v2035 = vmul.f32 %v2024, %v704
          %v2036 = vmul.f32 %v2024, %v1051
          %v2037 = vmul.f32 %v2024, %v1294
          %v2038 = vmul.f32 %v2024, %v1537
          %v2039 = vmul.f32 %v2024, %v1780
          %v2040 = vmul.f32 %v2024, %v2023
          %v2041 = vadd.f32 %v2006, %v2025
          %v2042 = vadd.f32 %v2007, %v2026
          %v2043 = vadd.f32 %v2008, %v2027
          %v2044 = vadd.f32 %v2009, %v2028
          %v2045 = vadd.f32 %v2010, %v2029
          %v2046 = vadd.f32 %v2011, %v2030
          %v2047 = vadd.f32 %v2012, %v2031
          %v2048 = vadd.f32 %v2013, %v2032
          %v2049 = vadd.f32 %v2014, %v2033
          %v2050 = vadd.f32 %v2015, %v2034
          %v2051 = vadd.f32 %v2016, %v2035
          %v2052 = vadd.f32 %v2017, %v2036
          %v2053 = vadd.f32 %v2018, %v2037
          %v2054 = vadd.f32 %v2019, %v2038
          %v2055 = vadd.f32 %v2020, %v2039
          %v2056 = vadd.f32 %v2021, %v2040
          %2057 = vrot.lane.b32.xlu0 %v622, 1
          %v2058 = vpop.permute.xlu0 %2057
          %v2059 = vstv %s541
          %v2060 = vmul.f32 %v2059, %v749
          %v2061 = vmul.f32 %v2059, %v751
          %v2062 = vmul.f32 %v2059, %v753
          %v2063 = vmul.f32 %v2059, %v755
          %v2064 = vmul.f32 %v2059, %v757
          %v2065 = vmul.f32 %v2059, %v759
          %v2066 = vmul.f32 %v2059, %v761
          %v2067 = vmul.f32 %v2059, %v763
          %v2068 = vmul.f32 %v2059, %v765
          %v2069 = vmul.f32 %v2059, %v767
          %v2070 = vmul.f32 %v2059, %v769
          %v2071 = vmul.f32 %v2059, %v1086
          %v2072 = vmul.f32 %v2059, %v1329
          %v2073 = vmul.f32 %v2059, %v1572
          %v2074 = vmul.f32 %v2059, %v1815
          %v2075 = vmul.f32 %v2059, %v2058
          %v2076 = vadd.f32 %v2041, %v2060
          %v2077 = vadd.f32 %v2042, %v2061
          %v2078 = vadd.f32 %v2043, %v2062
          %v2079 = vadd.f32 %v2044, %v2063
          %v2080 = vadd.f32 %v2045, %v2064
          %v2081 = vadd.f32 %v2046, %v2065
          %v2082 = vadd.f32 %v2047, %v2066
          %v2083 = vadd.f32 %v2048, %v2067
          %v2084 = vadd.f32 %v2049, %v2068
          %v2085 = vadd.f32 %v2050, %v2069
          %v2086 = vadd.f32 %v2051, %v2070
          %v2087 = vadd.f32 %v2052, %v2071
          %v2088 = vadd.f32 %v2053, %v2072
          %v2089 = vadd.f32 %v2054, %v2073
          %v2090 = vadd.f32 %v2055, %v2074
          %v2091 = vadd.f32 %v2056, %v2075
          %v2092 = vstv %s542
          %v2093 = vmul.f32 %v2092, %v607
          %v2094 = vmul.f32 %v2092, %v608
          %v2095 = vmul.f32 %v2092, %v609
          %v2096 = vmul.f32 %v2092, %v610
          %v2097 = vmul.f32 %v2092, %v611
          %v2098 = vmul.f32 %v2092, %v612
          %v2099 = vmul.f32 %v2092, %v613
          %v2100 = vmul.f32 %v2092, %v614
          %v2101 = vmul.f32 %v2092, %v615
          %v2102 = vmul.f32 %v2092, %v616
          %v2103 = vmul.f32 %v2092, %v617
          %v2104 = vmul.f32 %v2092, %v618
          %v2105 = vmul.f32 %v2092, %v619
          %v2106 = vmul.f32 %v2092, %v620
          %v2107 = vmul.f32 %v2092, %v621
          %v2108 = vmul.f32 %v2092, %v622
          %v2109 = vadd.f32 %v2076, %v2093
          %v2110 = vadd.f32 %v2077, %v2094
          %v2111 = vadd.f32 %v2078, %v2095
          %v2112 = vadd.f32 %v2079, %v2096
          %v2113 = vadd.f32 %v2080, %v2097
          %v2114 = vadd.f32 %v2081, %v2098
          %v2115 = vadd.f32 %v2082, %v2099
          %v2116 = vadd.f32 %v2083, %v2100
          %v2117 = vadd.f32 %v2084, %v2101
          %v2118 = vadd.f32 %v2085, %v2102
          %v2119 = vadd.f32 %v2086, %v2103
          %v2120 = vadd.f32 %v2087, %v2104
          %v2121 = vadd.f32 %v2088, %v2105
          %v2122 = vadd.f32 %v2089, %v2106
          %v2123 = vadd.f32 %v2090, %v2107
          %v2124 = vadd.f32 %v2091, %v2108
          %2125 = vrot.lane.b32.xlu0 %v622, 127
          %v2126 = vpop.permute.xlu0 %2125
          %v2127 = vstv %s543
          %v2128 = vmul.f32 %v2127, %v847
          %v2129 = vmul.f32 %v2127, %v849
          %v2130 = vmul.f32 %v2127, %v851
          %v2131 = vmul.f32 %v2127, %v853
          %v2132 = vmul.f32 %v2127, %v855
          %v2133 = vmul.f32 %v2127, %v857
          %v2134 = vmul.f32 %v2127, %v859
          %v2135 = vmul.f32 %v2127, %v861
          %v2136 = vmul.f32 %v2127, %v863
          %v2137 = vmul.f32 %v2127, %v865
          %v2138 = vmul.f32 %v2127, %v867
          %v2139 = vmul.f32 %v2127, %v1154
          %v2140 = vmul.f32 %v2127, %v1397
          %v2141 = vmul.f32 %v2127, %v1640
          %v2142 = vmul.f32 %v2127, %v1883
          %v2143 = vmul.f32 %v2127, %v2126
          %v2144 = vadd.f32 %v2109, %v2128
          %v2145 = vadd.f32 %v2110, %v2129
          %v2146 = vadd.f32 %v2111, %v2130
          %v2147 = vadd.f32 %v2112, %v2131
          %v2148 = vadd.f32 %v2113, %v2132
          %v2149 = vadd.f32 %v2114, %v2133
          %v2150 = vadd.f32 %v2115, %v2134
          %v2151 = vadd.f32 %v2116, %v2135
          %v2152 = vadd.f32 %v2117, %v2136
          %v2153 = vadd.f32 %v2118, %v2137
          %v2154 = vadd.f32 %v2119, %v2138
          %v2155 = vadd.f32 %v2120, %v2139
          %v2156 = vadd.f32 %v2121, %v2140
          %v2157 = vadd.f32 %v2122, %v2141
          %v2158 = vadd.f32 %v2123, %v2142
          %v2159 = vadd.f32 %v2124, %v2143
          %2160 = vrot.lane.b32.xlu0 %v622, 126
          %v2161 = vpop.permute.xlu0 %2160
          %v2162 = vstv %s544
          %v2163 = vmul.f32 %v2162, %v912
          %v2164 = vmul.f32 %v2162, %v914
          %v2165 = vmul.f32 %v2162, %v916
          %v2166 = vmul.f32 %v2162, %v918
          %v2167 = vmul.f32 %v2162, %v920
          %v2168 = vmul.f32 %v2162, %v922
          %v2169 = vmul.f32 %v2162, %v924
          %v2170 = vmul.f32 %v2162, %v926
          %v2171 = vmul.f32 %v2162, %v928
          %v2172 = vmul.f32 %v2162, %v930
          %v2173 = vmul.f32 %v2162, %v932
          %v2174 = vmul.f32 %v2162, %v1189
          %v2175 = vmul.f32 %v2162, %v1432
          %v2176 = vmul.f32 %v2162, %v1675
          %v2177 = vmul.f32 %v2162, %v1918
          %v2178 = vmul.f32 %v2162, %v2161
          %v2179 = vadd.f32 %v2144, %v2163
          %v2180 = vadd.f32 %v2145, %v2164
          %v2181 = vadd.f32 %v2146, %v2165
          %v2182 = vadd.f32 %v2147, %v2166
          %v2183 = vadd.f32 %v2148, %v2167
          %v2184 = vadd.f32 %v2149, %v2168
          %v2185 = vadd.f32 %v2150, %v2169
          %v2186 = vadd.f32 %v2151, %v2170
          %v2187 = vadd.f32 %v2152, %v2171
          %v2188 = vadd.f32 %v2153, %v2172
          %v2189 = vadd.f32 %v2154, %v2173
          %v2190 = vadd.f32 %v2155, %v2174
          %v2191 = vadd.f32 %v2156, %v2175
          %v2192 = vadd.f32 %v2157, %v2176
          %v2193 = vadd.f32 %v2158, %v2177
          %v2194 = vadd.f32 %v2159, %v2178
          %2195 = vrot.lane.b32.xlu0 %v622, 125
          %v2196 = vpop.permute.xlu0 %2195
          %v2197 = vstv %s545
          %v2198 = vmul.f32 %v2197, %v977
          %v2199 = vmul.f32 %v2197, %v979
          %v2200 = vmul.f32 %v2197, %v981
          %v2201 = vmul.f32 %v2197, %v983
          %v2202 = vmul.f32 %v2197, %v985
          %v2203 = vmul.f32 %v2197, %v987
          %v2204 = vmul.f32 %v2197, %v989
          %v2205 = vmul.f32 %v2197, %v991
          %v2206 = vmul.f32 %v2197, %v993
          %v2207 = vmul.f32 %v2197, %v995
          %v2208 = vmul.f32 %v2197, %v997
          %v2209 = vmul.f32 %v2197, %v1224
          %v2210 = vmul.f32 %v2197, %v1467
          %v2211 = vmul.f32 %v2197, %v1710
          %v2212 = vmul.f32 %v2197, %v1953
          %v2213 = vmul.f32 %v2197, %v2196
          %v2214 = vadd.f32 %v2179, %v2198
          %v2215 = vadd.f32 %v2180, %v2199
          %v2216 = vadd.f32 %v2181, %v2200
          %v2217 = vadd.f32 %v2182, %v2201
          %v2218 = vadd.f32 %v2183, %v2202
          %v2219 = vadd.f32 %v2184, %v2203
          %v2220 = vadd.f32 %v2185, %v2204
          %v2221 = vadd.f32 %v2186, %v2205
          %v2222 = vadd.f32 %v2187, %v2206
          %v2223 = vadd.f32 %v2188, %v2207
          %v2224 = vadd.f32 %v2189, %v2208
          %v2225 = vadd.f32 %v2190, %v2209
          %v2226 = vadd.f32 %v2191, %v2210
          %v2227 = vadd.f32 %v2192, %v2211
          %v2228 = vadd.f32 %v2193, %v2212
          %v2229 = vadd.f32 %v2194, %v2213
          %v2230 = vadd.f32 %v1987, %v2214
          %v2231 = vadd.f32 %v1988, %v2215
          %v2232 = vadd.f32 %v1989, %v2216
          %v2233 = vadd.f32 %v1990, %v2217
          %v2234 = vadd.f32 %v1991, %v2218
          %v2235 = vadd.f32 %v1992, %v2219
          %v2236 = vadd.f32 %v1993, %v2220
          %v2237 = vadd.f32 %v1994, %v2221
          %v2238 = vadd.f32 %v1995, %v2222
          %v2239 = vadd.f32 %v1996, %v2223
          %v2240 = vadd.f32 %v1997, %v2224
          %v2241 = vadd.f32 %v1998, %v2225
          %v2242 = vadd.f32 %v1999, %v2226
          %v2243 = vadd.f32 %v2000, %v2227
          %v2244 = vadd.f32 %v2001, %v2228
          %v2245 = vadd.f32 %v2002, %v2229
          %2246 = vrot.lane.b32.xlu0 %v623, 3
          %v2247 = vpop.permute.xlu0 %2246
          %v2248 = vstv %s546
          %v2249 = vmul.f32 %v2248, %v637
          %v2250 = vmul.f32 %v2248, %v639
          %v2251 = vmul.f32 %v2248, %v641
          %v2252 = vmul.f32 %v2248, %v643
          %v2253 = vmul.f32 %v2248, %v645
          %v2254 = vmul.f32 %v2248, %v647
          %v2255 = vmul.f32 %v2248, %v649
          %v2256 = vmul.f32 %v2248, %v651
          %v2257 = vmul.f32 %v2248, %v653
          %v2258 = vmul.f32 %v2248, %v655
          %v2259 = vmul.f32 %v2248, %v1032
          %v2260 = vmul.f32 %v2248, %v1275
          %v2261 = vmul.f32 %v2248, %v1518
          %v2262 = vmul.f32 %v2248, %v1761
          %v2263 = vmul.f32 %v2248, %v2004
          %v2264 = vmul.f32 %v2248, %v2247
          %2265 = vrot.lane.b32.xlu0 %v623, 2
          %v2266 = vpop.permute.xlu0 %2265
          %v2267 = vstv %s547
          %v2268 = vmul.f32 %v2267, %v686
          %v2269 = vmul.f32 %v2267, %v688
          %v2270 = vmul.f32 %v2267, %v690
          %v2271 = vmul.f32 %v2267, %v692
          %v2272 = vmul.f32 %v2267, %v694
          %v2273 = vmul.f32 %v2267, %v696
          %v2274 = vmul.f32 %v2267, %v698
          %v2275 = vmul.f32 %v2267, %v700
          %v2276 = vmul.f32 %v2267, %v702
          %v2277 = vmul.f32 %v2267, %v704
          %v2278 = vmul.f32 %v2267, %v1051
          %v2279 = vmul.f32 %v2267, %v1294
          %v2280 = vmul.f32 %v2267, %v1537
          %v2281 = vmul.f32 %v2267, %v1780
          %v2282 = vmul.f32 %v2267, %v2023
          %v2283 = vmul.f32 %v2267, %v2266
          %v2284 = vadd.f32 %v2249, %v2268
          %v2285 = vadd.f32 %v2250, %v2269
          %v2286 = vadd.f32 %v2251, %v2270
          %v2287 = vadd.f32 %v2252, %v2271
          %v2288 = vadd.f32 %v2253, %v2272
          %v2289 = vadd.f32 %v2254, %v2273
          %v2290 = vadd.f32 %v2255, %v2274
          %v2291 = vadd.f32 %v2256, %v2275
          %v2292 = vadd.f32 %v2257, %v2276
          %v2293 = vadd.f32 %v2258, %v2277
          %v2294 = vadd.f32 %v2259, %v2278
          %v2295 = vadd.f32 %v2260, %v2279
          %v2296 = vadd.f32 %v2261, %v2280
          %v2297 = vadd.f32 %v2262, %v2281
          %v2298 = vadd.f32 %v2263, %v2282
          %v2299 = vadd.f32 %v2264, %v2283
          %2300 = vrot.lane.b32.xlu0 %v623, 1
          %v2301 = vpop.permute.xlu0 %2300
          %v2302 = vstv %s548
          %v2303 = vmul.f32 %v2302, %v751
          %v2304 = vmul.f32 %v2302, %v753
          %v2305 = vmul.f32 %v2302, %v755
          %v2306 = vmul.f32 %v2302, %v757
          %v2307 = vmul.f32 %v2302, %v759
          %v2308 = vmul.f32 %v2302, %v761
          %v2309 = vmul.f32 %v2302, %v763
          %v2310 = vmul.f32 %v2302, %v765
          %v2311 = vmul.f32 %v2302, %v767
          %v2312 = vmul.f32 %v2302, %v769
          %v2313 = vmul.f32 %v2302, %v1086
          %v2314 = vmul.f32 %v2302, %v1329
          %v2315 = vmul.f32 %v2302, %v1572
          %v2316 = vmul.f32 %v2302, %v1815
          %v2317 = vmul.f32 %v2302, %v2058
          %v2318 = vmul.f32 %v2302, %v2301
          %v2319 = vadd.f32 %v2284, %v2303
          %v2320 = vadd.f32 %v2285, %v2304
          %v2321 = vadd.f32 %v2286, %v2305
          %v2322 = vadd.f32 %v2287, %v2306
          %v2323 = vadd.f32 %v2288, %v2307
          %v2324 = vadd.f32 %v2289, %v2308
          %v2325 = vadd.f32 %v2290, %v2309
          %v2326 = vadd.f32 %v2291, %v2310
          %v2327 = vadd.f32 %v2292, %v2311
          %v2328 = vadd.f32 %v2293, %v2312
          %v2329 = vadd.f32 %v2294, %v2313
          %v2330 = vadd.f32 %v2295, %v2314
          %v2331 = vadd.f32 %v2296, %v2315
          %v2332 = vadd.f32 %v2297, %v2316
          %v2333 = vadd.f32 %v2298, %v2317
          %v2334 = vadd.f32 %v2299, %v2318
          %v2335 = vstv %s549
          %v2336 = vmul.f32 %v2335, %v608
          %v2337 = vmul.f32 %v2335, %v609
          %v2338 = vmul.f32 %v2335, %v610
          %v2339 = vmul.f32 %v2335, %v611
          %v2340 = vmul.f32 %v2335, %v612
          %v2341 = vmul.f32 %v2335, %v613
          %v2342 = vmul.f32 %v2335, %v614
          %v2343 = vmul.f32 %v2335, %v615
          %v2344 = vmul.f32 %v2335, %v616
          %v2345 = vmul.f32 %v2335, %v617
          %v2346 = vmul.f32 %v2335, %v618
          %v2347 = vmul.f32 %v2335, %v619
          %v2348 = vmul.f32 %v2335, %v620
          %v2349 = vmul.f32 %v2335, %v621
          %v2350 = vmul.f32 %v2335, %v622
          %v2351 = vmul.f32 %v2335, %v623
          %v2352 = vadd.f32 %v2319, %v2336
          %v2353 = vadd.f32 %v2320, %v2337
          %v2354 = vadd.f32 %v2321, %v2338
          %v2355 = vadd.f32 %v2322, %v2339
          %v2356 = vadd.f32 %v2323, %v2340
          %v2357 = vadd.f32 %v2324, %v2341
          %v2358 = vadd.f32 %v2325, %v2342
          %v2359 = vadd.f32 %v2326, %v2343
          %v2360 = vadd.f32 %v2327, %v2344
          %v2361 = vadd.f32 %v2328, %v2345
          %v2362 = vadd.f32 %v2329, %v2346
          %v2363 = vadd.f32 %v2330, %v2347
          %v2364 = vadd.f32 %v2331, %v2348
          %v2365 = vadd.f32 %v2332, %v2349
          %v2366 = vadd.f32 %v2333, %v2350
          %v2367 = vadd.f32 %v2334, %v2351
          %2368 = vrot.lane.b32.xlu0 %v623, 127
          %v2369 = vpop.permute.xlu0 %2368
          %v2370 = vstv %s550
          %v2371 = vmul.f32 %v2370, %v849
          %v2372 = vmul.f32 %v2370, %v851
          %v2373 = vmul.f32 %v2370, %v853
          %v2374 = vmul.f32 %v2370, %v855
          %v2375 = vmul.f32 %v2370, %v857
          %v2376 = vmul.f32 %v2370, %v859
          %v2377 = vmul.f32 %v2370, %v861
          %v2378 = vmul.f32 %v2370, %v863
          %v2379 = vmul.f32 %v2370, %v865
          %v2380 = vmul.f32 %v2370, %v867
          %v2381 = vmul.f32 %v2370, %v1154
          %v2382 = vmul.f32 %v2370, %v1397
          %v2383 = vmul.f32 %v2370, %v1640
          %v2384 = vmul.f32 %v2370, %v1883
          %v2385 = vmul.f32 %v2370, %v2126
          %v2386 = vmul.f32 %v2370, %v2369
          %v2387 = vadd.f32 %v2352, %v2371
          %v2388 = vadd.f32 %v2353, %v2372
          %v2389 = vadd.f32 %v2354, %v2373
          %v2390 = vadd.f32 %v2355, %v2374
          %v2391 = vadd.f32 %v2356, %v2375
          %v2392 = vadd.f32 %v2357, %v2376
          %v2393 = vadd.f32 %v2358, %v2377
          %v2394 = vadd.f32 %v2359, %v2378
          %v2395 = vadd.f32 %v2360, %v2379
          %v2396 = vadd.f32 %v2361, %v2380
          %v2397 = vadd.f32 %v2362, %v2381
          %v2398 = vadd.f32 %v2363, %v2382
          %v2399 = vadd.f32 %v2364, %v2383
          %v2400 = vadd.f32 %v2365, %v2384
          %v2401 = vadd.f32 %v2366, %v2385
          %v2402 = vadd.f32 %v2367, %v2386
          %2403 = vrot.lane.b32.xlu0 %v623, 126
          %v2404 = vpop.permute.xlu0 %2403
          %v2405 = vstv %s551
          %v2406 = vmul.f32 %v2405, %v914
          %v2407 = vmul.f32 %v2405, %v916
          %v2408 = vmul.f32 %v2405, %v918
          %v2409 = vmul.f32 %v2405, %v920
          %v2410 = vmul.f32 %v2405, %v922
          %v2411 = vmul.f32 %v2405, %v924
          %v2412 = vmul.f32 %v2405, %v926
          %v2413 = vmul.f32 %v2405, %v928
          %v2414 = vmul.f32 %v2405, %v930
          %v2415 = vmul.f32 %v2405, %v932
          %v2416 = vmul.f32 %v2405, %v1189
          %v2417 = vmul.f32 %v2405, %v1432
          %v2418 = vmul.f32 %v2405, %v1675
          %v2419 = vmul.f32 %v2405, %v1918
          %v2420 = vmul.f32 %v2405, %v2161
          %v2421 = vmul.f32 %v2405, %v2404
          %v2422 = vadd.f32 %v2387, %v2406
          %v2423 = vadd.f32 %v2388, %v2407
          %v2424 = vadd.f32 %v2389, %v2408
          %v2425 = vadd.f32 %v2390, %v2409
          %v2426 = vadd.f32 %v2391, %v2410
          %v2427 = vadd.f32 %v2392, %v2411
          %v2428 = vadd.f32 %v2393, %v2412
          %v2429 = vadd.f32 %v2394, %v2413
          %v2430 = vadd.f32 %v2395, %v2414
          %v2431 = vadd.f32 %v2396, %v2415
          %v2432 = vadd.f32 %v2397, %v2416
          %v2433 = vadd.f32 %v2398, %v2417
          %v2434 = vadd.f32 %v2399, %v2418
          %v2435 = vadd.f32 %v2400, %v2419
          %v2436 = vadd.f32 %v2401, %v2420
          %v2437 = vadd.f32 %v2402, %v2421
          %2438 = vrot.lane.b32.xlu0 %v623, 125
          %v2439 = vpop.permute.xlu0 %2438
          %v2440 = vstv %s552
          %v2441 = vmul.f32 %v2440, %v979
          %v2442 = vmul.f32 %v2440, %v981
          %v2443 = vmul.f32 %v2440, %v983
          %v2444 = vmul.f32 %v2440, %v985
          %v2445 = vmul.f32 %v2440, %v987
          %v2446 = vmul.f32 %v2440, %v989
          %v2447 = vmul.f32 %v2440, %v991
          %v2448 = vmul.f32 %v2440, %v993
          %v2449 = vmul.f32 %v2440, %v995
          %v2450 = vmul.f32 %v2440, %v997
          %v2451 = vmul.f32 %v2440, %v1224
          %v2452 = vmul.f32 %v2440, %v1467
          %v2453 = vmul.f32 %v2440, %v1710
          %v2454 = vmul.f32 %v2440, %v1953
          %v2455 = vmul.f32 %v2440, %v2196
          %v2456 = vmul.f32 %v2440, %v2439
          %v2457 = vadd.f32 %v2422, %v2441
          %v2458 = vadd.f32 %v2423, %v2442
          %v2459 = vadd.f32 %v2424, %v2443
          %v2460 = vadd.f32 %v2425, %v2444
          %v2461 = vadd.f32 %v2426, %v2445
          %v2462 = vadd.f32 %v2427, %v2446
          %v2463 = vadd.f32 %v2428, %v2447
          %v2464 = vadd.f32 %v2429, %v2448
          %v2465 = vadd.f32 %v2430, %v2449
          %v2466 = vadd.f32 %v2431, %v2450
          %v2467 = vadd.f32 %v2432, %v2451
          %v2468 = vadd.f32 %v2433, %v2452
          %v2469 = vadd.f32 %v2434, %v2453
          %v2470 = vadd.f32 %v2435, %v2454
          %v2471 = vadd.f32 %v2436, %v2455
          %v2472 = vadd.f32 %v2437, %v2456
          %v2473 = vadd.f32 %v2230, %v2457
          %v2474 = vadd.f32 %v2231, %v2458
          %v2475 = vadd.f32 %v2232, %v2459
          %v2476 = vadd.f32 %v2233, %v2460
          %v2477 = vadd.f32 %v2234, %v2461
          %v2478 = vadd.f32 %v2235, %v2462
          %v2479 = vadd.f32 %v2236, %v2463
          %v2480 = vadd.f32 %v2237, %v2464
          %v2481 = vadd.f32 %v2238, %v2465
          %v2482 = vadd.f32 %v2239, %v2466
          %v2483 = vadd.f32 %v2240, %v2467
          %v2484 = vadd.f32 %v2241, %v2468
          %v2485 = vadd.f32 %v2242, %v2469
          %v2486 = vadd.f32 %v2243, %v2470
          %v2487 = vadd.f32 %v2244, %v2471
          %v2488 = vadd.f32 %v2245, %v2472
          %v2489 = vld [vmem:[#allocation5] sm:$0x1]
          %v2490 = vld [vmem:[#allocation5 + $0x1] sm:$0x1]
          %v2491 = vld [vmem:[#allocation5 + $0x2] sm:$0x1]
          %v2492 = vld [vmem:[#allocation5 + $0x3] sm:$0x1]
          %v2493 = vld [vmem:[#allocation5 + $0x4] sm:$0x1]
          %v2494 = vld [vmem:[#allocation5 + $0x5] sm:$0x1]
          %v2495 = vld [vmem:[#allocation5 + $0x6] sm:$0x1]
          %v2496 = vld [vmem:[#allocation5 + $0x7] sm:$0x1]
          %v2497 = vld [vmem:[#allocation5 + $0x8] sm:$0x1]
          %v2498 = vld [vmem:[#allocation5 + $0x9] sm:$0x1]
          %v2499 = vld [vmem:[#allocation5 + $0xa] sm:$0x1]
          %v2500 = vld [vmem:[#allocation5 + $0xb] sm:$0x1]
          %v2501 = vld [vmem:[#allocation5 + $0xc] sm:$0x1]
          %v2502 = vld [vmem:[#allocation5 + $0xd] sm:$0x1]
          %v2503 = vld [vmem:[#allocation5 + $0xe] sm:$0x1]
          %v2504 = vld [vmem:[#allocation5 + $0xf] sm:$0x1]
          %v2505 = vld [vmem:[#allocation5 + $0x10] sm:$0x1]
          %v2506 = vld [vmem:[#allocation5 + $0x11] sm:$0x1]
          %v2507 = vld [vmem:[#allocation5 + $0x12] sm:$0x1]
          %v2508 = vld [vmem:[#allocation5 + $0x13] sm:$0x1]
          %v2509 = vld [vmem:[#allocation5 + $0x14] sm:$0x1]
          %v2510 = vld [vmem:[#allocation5 + $0x15] sm:$0x1]
          %2511 = vrot.lane.b32.xlu0 %v2489, 3
          %v2512 = vpop.permute.xlu0 %2511
          %2513 = vrot.lane.b32.xlu0 %v2490, 3
          %v2514 = vpop.permute.xlu0 %2513
          %2515 = vrot.lane.b32.xlu0 %v2491, 3
          %v2516 = vpop.permute.xlu0 %2515
          %2517 = vrot.lane.b32.xlu0 %v2492, 3
          %v2518 = vpop.permute.xlu0 %2517
          %2519 = vrot.lane.b32.xlu0 %v2493, 3
          %v2520 = vpop.permute.xlu0 %2519
          %2521 = vrot.lane.b32.xlu0 %v2494, 3
          %v2522 = vpop.permute.xlu0 %2521
          %2523 = vrot.lane.b32.xlu0 %v2495, 3
          %v2524 = vpop.permute.xlu0 %2523
          %2525 = vrot.lane.b32.xlu0 %v2496, 3
          %v2526 = vpop.permute.xlu0 %2525
          %2527 = vrot.lane.b32.xlu0 %v2497, 3
          %v2528 = vpop.permute.xlu0 %2527
          %2529 = vrot.lane.b32.xlu0 %v2498, 3
          %v2530 = vpop.permute.xlu0 %2529
          %2531 = vrot.lane.b32.xlu0 %v2499, 3
          %v2532 = vpop.permute.xlu0 %2531
          %2533 = vrot.lane.b32.xlu0 %v2500, 3
          %v2534 = vpop.permute.xlu0 %2533
          %2535 = vrot.lane.b32.xlu0 %v2501, 3
          %v2536 = vpop.permute.xlu0 %2535
          %2537 = vrot.lane.b32.xlu0 %v2502, 3
          %v2538 = vpop.permute.xlu0 %2537
          %2539 = vrot.lane.b32.xlu0 %v2503, 3
          %v2540 = vpop.permute.xlu0 %2539
          %2541 = vrot.lane.b32.xlu0 %v2504, 3
          %v2542 = vpop.permute.xlu0 %2541
          %v2543 = vstv %s553
          %v2544 = vmul.f32 %v2543, %v2512
          %v2545 = vmul.f32 %v2543, %v2514
          %v2546 = vmul.f32 %v2543, %v2516
          %v2547 = vmul.f32 %v2543, %v2518
          %v2548 = vmul.f32 %v2543, %v2520
          %v2549 = vmul.f32 %v2543, %v2522
          %v2550 = vmul.f32 %v2543, %v2524
          %v2551 = vmul.f32 %v2543, %v2526
          %v2552 = vmul.f32 %v2543, %v2528
          %v2553 = vmul.f32 %v2543, %v2530
          %v2554 = vmul.f32 %v2543, %v2532
          %v2555 = vmul.f32 %v2543, %v2534
          %v2556 = vmul.f32 %v2543, %v2536
          %v2557 = vmul.f32 %v2543, %v2538
          %v2558 = vmul.f32 %v2543, %v2540
          %v2559 = vmul.f32 %v2543, %v2542
          %2560 = vrot.lane.b32.xlu0 %v2489, 2
          %v2561 = vpop.permute.xlu0 %2560
          %2562 = vrot.lane.b32.xlu0 %v2490, 2
          %v2563 = vpop.permute.xlu0 %2562
          %2564 = vrot.lane.b32.xlu0 %v2491, 2
          %v2565 = vpop.permute.xlu0 %2564
          %2566 = vrot.lane.b32.xlu0 %v2492, 2
          %v2567 = vpop.permute.xlu0 %2566
          %2568 = vrot.lane.b32.xlu0 %v2493, 2
          %v2569 = vpop.permute.xlu0 %2568
          %2570 = vrot.lane.b32.xlu0 %v2494, 2
          %v2571 = vpop.permute.xlu0 %2570
          %2572 = vrot.lane.b32.xlu0 %v2495, 2
          %v2573 = vpop.permute.xlu0 %2572
          %2574 = vrot.lane.b32.xlu0 %v2496, 2
          %v2575 = vpop.permute.xlu0 %2574
          %2576 = vrot.lane.b32.xlu0 %v2497, 2
          %v2577 = vpop.permute.xlu0 %2576
          %2578 = vrot.lane.b32.xlu0 %v2498, 2
          %v2579 = vpop.permute.xlu0 %2578
          %2580 = vrot.lane.b32.xlu0 %v2499, 2
          %v2581 = vpop.permute.xlu0 %2580
          %2582 = vrot.lane.b32.xlu0 %v2500, 2
          %v2583 = vpop.permute.xlu0 %2582
          %2584 = vrot.lane.b32.xlu0 %v2501, 2
          %v2585 = vpop.permute.xlu0 %2584
          %2586 = vrot.lane.b32.xlu0 %v2502, 2
          %v2587 = vpop.permute.xlu0 %2586
          %2588 = vrot.lane.b32.xlu0 %v2503, 2
          %v2589 = vpop.permute.xlu0 %2588
          %2590 = vrot.lane.b32.xlu0 %v2504, 2
          %v2591 = vpop.permute.xlu0 %2590
          %v2592 = vstv %s554
          %v2593 = vmul.f32 %v2592, %v2561
          %v2594 = vmul.f32 %v2592, %v2563
          %v2595 = vmul.f32 %v2592, %v2565
          %v2596 = vmul.f32 %v2592, %v2567
          %v2597 = vmul.f32 %v2592, %v2569
          %v2598 = vmul.f32 %v2592, %v2571
          %v2599 = vmul.f32 %v2592, %v2573
          %v2600 = vmul.f32 %v2592, %v2575
          %v2601 = vmul.f32 %v2592, %v2577
          %v2602 = vmul.f32 %v2592, %v2579
          %v2603 = vmul.f32 %v2592, %v2581
          %v2604 = vmul.f32 %v2592, %v2583
          %v2605 = vmul.f32 %v2592, %v2585
          %v2606 = vmul.f32 %v2592, %v2587
          %v2607 = vmul.f32 %v2592, %v2589
          %v2608 = vmul.f32 %v2592, %v2591
          %v2609 = vadd.f32 %v2544, %v2593
          %v2610 = vadd.f32 %v2545, %v2594
          %v2611 = vadd.f32 %v2546, %v2595
          %v2612 = vadd.f32 %v2547, %v2596
          %v2613 = vadd.f32 %v2548, %v2597
          %v2614 = vadd.f32 %v2549, %v2598
          %v2615 = vadd.f32 %v2550, %v2599
          %v2616 = vadd.f32 %v2551, %v2600
          %v2617 = vadd.f32 %v2552, %v2601
          %v2618 = vadd.f32 %v2553, %v2602
          %v2619 = vadd.f32 %v2554, %v2603
          %v2620 = vadd.f32 %v2555, %v2604
          %v2621 = vadd.f32 %v2556, %v2605
          %v2622 = vadd.f32 %v2557, %v2606
          %v2623 = vadd.f32 %v2558, %v2607
          %v2624 = vadd.f32 %v2559, %v2608
          %2625 = vrot.lane.b32.xlu0 %v2489, 1
          %v2626 = vpop.permute.xlu0 %2625
          %2627 = vrot.lane.b32.xlu0 %v2490, 1
          %v2628 = vpop.permute.xlu0 %2627
          %2629 = vrot.lane.b32.xlu0 %v2491, 1
          %v2630 = vpop.permute.xlu0 %2629
          %2631 = vrot.lane.b32.xlu0 %v2492, 1
          %v2632 = vpop.permute.xlu0 %2631
          %2633 = vrot.lane.b32.xlu0 %v2493, 1
          %v2634 = vpop.permute.xlu0 %2633
          %2635 = vrot.lane.b32.xlu0 %v2494, 1
          %v2636 = vpop.permute.xlu0 %2635
          %2637 = vrot.lane.b32.xlu0 %v2495, 1
          %v2638 = vpop.permute.xlu0 %2637
          %2639 = vrot.lane.b32.xlu0 %v2496, 1
          %v2640 = vpop.permute.xlu0 %2639
          %2641 = vrot.lane.b32.xlu0 %v2497, 1
          %v2642 = vpop.permute.xlu0 %2641
          %2643 = vrot.lane.b32.xlu0 %v2498, 1
          %v2644 = vpop.permute.xlu0 %2643
          %2645 = vrot.lane.b32.xlu0 %v2499, 1
          %v2646 = vpop.permute.xlu0 %2645
          %2647 = vrot.lane.b32.xlu0 %v2500, 1
          %v2648 = vpop.permute.xlu0 %2647
          %2649 = vrot.lane.b32.xlu0 %v2501, 1
          %v2650 = vpop.permute.xlu0 %2649
          %2651 = vrot.lane.b32.xlu0 %v2502, 1
          %v2652 = vpop.permute.xlu0 %2651
          %2653 = vrot.lane.b32.xlu0 %v2503, 1
          %v2654 = vpop.permute.xlu0 %2653
          %2655 = vrot.lane.b32.xlu0 %v2504, 1
          %v2656 = vpop.permute.xlu0 %2655
          %v2657 = vstv %s555
          %v2658 = vmul.f32 %v2657, %v2626
          %v2659 = vmul.f32 %v2657, %v2628
          %v2660 = vmul.f32 %v2657, %v2630
          %v2661 = vmul.f32 %v2657, %v2632
          %v2662 = vmul.f32 %v2657, %v2634
          %v2663 = vmul.f32 %v2657, %v2636
          %v2664 = vmul.f32 %v2657, %v2638
          %v2665 = vmul.f32 %v2657, %v2640
          %v2666 = vmul.f32 %v2657, %v2642
          %v2667 = vmul.f32 %v2657, %v2644
          %v2668 = vmul.f32 %v2657, %v2646
          %v2669 = vmul.f32 %v2657, %v2648
          %v2670 = vmul.f32 %v2657, %v2650
          %v2671 = vmul.f32 %v2657, %v2652
          %v2672 = vmul.f32 %v2657, %v2654
          %v2673 = vmul.f32 %v2657, %v2656
          %v2674 = vadd.f32 %v2609, %v2658
          %v2675 = vadd.f32 %v2610, %v2659
          %v2676 = vadd.f32 %v2611, %v2660
          %v2677 = vadd.f32 %v2612, %v2661
          %v2678 = vadd.f32 %v2613, %v2662
          %v2679 = vadd.f32 %v2614, %v2663
          %v2680 = vadd.f32 %v2615, %v2664
          %v2681 = vadd.f32 %v2616, %v2665
          %v2682 = vadd.f32 %v2617, %v2666
          %v2683 = vadd.f32 %v2618, %v2667
          %v2684 = vadd.f32 %v2619, %v2668
          %v2685 = vadd.f32 %v2620, %v2669
          %v2686 = vadd.f32 %v2621, %v2670
          %v2687 = vadd.f32 %v2622, %v2671
          %v2688 = vadd.f32 %v2623, %v2672
          %v2689 = vadd.f32 %v2624, %v2673
          %v2690 = vstv %s556
          %v2691 = vmul.f32 %v2690, %v2489
          %v2692 = vmul.f32 %v2690, %v2490
          %v2693 = vmul.f32 %v2690, %v2491
          %v2694 = vmul.f32 %v2690, %v2492
          %v2695 = vmul.f32 %v2690, %v2493
          %v2696 = vmul.f32 %v2690, %v2494
          %v2697 = vmul.f32 %v2690, %v2495
          %v2698 = vmul.f32 %v2690, %v2496
          %v2699 = vmul.f32 %v2690, %v2497
          %v2700 = vmul.f32 %v2690, %v2498
          %v2701 = vmul.f32 %v2690, %v2499
          %v2702 = vmul.f32 %v2690, %v2500
          %v2703 = vmul.f32 %v2690, %v2501
          %v2704 = vmul.f32 %v2690, %v2502
          %v2705 = vmul.f32 %v2690, %v2503
          %v2706 = vmul.f32 %v2690, %v2504
          %v2707 = vadd.f32 %v2674, %v2691
          %v2708 = vadd.f32 %v2675, %v2692
          %v2709 = vadd.f32 %v2676, %v2693
          %v2710 = vadd.f32 %v2677, %v2694
          %v2711 = vadd.f32 %v2678, %v2695
          %v2712 = vadd.f32 %v2679, %v2696
          %v2713 = vadd.f32 %v2680, %v2697
          %v2714 = vadd.f32 %v2681, %v2698
          %v2715 = vadd.f32 %v2682, %v2699
          %v2716 = vadd.f32 %v2683, %v2700
          %v2717 = vadd.f32 %v2684, %v2701
          %v2718 = vadd.f32 %v2685, %v2702
          %v2719 = vadd.f32 %v2686, %v2703
          %v2720 = vadd.f32 %v2687, %v2704
          %v2721 = vadd.f32 %v2688, %v2705
          %v2722 = vadd.f32 %v2689, %v2706
          %2723 = vrot.lane.b32.xlu0 %v2489, 127
          %v2724 = vpop.permute.xlu0 %2723
          %2725 = vrot.lane.b32.xlu0 %v2490, 127
          %v2726 = vpop.permute.xlu0 %2725
          %2727 = vrot.lane.b32.xlu0 %v2491, 127
          %v2728 = vpop.permute.xlu0 %2727
          %2729 = vrot.lane.b32.xlu0 %v2492, 127
          %v2730 = vpop.permute.xlu0 %2729
          %2731 = vrot.lane.b32.xlu0 %v2493, 127
          %v2732 = vpop.permute.xlu0 %2731
          %2733 = vrot.lane.b32.xlu0 %v2494, 127
          %v2734 = vpop.permute.xlu0 %2733
          %2735 = vrot.lane.b32.xlu0 %v2495, 127
          %v2736 = vpop.permute.xlu0 %2735
          %2737 = vrot.lane.b32.xlu0 %v2496, 127
          %v2738 = vpop.permute.xlu0 %2737
          %2739 = vrot.lane.b32.xlu0 %v2497, 127
          %v2740 = vpop.permute.xlu0 %2739
          %2741 = vrot.lane.b32.xlu0 %v2498, 127
          %v2742 = vpop.permute.xlu0 %2741
          %2743 = vrot.lane.b32.xlu0 %v2499, 127
          %v2744 = vpop.permute.xlu0 %2743
          %2745 = vrot.lane.b32.xlu0 %v2500, 127
          %v2746 = vpop.permute.xlu0 %2745
          %2747 = vrot.lane.b32.xlu0 %v2501, 127
          %v2748 = vpop.permute.xlu0 %2747
          %2749 = vrot.lane.b32.xlu0 %v2502, 127
          %v2750 = vpop.permute.xlu0 %2749
          %2751 = vrot.lane.b32.xlu0 %v2503, 127
          %v2752 = vpop.permute.xlu0 %2751
          %2753 = vrot.lane.b32.xlu0 %v2504, 127
          %v2754 = vpop.permute.xlu0 %2753
          %v2755 = vstv %s557
          %v2756 = vmul.f32 %v2755, %v2724
          %v2757 = vmul.f32 %v2755, %v2726
          %v2758 = vmul.f32 %v2755, %v2728
          %v2759 = vmul.f32 %v2755, %v2730
          %v2760 = vmul.f32 %v2755, %v2732
          %v2761 = vmul.f32 %v2755, %v2734
          %v2762 = vmul.f32 %v2755, %v2736
          %v2763 = vmul.f32 %v2755, %v2738
          %v2764 = vmul.f32 %v2755, %v2740
          %v2765 = vmul.f32 %v2755, %v2742
          %v2766 = vmul.f32 %v2755, %v2744
          %v2767 = vmul.f32 %v2755, %v2746
          %v2768 = vmul.f32 %v2755, %v2748
          %v2769 = vmul.f32 %v2755, %v2750
          %v2770 = vmul.f32 %v2755, %v2752
          %v2771 = vmul.f32 %v2755, %v2754
          %v2772 = vadd.f32 %v2707, %v2756
          %v2773 = vadd.f32 %v2708, %v2757
          %v2774 = vadd.f32 %v2709, %v2758
          %v2775 = vadd.f32 %v2710, %v2759
          %v2776 = vadd.f32 %v2711, %v2760
          %v2777 = vadd.f32 %v2712, %v2761
          %v2778 = vadd.f32 %v2713, %v2762
          %v2779 = vadd.f32 %v2714, %v2763
          %v2780 = vadd.f32 %v2715, %v2764
          %v2781 = vadd.f32 %v2716, %v2765
          %v2782 = vadd.f32 %v2717, %v2766
          %v2783 = vadd.f32 %v2718, %v2767
          %v2784 = vadd.f32 %v2719, %v2768
          %v2785 = vadd.f32 %v2720, %v2769
          %v2786 = vadd.f32 %v2721, %v2770
          %v2787 = vadd.f32 %v2722, %v2771
          %2788 = vrot.lane.b32.xlu0 %v2489, 126
          %v2789 = vpop.permute.xlu0 %2788
          %2790 = vrot.lane.b32.xlu0 %v2490, 126
          %v2791 = vpop.permute.xlu0 %2790
          %2792 = vrot.lane.b32.xlu0 %v2491, 126
          %v2793 = vpop.permute.xlu0 %2792
          %2794 = vrot.lane.b32.xlu0 %v2492, 126
          %v2795 = vpop.permute.xlu0 %2794
          %2796 = vrot.lane.b32.xlu0 %v2493, 126
          %v2797 = vpop.permute.xlu0 %2796
          %2798 = vrot.lane.b32.xlu0 %v2494, 126
          %v2799 = vpop.permute.xlu0 %2798
          %2800 = vrot.lane.b32.xlu0 %v2495, 126
          %v2801 = vpop.permute.xlu0 %2800
          %2802 = vrot.lane.b32.xlu0 %v2496, 126
          %v2803 = vpop.permute.xlu0 %2802
          %2804 = vrot.lane.b32.xlu0 %v2497, 126
          %v2805 = vpop.permute.xlu0 %2804
          %2806 = vrot.lane.b32.xlu0 %v2498, 126
          %v2807 = vpop.permute.xlu0 %2806
          %2808 = vrot.lane.b32.xlu0 %v2499, 126
          %v2809 = vpop.permute.xlu0 %2808
          %2810 = vrot.lane.b32.xlu0 %v2500, 126
          %v2811 = vpop.permute.xlu0 %2810
          %2812 = vrot.lane.b32.xlu0 %v2501, 126
          %v2813 = vpop.permute.xlu0 %2812
          %2814 = vrot.lane.b32.xlu0 %v2502, 126
          %v2815 = vpop.permute.xlu0 %2814
          %2816 = vrot.lane.b32.xlu0 %v2503, 126
          %v2817 = vpop.permute.xlu0 %2816
          %2818 = vrot.lane.b32.xlu0 %v2504, 126
          %v2819 = vpop.permute.xlu0 %2818
          %v2820 = vstv %s558
          %v2821 = vmul.f32 %v2820, %v2789
          %v2822 = vmul.f32 %v2820, %v2791
          %v2823 = vmul.f32 %v2820, %v2793
          %v2824 = vmul.f32 %v2820, %v2795
          %v2825 = vmul.f32 %v2820, %v2797
          %v2826 = vmul.f32 %v2820, %v2799
          %v2827 = vmul.f32 %v2820, %v2801
          %v2828 = vmul.f32 %v2820, %v2803
          %v2829 = vmul.f32 %v2820, %v2805
          %v2830 = vmul.f32 %v2820, %v2807
          %v2831 = vmul.f32 %v2820, %v2809
          %v2832 = vmul.f32 %v2820, %v2811
          %v2833 = vmul.f32 %v2820, %v2813
          %v2834 = vmul.f32 %v2820, %v2815
          %v2835 = vmul.f32 %v2820, %v2817
          %v2836 = vmul.f32 %v2820, %v2819
          %v2837 = vadd.f32 %v2772, %v2821
          %v2838 = vadd.f32 %v2773, %v2822
          %v2839 = vadd.f32 %v2774, %v2823
          %v2840 = vadd.f32 %v2775, %v2824
          %v2841 = vadd.f32 %v2776, %v2825
          %v2842 = vadd.f32 %v2777, %v2826
          %v2843 = vadd.f32 %v2778, %v2827
          %v2844 = vadd.f32 %v2779, %v2828
          %v2845 = vadd.f32 %v2780, %v2829
          %v2846 = vadd.f32 %v2781, %v2830
          %v2847 = vadd.f32 %v2782, %v2831
          %v2848 = vadd.f32 %v2783, %v2832
          %v2849 = vadd.f32 %v2784, %v2833
          %v2850 = vadd.f32 %v2785, %v2834
          %v2851 = vadd.f32 %v2786, %v2835
          %v2852 = vadd.f32 %v2787, %v2836
          %2853 = vrot.lane.b32.xlu0 %v2489, 125
          %v2854 = vpop.permute.xlu0 %2853
          %2855 = vrot.lane.b32.xlu0 %v2490, 125
          %v2856 = vpop.permute.xlu0 %2855
          %2857 = vrot.lane.b32.xlu0 %v2491, 125
          %v2858 = vpop.permute.xlu0 %2857
          %2859 = vrot.lane.b32.xlu0 %v2492, 125
          %v2860 = vpop.permute.xlu0 %2859
          %2861 = vrot.lane.b32.xlu0 %v2493, 125
          %v2862 = vpop.permute.xlu0 %2861
          %2863 = vrot.lane.b32.xlu0 %v2494, 125
          %v2864 = vpop.permute.xlu0 %2863
          %2865 = vrot.lane.b32.xlu0 %v2495, 125
          %v2866 = vpop.permute.xlu0 %2865
          %2867 = vrot.lane.b32.xlu0 %v2496, 125
          %v2868 = vpop.permute.xlu0 %2867
          %2869 = vrot.lane.b32.xlu0 %v2497, 125
          %v2870 = vpop.permute.xlu0 %2869
          %2871 = vrot.lane.b32.xlu0 %v2498, 125
          %v2872 = vpop.permute.xlu0 %2871
          %2873 = vrot.lane.b32.xlu0 %v2499, 125
          %v2874 = vpop.permute.xlu0 %2873
          %2875 = vrot.lane.b32.xlu0 %v2500, 125
          %v2876 = vpop.permute.xlu0 %2875
          %2877 = vrot.lane.b32.xlu0 %v2501, 125
          %v2878 = vpop.permute.xlu0 %2877
          %2879 = vrot.lane.b32.xlu0 %v2502, 125
          %v2880 = vpop.permute.xlu0 %2879
          %2881 = vrot.lane.b32.xlu0 %v2503, 125
          %v2882 = vpop.permute.xlu0 %2881
          %2883 = vrot.lane.b32.xlu0 %v2504, 125
          %v2884 = vpop.permute.xlu0 %2883
          %v2885 = vstv %s559
          %v2886 = vmul.f32 %v2885, %v2854
          %v2887 = vmul.f32 %v2885, %v2856
          %v2888 = vmul.f32 %v2885, %v2858
          %v2889 = vmul.f32 %v2885, %v2860
          %v2890 = vmul.f32 %v2885, %v2862
          %v2891 = vmul.f32 %v2885, %v2864
          %v2892 = vmul.f32 %v2885, %v2866
          %v2893 = vmul.f32 %v2885, %v2868
          %v2894 = vmul.f32 %v2885, %v2870
          %v2895 = vmul.f32 %v2885, %v2872
          %v2896 = vmul.f32 %v2885, %v2874
          %v2897 = vmul.f32 %v2885, %v2876
          %v2898 = vmul.f32 %v2885, %v2878
          %v2899 = vmul.f32 %v2885, %v2880
          %v2900 = vmul.f32 %v2885, %v2882
          %v2901 = vmul.f32 %v2885, %v2884
          %v2902 = vadd.f32 %v2837, %v2886
          %v2903 = vadd.f32 %v2838, %v2887
          %v2904 = vadd.f32 %v2839, %v2888
          %v2905 = vadd.f32 %v2840, %v2889
          %v2906 = vadd.f32 %v2841, %v2890
          %v2907 = vadd.f32 %v2842, %v2891
          %v2908 = vadd.f32 %v2843, %v2892
          %v2909 = vadd.f32 %v2844, %v2893
          %v2910 = vadd.f32 %v2845, %v2894
          %v2911 = vadd.f32 %v2846, %v2895
          %v2912 = vadd.f32 %v2847, %v2896
          %v2913 = vadd.f32 %v2848, %v2897
          %v2914 = vadd.f32 %v2849, %v2898
          %v2915 = vadd.f32 %v2850, %v2899
          %v2916 = vadd.f32 %v2851, %v2900
          %v2917 = vadd.f32 %v2852, %v2901
          %v2918 = vadd.f32 %v2473, %v2902
          %v2919 = vadd.f32 %v2474, %v2903
          %v2920 = vadd.f32 %v2475, %v2904
          %v2921 = vadd.f32 %v2476, %v2905
          %v2922 = vadd.f32 %v2477, %v2906
          %v2923 = vadd.f32 %v2478, %v2907
          %v2924 = vadd.f32 %v2479, %v2908
          %v2925 = vadd.f32 %v2480, %v2909
          %v2926 = vadd.f32 %v2481, %v2910
          %v2927 = vadd.f32 %v2482, %v2911
          %v2928 = vadd.f32 %v2483, %v2912
          %v2929 = vadd.f32 %v2484, %v2913
          %v2930 = vadd.f32 %v2485, %v2914
          %v2931 = vadd.f32 %v2486, %v2915
          %v2932 = vadd.f32 %v2487, %v2916
          %v2933 = vadd.f32 %v2488, %v2917
          %2934 = vrot.lane.b32.xlu0 %v2505, 3
          %v2935 = vpop.permute.xlu0 %2934
          %v2936 = vstv %s560
          %v2937 = vmul.f32 %v2936, %v2514
          %v2938 = vmul.f32 %v2936, %v2516
          %v2939 = vmul.f32 %v2936, %v2518
          %v2940 = vmul.f32 %v2936, %v2520
          %v2941 = vmul.f32 %v2936, %v2522
          %v2942 = vmul.f32 %v2936, %v2524
          %v2943 = vmul.f32 %v2936, %v2526
          %v2944 = vmul.f32 %v2936, %v2528
          %v2945 = vmul.f32 %v2936, %v2530
          %v2946 = vmul.f32 %v2936, %v2532
          %v2947 = vmul.f32 %v2936, %v2534
          %v2948 = vmul.f32 %v2936, %v2536
          %v2949 = vmul.f32 %v2936, %v2538
          %v2950 = vmul.f32 %v2936, %v2540
          %v2951 = vmul.f32 %v2936, %v2542
          %v2952 = vmul.f32 %v2936, %v2935
          %2953 = vrot.lane.b32.xlu0 %v2505, 2
          %v2954 = vpop.permute.xlu0 %2953
          %v2955 = vstv %s561
          %v2956 = vmul.f32 %v2955, %v2563
          %v2957 = vmul.f32 %v2955, %v2565
          %v2958 = vmul.f32 %v2955, %v2567
          %v2959 = vmul.f32 %v2955, %v2569
          %v2960 = vmul.f32 %v2955, %v2571
          %v2961 = vmul.f32 %v2955, %v2573
          %v2962 = vmul.f32 %v2955, %v2575
          %v2963 = vmul.f32 %v2955, %v2577
          %v2964 = vmul.f32 %v2955, %v2579
          %v2965 = vmul.f32 %v2955, %v2581
          %v2966 = vmul.f32 %v2955, %v2583
          %v2967 = vmul.f32 %v2955, %v2585
          %v2968 = vmul.f32 %v2955, %v2587
          %v2969 = vmul.f32 %v2955, %v2589
          %v2970 = vmul.f32 %v2955, %v2591
          %v2971 = vmul.f32 %v2955, %v2954
          %v2972 = vadd.f32 %v2937, %v2956
          %v2973 = vadd.f32 %v2938, %v2957
          %v2974 = vadd.f32 %v2939, %v2958
          %v2975 = vadd.f32 %v2940, %v2959
          %v2976 = vadd.f32 %v2941, %v2960
          %v2977 = vadd.f32 %v2942, %v2961
          %v2978 = vadd.f32 %v2943, %v2962
          %v2979 = vadd.f32 %v2944, %v2963
          %v2980 = vadd.f32 %v2945, %v2964
          %v2981 = vadd.f32 %v2946, %v2965
          %v2982 = vadd.f32 %v2947, %v2966
          %v2983 = vadd.f32 %v2948, %v2967
          %v2984 = vadd.f32 %v2949, %v2968
          %v2985 = vadd.f32 %v2950, %v2969
          %v2986 = vadd.f32 %v2951, %v2970
          %v2987 = vadd.f32 %v2952, %v2971
          %2988 = vrot.lane.b32.xlu0 %v2505, 1
          %v2989 = vpop.permute.xlu0 %2988
          %v2990 = vstv %s562
          %v2991 = vmul.f32 %v2990, %v2628
          %v2992 = vmul.f32 %v2990, %v2630
          %v2993 = vmul.f32 %v2990, %v2632
          %v2994 = vmul.f32 %v2990, %v2634
          %v2995 = vmul.f32 %v2990, %v2636
          %v2996 = vmul.f32 %v2990, %v2638
          %v2997 = vmul.f32 %v2990, %v2640
          %v2998 = vmul.f32 %v2990, %v2642
          %v2999 = vmul.f32 %v2990, %v2644
          %v3000 = vmul.f32 %v2990, %v2646
          %v3001 = vmul.f32 %v2990, %v2648
          %v3002 = vmul.f32 %v2990, %v2650
          %v3003 = vmul.f32 %v2990, %v2652
          %v3004 = vmul.f32 %v2990, %v2654
          %v3005 = vmul.f32 %v2990, %v2656
          %v3006 = vmul.f32 %v2990, %v2989
          %v3007 = vadd.f32 %v2972, %v2991
          %v3008 = vadd.f32 %v2973, %v2992
          %v3009 = vadd.f32 %v2974, %v2993
          %v3010 = vadd.f32 %v2975, %v2994
          %v3011 = vadd.f32 %v2976, %v2995
          %v3012 = vadd.f32 %v2977, %v2996
          %v3013 = vadd.f32 %v2978, %v2997
          %v3014 = vadd.f32 %v2979, %v2998
          %v3015 = vadd.f32 %v2980, %v2999
          %v3016 = vadd.f32 %v2981, %v3000
          %v3017 = vadd.f32 %v2982, %v3001
          %v3018 = vadd.f32 %v2983, %v3002
          %v3019 = vadd.f32 %v2984, %v3003
          %v3020 = vadd.f32 %v2985, %v3004
          %v3021 = vadd.f32 %v2986, %v3005
          %v3022 = vadd.f32 %v2987, %v3006
          %v3023 = vstv %s563
          %v3024 = vmul.f32 %v3023, %v2490
          %v3025 = vmul.f32 %v3023, %v2491
          %v3026 = vmul.f32 %v3023, %v2492
          %v3027 = vmul.f32 %v3023, %v2493
          %v3028 = vmul.f32 %v3023, %v2494
          %v3029 = vmul.f32 %v3023, %v2495
          %v3030 = vmul.f32 %v3023, %v2496
          %v3031 = vmul.f32 %v3023, %v2497
          %v3032 = vmul.f32 %v3023, %v2498
          %v3033 = vmul.f32 %v3023, %v2499
          %v3034 = vmul.f32 %v3023, %v2500
          %v3035 = vmul.f32 %v3023, %v2501
          %v3036 = vmul.f32 %v3023, %v2502
          %v3037 = vmul.f32 %v3023, %v2503
          %v3038 = vmul.f32 %v3023, %v2504
          %v3039 = vmul.f32 %v3023, %v2505
          %v3040 = vadd.f32 %v3007, %v3024
          %v3041 = vadd.f32 %v3008, %v3025
          %v3042 = vadd.f32 %v3009, %v3026
          %v3043 = vadd.f32 %v3010, %v3027
          %v3044 = vadd.f32 %v3011, %v3028
          %v3045 = vadd.f32 %v3012, %v3029
          %v3046 = vadd.f32 %v3013, %v3030
          %v3047 = vadd.f32 %v3014, %v3031
          %v3048 = vadd.f32 %v3015, %v3032
          %v3049 = vadd.f32 %v3016, %v3033
          %v3050 = vadd.f32 %v3017, %v3034
          %v3051 = vadd.f32 %v3018, %v3035
          %v3052 = vadd.f32 %v3019, %v3036
          %v3053 = vadd.f32 %v3020, %v3037
          %v3054 = vadd.f32 %v3021, %v3038
          %v3055 = vadd.f32 %v3022, %v3039
          %3056 = vrot.lane.b32.xlu0 %v2505, 127
          %v3057 = vpop.permute.xlu0 %3056
          %v3058 = vstv %s564
          %v3059 = vmul.f32 %v3058, %v2726
          %v3060 = vmul.f32 %v3058, %v2728
          %v3061 = vmul.f32 %v3058, %v2730
          %v3062 = vmul.f32 %v3058, %v2732
          %v3063 = vmul.f32 %v3058, %v2734
          %v3064 = vmul.f32 %v3058, %v2736
          %v3065 = vmul.f32 %v3058, %v2738
          %v3066 = vmul.f32 %v3058, %v2740
          %v3067 = vmul.f32 %v3058, %v2742
          %v3068 = vmul.f32 %v3058, %v2744
          %v3069 = vmul.f32 %v3058, %v2746
          %v3070 = vmul.f32 %v3058, %v2748
          %v3071 = vmul.f32 %v3058, %v2750
          %v3072 = vmul.f32 %v3058, %v2752
          %v3073 = vmul.f32 %v3058, %v2754
          %v3074 = vmul.f32 %v3058, %v3057
          %v3075 = vadd.f32 %v3040, %v3059
          %v3076 = vadd.f32 %v3041, %v3060
          %v3077 = vadd.f32 %v3042, %v3061
          %v3078 = vadd.f32 %v3043, %v3062
          %v3079 = vadd.f32 %v3044, %v3063
          %v3080 = vadd.f32 %v3045, %v3064
          %v3081 = vadd.f32 %v3046, %v3065
          %v3082 = vadd.f32 %v3047, %v3066
          %v3083 = vadd.f32 %v3048, %v3067
          %v3084 = vadd.f32 %v3049, %v3068
          %v3085 = vadd.f32 %v3050, %v3069
          %v3086 = vadd.f32 %v3051, %v3070
          %v3087 = vadd.f32 %v3052, %v3071
          %v3088 = vadd.f32 %v3053, %v3072
          %v3089 = vadd.f32 %v3054, %v3073
          %v3090 = vadd.f32 %v3055, %v3074
          %3091 = vrot.lane.b32.xlu0 %v2505, 126
          %v3092 = vpop.permute.xlu0 %3091
          %v3093 = vstv %s565
          %v3094 = vmul.f32 %v3093, %v2791
          %v3095 = vmul.f32 %v3093, %v2793
          %v3096 = vmul.f32 %v3093, %v2795
          %v3097 = vmul.f32 %v3093, %v2797
          %v3098 = vmul.f32 %v3093, %v2799
          %v3099 = vmul.f32 %v3093, %v2801
          %v3100 = vmul.f32 %v3093, %v2803
          %v3101 = vmul.f32 %v3093, %v2805
          %v3102 = vmul.f32 %v3093, %v2807
          %v3103 = vmul.f32 %v3093, %v2809
          %v3104 = vmul.f32 %v3093, %v2811
          %v3105 = vmul.f32 %v3093, %v2813
          %v3106 = vmul.f32 %v3093, %v2815
          %v3107 = vmul.f32 %v3093, %v2817
          %v3108 = vmul.f32 %v3093, %v2819
          %v3109 = vmul.f32 %v3093, %v3092
          %v3110 = vadd.f32 %v3075, %v3094
          %v3111 = vadd.f32 %v3076, %v3095
          %v3112 = vadd.f32 %v3077, %v3096
          %v3113 = vadd.f32 %v3078, %v3097
          %v3114 = vadd.f32 %v3079, %v3098
          %v3115 = vadd.f32 %v3080, %v3099
          %v3116 = vadd.f32 %v3081, %v3100
          %v3117 = vadd.f32 %v3082, %v3101
          %v3118 = vadd.f32 %v3083, %v3102
          %v3119 = vadd.f32 %v3084, %v3103
          %v3120 = vadd.f32 %v3085, %v3104
          %v3121 = vadd.f32 %v3086, %v3105
          %v3122 = vadd.f32 %v3087, %v3106
          %v3123 = vadd.f32 %v3088, %v3107
          %v3124 = vadd.f32 %v3089, %v3108
          %v3125 = vadd.f32 %v3090, %v3109
          %3126 = vrot.lane.b32.xlu0 %v2505, 125
          %v3127 = vpop.permute.xlu0 %3126
          %v3128 = vstv %s566
          %v3129 = vmul.f32 %v3128, %v2856
          %v3130 = vmul.f32 %v3128, %v2858
          %v3131 = vmul.f32 %v3128, %v2860
          %v3132 = vmul.f32 %v3128, %v2862
          %v3133 = vmul.f32 %v3128, %v2864
          %v3134 = vmul.f32 %v3128, %v2866
          %v3135 = vmul.f32 %v3128, %v2868
          %v3136 = vmul.f32 %v3128, %v2870
          %v3137 = vmul.f32 %v3128, %v2872
          %v3138 = vmul.f32 %v3128, %v2874
          %v3139 = vmul.f32 %v3128, %v2876
          %v3140 = vmul.f32 %v3128, %v2878
          %v3141 = vmul.f32 %v3128, %v2880
          %v3142 = vmul.f32 %v3128, %v2882
          %v3143 = vmul.f32 %v3128, %v2884
          %v3144 = vmul.f32 %v3128, %v3127
          %v3145 = vadd.f32 %v3110, %v3129
          %v3146 = vadd.f32 %v3111, %v3130
          %v3147 = vadd.f32 %v3112, %v3131
          %v3148 = vadd.f32 %v3113, %v3132
          %v3149 = vadd.f32 %v3114, %v3133
          %v3150 = vadd.f32 %v3115, %v3134
          %v3151 = vadd.f32 %v3116, %v3135
          %v3152 = vadd.f32 %v3117, %v3136
          %v3153 = vadd.f32 %v3118, %v3137
          %v3154 = vadd.f32 %v3119, %v3138
          %v3155 = vadd.f32 %v3120, %v3139
          %v3156 = vadd.f32 %v3121, %v3140
          %v3157 = vadd.f32 %v3122, %v3141
          %v3158 = vadd.f32 %v3123, %v3142
          %v3159 = vadd.f32 %v3124, %v3143
          %v3160 = vadd.f32 %v3125, %v3144
          %v3161 = vadd.f32 %v2918, %v3145
          %v3162 = vadd.f32 %v2919, %v3146
          %v3163 = vadd.f32 %v2920, %v3147
          %v3164 = vadd.f32 %v2921, %v3148
          %v3165 = vadd.f32 %v2922, %v3149
          %v3166 = vadd.f32 %v2923, %v3150
          %v3167 = vadd.f32 %v2924, %v3151
          %v3168 = vadd.f32 %v2925, %v3152
          %v3169 = vadd.f32 %v2926, %v3153
          %v3170 = vadd.f32 %v2927, %v3154
          %v3171 = vadd.f32 %v2928, %v3155
          %v3172 = vadd.f32 %v2929, %v3156
          %v3173 = vadd.f32 %v2930, %v3157
          %v3174 = vadd.f32 %v2931, %v3158
          %v3175 = vadd.f32 %v2932, %v3159
          %v3176 = vadd.f32 %v2933, %v3160
          %3177 = vrot.lane.b32.xlu0 %v2506, 3
          %v3178 = vpop.permute.xlu0 %3177
          %v3179 = vstv %s567
          %v3180 = vmul.f32 %v3179, %v2516
          %v3181 = vmul.f32 %v3179, %v2518
          %v3182 = vmul.f32 %v3179, %v2520
          %v3183 = vmul.f32 %v3179, %v2522
          %v3184 = vmul.f32 %v3179, %v2524
          %v3185 = vmul.f32 %v3179, %v2526
          %v3186 = vmul.f32 %v3179, %v2528
          %v3187 = vmul.f32 %v3179, %v2530
          %v3188 = vmul.f32 %v3179, %v2532
          %v3189 = vmul.f32 %v3179, %v2534
          %v3190 = vmul.f32 %v3179, %v2536
          %v3191 = vmul.f32 %v3179, %v2538
          %v3192 = vmul.f32 %v3179, %v2540
          %v3193 = vmul.f32 %v3179, %v2542
          %v3194 = vmul.f32 %v3179, %v2935
          %v3195 = vmul.f32 %v3179, %v3178
          %3196 = vrot.lane.b32.xlu0 %v2506, 2
          %v3197 = vpop.permute.xlu0 %3196
          %v3198 = vstv %s568
          %v3199 = vmul.f32 %v3198, %v2565
          %v3200 = vmul.f32 %v3198, %v2567
          %v3201 = vmul.f32 %v3198, %v2569
          %v3202 = vmul.f32 %v3198, %v2571
          %v3203 = vmul.f32 %v3198, %v2573
          %v3204 = vmul.f32 %v3198, %v2575
          %v3205 = vmul.f32 %v3198, %v2577
          %v3206 = vmul.f32 %v3198, %v2579
          %v3207 = vmul.f32 %v3198, %v2581
          %v3208 = vmul.f32 %v3198, %v2583
          %v3209 = vmul.f32 %v3198, %v2585
          %v3210 = vmul.f32 %v3198, %v2587
          %v3211 = vmul.f32 %v3198, %v2589
          %v3212 = vmul.f32 %v3198, %v2591
          %v3213 = vmul.f32 %v3198, %v2954
          %v3214 = vmul.f32 %v3198, %v3197
          %v3215 = vadd.f32 %v3180, %v3199
          %v3216 = vadd.f32 %v3181, %v3200
          %v3217 = vadd.f32 %v3182, %v3201
          %v3218 = vadd.f32 %v3183, %v3202
          %v3219 = vadd.f32 %v3184, %v3203
          %v3220 = vadd.f32 %v3185, %v3204
          %v3221 = vadd.f32 %v3186, %v3205
          %v3222 = vadd.f32 %v3187, %v3206
          %v3223 = vadd.f32 %v3188, %v3207
          %v3224 = vadd.f32 %v3189, %v3208
          %v3225 = vadd.f32 %v3190, %v3209
          %v3226 = vadd.f32 %v3191, %v3210
          %v3227 = vadd.f32 %v3192, %v3211
          %v3228 = vadd.f32 %v3193, %v3212
          %v3229 = vadd.f32 %v3194, %v3213
          %v3230 = vadd.f32 %v3195, %v3214
          %3231 = vrot.lane.b32.xlu0 %v2506, 1
          %v3232 = vpop.permute.xlu0 %3231
          %v3233 = vstv %s569
          %v3234 = vmul.f32 %v3233, %v2630
          %v3235 = vmul.f32 %v3233, %v2632
          %v3236 = vmul.f32 %v3233, %v2634
          %v3237 = vmul.f32 %v3233, %v2636
          %v3238 = vmul.f32 %v3233, %v2638
          %v3239 = vmul.f32 %v3233, %v2640
          %v3240 = vmul.f32 %v3233, %v2642
          %v3241 = vmul.f32 %v3233, %v2644
          %v3242 = vmul.f32 %v3233, %v2646
          %v3243 = vmul.f32 %v3233, %v2648
          %v3244 = vmul.f32 %v3233, %v2650
          %v3245 = vmul.f32 %v3233, %v2652
          %v3246 = vmul.f32 %v3233, %v2654
          %v3247 = vmul.f32 %v3233, %v2656
          %v3248 = vmul.f32 %v3233, %v2989
          %v3249 = vmul.f32 %v3233, %v3232
          %v3250 = vadd.f32 %v3215, %v3234
          %v3251 = vadd.f32 %v3216, %v3235
          %v3252 = vadd.f32 %v3217, %v3236
          %v3253 = vadd.f32 %v3218, %v3237
          %v3254 = vadd.f32 %v3219, %v3238
          %v3255 = vadd.f32 %v3220, %v3239
          %v3256 = vadd.f32 %v3221, %v3240
          %v3257 = vadd.f32 %v3222, %v3241
          %v3258 = vadd.f32 %v3223, %v3242
          %v3259 = vadd.f32 %v3224, %v3243
          %v3260 = vadd.f32 %v3225, %v3244
          %v3261 = vadd.f32 %v3226, %v3245
          %v3262 = vadd.f32 %v3227, %v3246
          %v3263 = vadd.f32 %v3228, %v3247
          %v3264 = vadd.f32 %v3229, %v3248
          %v3265 = vadd.f32 %v3230, %v3249
          %v3266 = vstv %s570
          %v3267 = vmul.f32 %v3266, %v2491
          %v3268 = vmul.f32 %v3266, %v2492
          %v3269 = vmul.f32 %v3266, %v2493
          %v3270 = vmul.f32 %v3266, %v2494
          %v3271 = vmul.f32 %v3266, %v2495
          %v3272 = vmul.f32 %v3266, %v2496
          %v3273 = vmul.f32 %v3266, %v2497
          %v3274 = vmul.f32 %v3266, %v2498
          %v3275 = vmul.f32 %v3266, %v2499
          %v3276 = vmul.f32 %v3266, %v2500
          %v3277 = vmul.f32 %v3266, %v2501
          %v3278 = vmul.f32 %v3266, %v2502
          %v3279 = vmul.f32 %v3266, %v2503
          %v3280 = vmul.f32 %v3266, %v2504
          %v3281 = vmul.f32 %v3266, %v2505
          %v3282 = vmul.f32 %v3266, %v2506
          %v3283 = vadd.f32 %v3250, %v3267
          %v3284 = vadd.f32 %v3251, %v3268
          %v3285 = vadd.f32 %v3252, %v3269
          %v3286 = vadd.f32 %v3253, %v3270
          %v3287 = vadd.f32 %v3254, %v3271
          %v3288 = vadd.f32 %v3255, %v3272
          %v3289 = vadd.f32 %v3256, %v3273
          %v3290 = vadd.f32 %v3257, %v3274
          %v3291 = vadd.f32 %v3258, %v3275
          %v3292 = vadd.f32 %v3259, %v3276
          %v3293 = vadd.f32 %v3260, %v3277
          %v3294 = vadd.f32 %v3261, %v3278
          %v3295 = vadd.f32 %v3262, %v3279
          %v3296 = vadd.f32 %v3263, %v3280
          %v3297 = vadd.f32 %v3264, %v3281
          %v3298 = vadd.f32 %v3265, %v3282
          %3299 = vrot.lane.b32.xlu0 %v2506, 127
          %v3300 = vpop.permute.xlu0 %3299
          %v3301 = vstv %s571
          %v3302 = vmul.f32 %v3301, %v2728
          %v3303 = vmul.f32 %v3301, %v2730
          %v3304 = vmul.f32 %v3301, %v2732
          %v3305 = vmul.f32 %v3301, %v2734
          %v3306 = vmul.f32 %v3301, %v2736
          %v3307 = vmul.f32 %v3301, %v2738
          %v3308 = vmul.f32 %v3301, %v2740
          %v3309 = vmul.f32 %v3301, %v2742
          %v3310 = vmul.f32 %v3301, %v2744
          %v3311 = vmul.f32 %v3301, %v2746
          %v3312 = vmul.f32 %v3301, %v2748
          %v3313 = vmul.f32 %v3301, %v2750
          %v3314 = vmul.f32 %v3301, %v2752
          %v3315 = vmul.f32 %v3301, %v2754
          %v3316 = vmul.f32 %v3301, %v3057
          %v3317 = vmul.f32 %v3301, %v3300
          %v3318 = vadd.f32 %v3283, %v3302
          %v3319 = vadd.f32 %v3284, %v3303
          %v3320 = vadd.f32 %v3285, %v3304
          %v3321 = vadd.f32 %v3286, %v3305
          %v3322 = vadd.f32 %v3287, %v3306
          %v3323 = vadd.f32 %v3288, %v3307
          %v3324 = vadd.f32 %v3289, %v3308
          %v3325 = vadd.f32 %v3290, %v3309
          %v3326 = vadd.f32 %v3291, %v3310
          %v3327 = vadd.f32 %v3292, %v3311
          %v3328 = vadd.f32 %v3293, %v3312
          %v3329 = vadd.f32 %v3294, %v3313
          %v3330 = vadd.f32 %v3295, %v3314
          %v3331 = vadd.f32 %v3296, %v3315
          %v3332 = vadd.f32 %v3297, %v3316
          %v3333 = vadd.f32 %v3298, %v3317
          %3334 = vrot.lane.b32.xlu0 %v2506, 126
          %v3335 = vpop.permute.xlu0 %3334
          %v3336 = vstv %s572
          %v3337 = vmul.f32 %v3336, %v2793
          %v3338 = vmul.f32 %v3336, %v2795
          %v3339 = vmul.f32 %v3336, %v2797
          %v3340 = vmul.f32 %v3336, %v2799
          %v3341 = vmul.f32 %v3336, %v2801
          %v3342 = vmul.f32 %v3336, %v2803
          %v3343 = vmul.f32 %v3336, %v2805
          %v3344 = vmul.f32 %v3336, %v2807
          %v3345 = vmul.f32 %v3336, %v2809
          %v3346 = vmul.f32 %v3336, %v2811
          %v3347 = vmul.f32 %v3336, %v2813
          %v3348 = vmul.f32 %v3336, %v2815
          %v3349 = vmul.f32 %v3336, %v2817
          %v3350 = vmul.f32 %v3336, %v2819
          %v3351 = vmul.f32 %v3336, %v3092
          %v3352 = vmul.f32 %v3336, %v3335
          %v3353 = vadd.f32 %v3318, %v3337
          %v3354 = vadd.f32 %v3319, %v3338
          %v3355 = vadd.f32 %v3320, %v3339
          %v3356 = vadd.f32 %v3321, %v3340
          %v3357 = vadd.f32 %v3322, %v3341
          %v3358 = vadd.f32 %v3323, %v3342
          %v3359 = vadd.f32 %v3324, %v3343
          %v3360 = vadd.f32 %v3325, %v3344
          %v3361 = vadd.f32 %v3326, %v3345
          %v3362 = vadd.f32 %v3327, %v3346
          %v3363 = vadd.f32 %v3328, %v3347
          %v3364 = vadd.f32 %v3329, %v3348
          %v3365 = vadd.f32 %v3330, %v3349
          %v3366 = vadd.f32 %v3331, %v3350
          %v3367 = vadd.f32 %v3332, %v3351
          %v3368 = vadd.f32 %v3333, %v3352
          %3369 = vrot.lane.b32.xlu0 %v2506, 125
          %v3370 = vpop.permute.xlu0 %3369
          %v3371 = vstv %s573
          %v3372 = vmul.f32 %v3371, %v2858
          %v3373 = vmul.f32 %v3371, %v2860
          %v3374 = vmul.f32 %v3371, %v2862
          %v3375 = vmul.f32 %v3371, %v2864
          %v3376 = vmul.f32 %v3371, %v2866
          %v3377 = vmul.f32 %v3371, %v2868
          %v3378 = vmul.f32 %v3371, %v2870
          %v3379 = vmul.f32 %v3371, %v2872
          %v3380 = vmul.f32 %v3371, %v2874
          %v3381 = vmul.f32 %v3371, %v2876
          %v3382 = vmul.f32 %v3371, %v2878
          %v3383 = vmul.f32 %v3371, %v2880
          %v3384 = vmul.f32 %v3371, %v2882
          %v3385 = vmul.f32 %v3371, %v2884
          %v3386 = vmul.f32 %v3371, %v3127
          %v3387 = vmul.f32 %v3371, %v3370
          %v3388 = vadd.f32 %v3353, %v3372
          %v3389 = vadd.f32 %v3354, %v3373
          %v3390 = vadd.f32 %v3355, %v3374
          %v3391 = vadd.f32 %v3356, %v3375
          %v3392 = vadd.f32 %v3357, %v3376
          %v3393 = vadd.f32 %v3358, %v3377
          %v3394 = vadd.f32 %v3359, %v3378
          %v3395 = vadd.f32 %v3360, %v3379
          %v3396 = vadd.f32 %v3361, %v3380
          %v3397 = vadd.f32 %v3362, %v3381
          %v3398 = vadd.f32 %v3363, %v3382
          %v3399 = vadd.f32 %v3364, %v3383
          %v3400 = vadd.f32 %v3365, %v3384
          %v3401 = vadd.f32 %v3366, %v3385
          %v3402 = vadd.f32 %v3367, %v3386
          %v3403 = vadd.f32 %v3368, %v3387
          %v3404 = vadd.f32 %v3161, %v3388
          %v3405 = vadd.f32 %v3162, %v3389
          %v3406 = vadd.f32 %v3163, %v3390
          %v3407 = vadd.f32 %v3164, %v3391
          %v3408 = vadd.f32 %v3165, %v3392
          %v3409 = vadd.f32 %v3166, %v3393
          %v3410 = vadd.f32 %v3167, %v3394
          %v3411 = vadd.f32 %v3168, %v3395
          %v3412 = vadd.f32 %v3169, %v3396
          %v3413 = vadd.f32 %v3170, %v3397
          %v3414 = vadd.f32 %v3171, %v3398
          %v3415 = vadd.f32 %v3172, %v3399
          %v3416 = vadd.f32 %v3173, %v3400
          %v3417 = vadd.f32 %v3174, %v3401
          %v3418 = vadd.f32 %v3175, %v3402
          %v3419 = vadd.f32 %v3176, %v3403
          %3420 = vrot.lane.b32.xlu0 %v2507, 3
          %v3421 = vpop.permute.xlu0 %3420
          %v3422 = vstv %s574
          %v3423 = vmul.f32 %v3422, %v2518
          %v3424 = vmul.f32 %v3422, %v2520
          %v3425 = vmul.f32 %v3422, %v2522
          %v3426 = vmul.f32 %v3422, %v2524
          %v3427 = vmul.f32 %v3422, %v2526
          %v3428 = vmul.f32 %v3422, %v2528
          %v3429 = vmul.f32 %v3422, %v2530
          %v3430 = vmul.f32 %v3422, %v2532
          %v3431 = vmul.f32 %v3422, %v2534
          %v3432 = vmul.f32 %v3422, %v2536
          %v3433 = vmul.f32 %v3422, %v2538
          %v3434 = vmul.f32 %v3422, %v2540
          %v3435 = vmul.f32 %v3422, %v2542
          %v3436 = vmul.f32 %v3422, %v2935
          %v3437 = vmul.f32 %v3422, %v3178
          %v3438 = vmul.f32 %v3422, %v3421
          %3439 = vrot.lane.b32.xlu0 %v2507, 2
          %v3440 = vpop.permute.xlu0 %3439
          %v3441 = vstv %s575
          %v3442 = vmul.f32 %v3441, %v2567
          %v3443 = vmul.f32 %v3441, %v2569
          %v3444 = vmul.f32 %v3441, %v2571
          %v3445 = vmul.f32 %v3441, %v2573
          %v3446 = vmul.f32 %v3441, %v2575
          %v3447 = vmul.f32 %v3441, %v2577
          %v3448 = vmul.f32 %v3441, %v2579
          %v3449 = vmul.f32 %v3441, %v2581
          %v3450 = vmul.f32 %v3441, %v2583
          %v3451 = vmul.f32 %v3441, %v2585
          %v3452 = vmul.f32 %v3441, %v2587
          %v3453 = vmul.f32 %v3441, %v2589
          %v3454 = vmul.f32 %v3441, %v2591
          %v3455 = vmul.f32 %v3441, %v2954
          %v3456 = vmul.f32 %v3441, %v3197
          %v3457 = vmul.f32 %v3441, %v3440
          %v3458 = vadd.f32 %v3423, %v3442
          %v3459 = vadd.f32 %v3424, %v3443
          %v3460 = vadd.f32 %v3425, %v3444
          %v3461 = vadd.f32 %v3426, %v3445
          %v3462 = vadd.f32 %v3427, %v3446
          %v3463 = vadd.f32 %v3428, %v3447
          %v3464 = vadd.f32 %v3429, %v3448
          %v3465 = vadd.f32 %v3430, %v3449
          %v3466 = vadd.f32 %v3431, %v3450
          %v3467 = vadd.f32 %v3432, %v3451
          %v3468 = vadd.f32 %v3433, %v3452
          %v3469 = vadd.f32 %v3434, %v3453
          %v3470 = vadd.f32 %v3435, %v3454
          %v3471 = vadd.f32 %v3436, %v3455
          %v3472 = vadd.f32 %v3437, %v3456
          %v3473 = vadd.f32 %v3438, %v3457
          %3474 = vrot.lane.b32.xlu0 %v2507, 1
          %v3475 = vpop.permute.xlu0 %3474
          %v3476 = vstv %s576
          %v3477 = vmul.f32 %v3476, %v2632
          %v3478 = vmul.f32 %v3476, %v2634
          %v3479 = vmul.f32 %v3476, %v2636
          %v3480 = vmul.f32 %v3476, %v2638
          %v3481 = vmul.f32 %v3476, %v2640
          %v3482 = vmul.f32 %v3476, %v2642
          %v3483 = vmul.f32 %v3476, %v2644
          %v3484 = vmul.f32 %v3476, %v2646
          %v3485 = vmul.f32 %v3476, %v2648
          %v3486 = vmul.f32 %v3476, %v2650
          %v3487 = vmul.f32 %v3476, %v2652
          %v3488 = vmul.f32 %v3476, %v2654
          %v3489 = vmul.f32 %v3476, %v2656
          %v3490 = vmul.f32 %v3476, %v2989
          %v3491 = vmul.f32 %v3476, %v3232
          %v3492 = vmul.f32 %v3476, %v3475
          %v3493 = vadd.f32 %v3458, %v3477
          %v3494 = vadd.f32 %v3459, %v3478
          %v3495 = vadd.f32 %v3460, %v3479
          %v3496 = vadd.f32 %v3461, %v3480
          %v3497 = vadd.f32 %v3462, %v3481
          %v3498 = vadd.f32 %v3463, %v3482
          %v3499 = vadd.f32 %v3464, %v3483
          %v3500 = vadd.f32 %v3465, %v3484
          %v3501 = vadd.f32 %v3466, %v3485
          %v3502 = vadd.f32 %v3467, %v3486
          %v3503 = vadd.f32 %v3468, %v3487
          %v3504 = vadd.f32 %v3469, %v3488
          %v3505 = vadd.f32 %v3470, %v3489
          %v3506 = vadd.f32 %v3471, %v3490
          %v3507 = vadd.f32 %v3472, %v3491
          %v3508 = vadd.f32 %v3473, %v3492
          %v3509 = vstv %s577
          %v3510 = vmul.f32 %v3509, %v2492
          %v3511 = vmul.f32 %v3509, %v2493
          %v3512 = vmul.f32 %v3509, %v2494
          %v3513 = vmul.f32 %v3509, %v2495
          %v3514 = vmul.f32 %v3509, %v2496
          %v3515 = vmul.f32 %v3509, %v2497
          %v3516 = vmul.f32 %v3509, %v2498
          %v3517 = vmul.f32 %v3509, %v2499
          %v3518 = vmul.f32 %v3509, %v2500
          %v3519 = vmul.f32 %v3509, %v2501
          %v3520 = vmul.f32 %v3509, %v2502
          %v3521 = vmul.f32 %v3509, %v2503
          %v3522 = vmul.f32 %v3509, %v2504
          %v3523 = vmul.f32 %v3509, %v2505
          %v3524 = vmul.f32 %v3509, %v2506
          %v3525 = vmul.f32 %v3509, %v2507
          %v3526 = vadd.f32 %v3493, %v3510
          %v3527 = vadd.f32 %v3494, %v3511
          %v3528 = vadd.f32 %v3495, %v3512
          %v3529 = vadd.f32 %v3496, %v3513
          %v3530 = vadd.f32 %v3497, %v3514
          %v3531 = vadd.f32 %v3498, %v3515
          %v3532 = vadd.f32 %v3499, %v3516
          %v3533 = vadd.f32 %v3500, %v3517
          %v3534 = vadd.f32 %v3501, %v3518
          %v3535 = vadd.f32 %v3502, %v3519
          %v3536 = vadd.f32 %v3503, %v3520
          %v3537 = vadd.f32 %v3504, %v3521
          %v3538 = vadd.f32 %v3505, %v3522
          %v3539 = vadd.f32 %v3506, %v3523
          %v3540 = vadd.f32 %v3507, %v3524
          %v3541 = vadd.f32 %v3508, %v3525
          %3542 = vrot.lane.b32.xlu0 %v2507, 127
          %v3543 = vpop.permute.xlu0 %3542
          %v3544 = vstv %s578
          %v3545 = vmul.f32 %v3544, %v2730
          %v3546 = vmul.f32 %v3544, %v2732
          %v3547 = vmul.f32 %v3544, %v2734
          %v3548 = vmul.f32 %v3544, %v2736
          %v3549 = vmul.f32 %v3544, %v2738
          %v3550 = vmul.f32 %v3544, %v2740
          %v3551 = vmul.f32 %v3544, %v2742
          %v3552 = vmul.f32 %v3544, %v2744
          %v3553 = vmul.f32 %v3544, %v2746
          %v3554 = vmul.f32 %v3544, %v2748
          %v3555 = vmul.f32 %v3544, %v2750
          %v3556 = vmul.f32 %v3544, %v2752
          %v3557 = vmul.f32 %v3544, %v2754
          %v3558 = vmul.f32 %v3544, %v3057
          %v3559 = vmul.f32 %v3544, %v3300
          %v3560 = vmul.f32 %v3544, %v3543
          %v3561 = vadd.f32 %v3526, %v3545
          %v3562 = vadd.f32 %v3527, %v3546
          %v3563 = vadd.f32 %v3528, %v3547
          %v3564 = vadd.f32 %v3529, %v3548
          %v3565 = vadd.f32 %v3530, %v3549
          %v3566 = vadd.f32 %v3531, %v3550
          %v3567 = vadd.f32 %v3532, %v3551
          %v3568 = vadd.f32 %v3533, %v3552
          %v3569 = vadd.f32 %v3534, %v3553
          %v3570 = vadd.f32 %v3535, %v3554
          %v3571 = vadd.f32 %v3536, %v3555
          %v3572 = vadd.f32 %v3537, %v3556
          %v3573 = vadd.f32 %v3538, %v3557
          %v3574 = vadd.f32 %v3539, %v3558
          %v3575 = vadd.f32 %v3540, %v3559
          %v3576 = vadd.f32 %v3541, %v3560
          %3577 = vrot.lane.b32.xlu0 %v2507, 126
          %v3578 = vpop.permute.xlu0 %3577
          %v3579 = vstv %s579
          %v3580 = vmul.f32 %v3579, %v2795
          %v3581 = vmul.f32 %v3579, %v2797
          %v3582 = vmul.f32 %v3579, %v2799
          %v3583 = vmul.f32 %v3579, %v2801
          %v3584 = vmul.f32 %v3579, %v2803
          %v3585 = vmul.f32 %v3579, %v2805
          %v3586 = vmul.f32 %v3579, %v2807
          %v3587 = vmul.f32 %v3579, %v2809
          %v3588 = vmul.f32 %v3579, %v2811
          %v3589 = vmul.f32 %v3579, %v2813
          %v3590 = vmul.f32 %v3579, %v2815
          %v3591 = vmul.f32 %v3579, %v2817
          %v3592 = vmul.f32 %v3579, %v2819
          %v3593 = vmul.f32 %v3579, %v3092
          %v3594 = vmul.f32 %v3579, %v3335
          %v3595 = vmul.f32 %v3579, %v3578
          %v3596 = vadd.f32 %v3561, %v3580
          %v3597 = vadd.f32 %v3562, %v3581
          %v3598 = vadd.f32 %v3563, %v3582
          %v3599 = vadd.f32 %v3564, %v3583
          %v3600 = vadd.f32 %v3565, %v3584
          %v3601 = vadd.f32 %v3566, %v3585
          %v3602 = vadd.f32 %v3567, %v3586
          %v3603 = vadd.f32 %v3568, %v3587
          %v3604 = vadd.f32 %v3569, %v3588
          %v3605 = vadd.f32 %v3570, %v3589
          %v3606 = vadd.f32 %v3571, %v3590
          %v3607 = vadd.f32 %v3572, %v3591
          %v3608 = vadd.f32 %v3573, %v3592
          %v3609 = vadd.f32 %v3574, %v3593
          %v3610 = vadd.f32 %v3575, %v3594
          %v3611 = vadd.f32 %v3576, %v3595
          %3612 = vrot.lane.b32.xlu0 %v2507, 125
          %v3613 = vpop.permute.xlu0 %3612
          %v3614 = vstv %s580
          %v3615 = vmul.f32 %v3614, %v2860
          %v3616 = vmul.f32 %v3614, %v2862
          %v3617 = vmul.f32 %v3614, %v2864
          %v3618 = vmul.f32 %v3614, %v2866
          %v3619 = vmul.f32 %v3614, %v2868
          %v3620 = vmul.f32 %v3614, %v2870
          %v3621 = vmul.f32 %v3614, %v2872
          %v3622 = vmul.f32 %v3614, %v2874
          %v3623 = vmul.f32 %v3614, %v2876
          %v3624 = vmul.f32 %v3614, %v2878
          %v3625 = vmul.f32 %v3614, %v2880
          %v3626 = vmul.f32 %v3614, %v2882
          %v3627 = vmul.f32 %v3614, %v2884
          %v3628 = vmul.f32 %v3614, %v3127
          %v3629 = vmul.f32 %v3614, %v3370
          %v3630 = vmul.f32 %v3614, %v3613
          %v3631 = vadd.f32 %v3596, %v3615
          %v3632 = vadd.f32 %v3597, %v3616
          %v3633 = vadd.f32 %v3598, %v3617
          %v3634 = vadd.f32 %v3599, %v3618
          %v3635 = vadd.f32 %v3600, %v3619
          %v3636 = vadd.f32 %v3601, %v3620
          %v3637 = vadd.f32 %v3602, %v3621
          %v3638 = vadd.f32 %v3603, %v3622
          %v3639 = vadd.f32 %v3604, %v3623
          %v3640 = vadd.f32 %v3605, %v3624
          %v3641 = vadd.f32 %v3606, %v3625
          %v3642 = vadd.f32 %v3607, %v3626
          %v3643 = vadd.f32 %v3608, %v3627
          %v3644 = vadd.f32 %v3609, %v3628
          %v3645 = vadd.f32 %v3610, %v3629
          %v3646 = vadd.f32 %v3611, %v3630
          %v3647 = vadd.f32 %v3404, %v3631
          %v3648 = vadd.f32 %v3405, %v3632
          %v3649 = vadd.f32 %v3406, %v3633
          %v3650 = vadd.f32 %v3407, %v3634
          %v3651 = vadd.f32 %v3408, %v3635
          %v3652 = vadd.f32 %v3409, %v3636
          %v3653 = vadd.f32 %v3410, %v3637
          %v3654 = vadd.f32 %v3411, %v3638
          %v3655 = vadd.f32 %v3412, %v3639
          %v3656 = vadd.f32 %v3413, %v3640
          %v3657 = vadd.f32 %v3414, %v3641
          %v3658 = vadd.f32 %v3415, %v3642
          %v3659 = vadd.f32 %v3416, %v3643
          %v3660 = vadd.f32 %v3417, %v3644
          %v3661 = vadd.f32 %v3418, %v3645
          %v3662 = vadd.f32 %v3419, %v3646
          %3663 = vrot.lane.b32.xlu0 %v2508, 3
          %v3664 = vpop.permute.xlu0 %3663
          %v3665 = vstv %s581
          %v3666 = vmul.f32 %v3665, %v2520
          %v3667 = vmul.f32 %v3665, %v2522
          %v3668 = vmul.f32 %v3665, %v2524
          %v3669 = vmul.f32 %v3665, %v2526
          %v3670 = vmul.f32 %v3665, %v2528
          %v3671 = vmul.f32 %v3665, %v2530
          %v3672 = vmul.f32 %v3665, %v2532
          %v3673 = vmul.f32 %v3665, %v2534
          %v3674 = vmul.f32 %v3665, %v2536
          %v3675 = vmul.f32 %v3665, %v2538
          %v3676 = vmul.f32 %v3665, %v2540
          %v3677 = vmul.f32 %v3665, %v2542
          %v3678 = vmul.f32 %v3665, %v2935
          %v3679 = vmul.f32 %v3665, %v3178
          %v3680 = vmul.f32 %v3665, %v3421
          %v3681 = vmul.f32 %v3665, %v3664
          %3682 = vrot.lane.b32.xlu0 %v2508, 2
          %v3683 = vpop.permute.xlu0 %3682
          %v3684 = vstv %s582
          %v3685 = vmul.f32 %v3684, %v2569
          %v3686 = vmul.f32 %v3684, %v2571
          %v3687 = vmul.f32 %v3684, %v2573
          %v3688 = vmul.f32 %v3684, %v2575
          %v3689 = vmul.f32 %v3684, %v2577
          %v3690 = vmul.f32 %v3684, %v2579
          %v3691 = vmul.f32 %v3684, %v2581
          %v3692 = vmul.f32 %v3684, %v2583
          %v3693 = vmul.f32 %v3684, %v2585
          %v3694 = vmul.f32 %v3684, %v2587
          %v3695 = vmul.f32 %v3684, %v2589
          %v3696 = vmul.f32 %v3684, %v2591
          %v3697 = vmul.f32 %v3684, %v2954
          %v3698 = vmul.f32 %v3684, %v3197
          %v3699 = vmul.f32 %v3684, %v3440
          %v3700 = vmul.f32 %v3684, %v3683
          %v3701 = vadd.f32 %v3666, %v3685
          %v3702 = vadd.f32 %v3667, %v3686
          %v3703 = vadd.f32 %v3668, %v3687
          %v3704 = vadd.f32 %v3669, %v3688
          %v3705 = vadd.f32 %v3670, %v3689
          %v3706 = vadd.f32 %v3671, %v3690
          %v3707 = vadd.f32 %v3672, %v3691
          %v3708 = vadd.f32 %v3673, %v3692
          %v3709 = vadd.f32 %v3674, %v3693
          %v3710 = vadd.f32 %v3675, %v3694
          %v3711 = vadd.f32 %v3676, %v3695
          %v3712 = vadd.f32 %v3677, %v3696
          %v3713 = vadd.f32 %v3678, %v3697
          %v3714 = vadd.f32 %v3679, %v3698
          %v3715 = vadd.f32 %v3680, %v3699
          %v3716 = vadd.f32 %v3681, %v3700
          %3717 = vrot.lane.b32.xlu0 %v2508, 1
          %v3718 = vpop.permute.xlu0 %3717
          %v3719 = vstv %s583
          %v3720 = vmul.f32 %v3719, %v2634
          %v3721 = vmul.f32 %v3719, %v2636
          %v3722 = vmul.f32 %v3719, %v2638
          %v3723 = vmul.f32 %v3719, %v2640
          %v3724 = vmul.f32 %v3719, %v2642
          %v3725 = vmul.f32 %v3719, %v2644
          %v3726 = vmul.f32 %v3719, %v2646
          %v3727 = vmul.f32 %v3719, %v2648
          %v3728 = vmul.f32 %v3719, %v2650
          %v3729 = vmul.f32 %v3719, %v2652
          %v3730 = vmul.f32 %v3719, %v2654
          %v3731 = vmul.f32 %v3719, %v2656
          %v3732 = vmul.f32 %v3719, %v2989
          %v3733 = vmul.f32 %v3719, %v3232
          %v3734 = vmul.f32 %v3719, %v3475
          %v3735 = vmul.f32 %v3719, %v3718
          %v3736 = vadd.f32 %v3701, %v3720
          %v3737 = vadd.f32 %v3702, %v3721
          %v3738 = vadd.f32 %v3703, %v3722
          %v3739 = vadd.f32 %v3704, %v3723
          %v3740 = vadd.f32 %v3705, %v3724
          %v3741 = vadd.f32 %v3706, %v3725
          %v3742 = vadd.f32 %v3707, %v3726
          %v3743 = vadd.f32 %v3708, %v3727
          %v3744 = vadd.f32 %v3709, %v3728
          %v3745 = vadd.f32 %v3710, %v3729
          %v3746 = vadd.f32 %v3711, %v3730
          %v3747 = vadd.f32 %v3712, %v3731
          %v3748 = vadd.f32 %v3713, %v3732
          %v3749 = vadd.f32 %v3714, %v3733
          %v3750 = vadd.f32 %v3715, %v3734
          %v3751 = vadd.f32 %v3716, %v3735
          %v3752 = vstv %s584
          %v3753 = vmul.f32 %v3752, %v2493
          %v3754 = vmul.f32 %v3752, %v2494
          %v3755 = vmul.f32 %v3752, %v2495
          %v3756 = vmul.f32 %v3752, %v2496
          %v3757 = vmul.f32 %v3752, %v2497
          %v3758 = vmul.f32 %v3752, %v2498
          %v3759 = vmul.f32 %v3752, %v2499
          %v3760 = vmul.f32 %v3752, %v2500
          %v3761 = vmul.f32 %v3752, %v2501
          %v3762 = vmul.f32 %v3752, %v2502
          %v3763 = vmul.f32 %v3752, %v2503
          %v3764 = vmul.f32 %v3752, %v2504
          %v3765 = vmul.f32 %v3752, %v2505
          %v3766 = vmul.f32 %v3752, %v2506
          %v3767 = vmul.f32 %v3752, %v2507
          %v3768 = vmul.f32 %v3752, %v2508
          %v3769 = vadd.f32 %v3736, %v3753
          %v3770 = vadd.f32 %v3737, %v3754
          %v3771 = vadd.f32 %v3738, %v3755
          %v3772 = vadd.f32 %v3739, %v3756
          %v3773 = vadd.f32 %v3740, %v3757
          %v3774 = vadd.f32 %v3741, %v3758
          %v3775 = vadd.f32 %v3742, %v3759
          %v3776 = vadd.f32 %v3743, %v3760
          %v3777 = vadd.f32 %v3744, %v3761
          %v3778 = vadd.f32 %v3745, %v3762
          %v3779 = vadd.f32 %v3746, %v3763
          %v3780 = vadd.f32 %v3747, %v3764
          %v3781 = vadd.f32 %v3748, %v3765
          %v3782 = vadd.f32 %v3749, %v3766
          %v3783 = vadd.f32 %v3750, %v3767
          %v3784 = vadd.f32 %v3751, %v3768
          %3785 = vrot.lane.b32.xlu0 %v2508, 127
          %v3786 = vpop.permute.xlu0 %3785
          %v3787 = vstv %s585
          %v3788 = vmul.f32 %v3787, %v2732
          %v3789 = vmul.f32 %v3787, %v2734
          %v3790 = vmul.f32 %v3787, %v2736
          %v3791 = vmul.f32 %v3787, %v2738
          %v3792 = vmul.f32 %v3787, %v2740
          %v3793 = vmul.f32 %v3787, %v2742
          %v3794 = vmul.f32 %v3787, %v2744
          %v3795 = vmul.f32 %v3787, %v2746
          %v3796 = vmul.f32 %v3787, %v2748
          %v3797 = vmul.f32 %v3787, %v2750
          %v3798 = vmul.f32 %v3787, %v2752
          %v3799 = vmul.f32 %v3787, %v2754
          %v3800 = vmul.f32 %v3787, %v3057
          %v3801 = vmul.f32 %v3787, %v3300
          %v3802 = vmul.f32 %v3787, %v3543
          %v3803 = vmul.f32 %v3787, %v3786
          %v3804 = vadd.f32 %v3769, %v3788
          %v3805 = vadd.f32 %v3770, %v3789
          %v3806 = vadd.f32 %v3771, %v3790
          %v3807 = vadd.f32 %v3772, %v3791
          %v3808 = vadd.f32 %v3773, %v3792
          %v3809 = vadd.f32 %v3774, %v3793
          %v3810 = vadd.f32 %v3775, %v3794
          %v3811 = vadd.f32 %v3776, %v3795
          %v3812 = vadd.f32 %v3777, %v3796
          %v3813 = vadd.f32 %v3778, %v3797
          %v3814 = vadd.f32 %v3779, %v3798
          %v3815 = vadd.f32 %v3780, %v3799
          %v3816 = vadd.f32 %v3781, %v3800
          %v3817 = vadd.f32 %v3782, %v3801
          %v3818 = vadd.f32 %v3783, %v3802
          %v3819 = vadd.f32 %v3784, %v3803
          %3820 = vrot.lane.b32.xlu0 %v2508, 126
          %v3821 = vpop.permute.xlu0 %3820
          %v3822 = vstv %s586
          %v3823 = vmul.f32 %v3822, %v2797
          %v3824 = vmul.f32 %v3822, %v2799
          %v3825 = vmul.f32 %v3822, %v2801
          %v3826 = vmul.f32 %v3822, %v2803
          %v3827 = vmul.f32 %v3822, %v2805
          %v3828 = vmul.f32 %v3822, %v2807
          %v3829 = vmul.f32 %v3822, %v2809
          %v3830 = vmul.f32 %v3822, %v2811
          %v3831 = vmul.f32 %v3822, %v2813
          %v3832 = vmul.f32 %v3822, %v2815
          %v3833 = vmul.f32 %v3822, %v2817
          %v3834 = vmul.f32 %v3822, %v2819
          %v3835 = vmul.f32 %v3822, %v3092
          %v3836 = vmul.f32 %v3822, %v3335
          %v3837 = vmul.f32 %v3822, %v3578
          %v3838 = vmul.f32 %v3822, %v3821
          %v3839 = vadd.f32 %v3804, %v3823
          %v3840 = vadd.f32 %v3805, %v3824
          %v3841 = vadd.f32 %v3806, %v3825
          %v3842 = vadd.f32 %v3807, %v3826
          %v3843 = vadd.f32 %v3808, %v3827
          %v3844 = vadd.f32 %v3809, %v3828
          %v3845 = vadd.f32 %v3810, %v3829
          %v3846 = vadd.f32 %v3811, %v3830
          %v3847 = vadd.f32 %v3812, %v3831
          %v3848 = vadd.f32 %v3813, %v3832
          %v3849 = vadd.f32 %v3814, %v3833
          %v3850 = vadd.f32 %v3815, %v3834
          %v3851 = vadd.f32 %v3816, %v3835
          %v3852 = vadd.f32 %v3817, %v3836
          %v3853 = vadd.f32 %v3818, %v3837
          %v3854 = vadd.f32 %v3819, %v3838
          %3855 = vrot.lane.b32.xlu0 %v2508, 125
          %v3856 = vpop.permute.xlu0 %3855
          %v3857 = vstv %s587
          %v3858 = vmul.f32 %v3857, %v2862
          %v3859 = vmul.f32 %v3857, %v2864
          %v3860 = vmul.f32 %v3857, %v2866
          %v3861 = vmul.f32 %v3857, %v2868
          %v3862 = vmul.f32 %v3857, %v2870
          %v3863 = vmul.f32 %v3857, %v2872
          %v3864 = vmul.f32 %v3857, %v2874
          %v3865 = vmul.f32 %v3857, %v2876
          %v3866 = vmul.f32 %v3857, %v2878
          %v3867 = vmul.f32 %v3857, %v2880
          %v3868 = vmul.f32 %v3857, %v2882
          %v3869 = vmul.f32 %v3857, %v2884
          %v3870 = vmul.f32 %v3857, %v3127
          %v3871 = vmul.f32 %v3857, %v3370
          %v3872 = vmul.f32 %v3857, %v3613
          %v3873 = vmul.f32 %v3857, %v3856
          %v3874 = vadd.f32 %v3839, %v3858
          %v3875 = vadd.f32 %v3840, %v3859
          %v3876 = vadd.f32 %v3841, %v3860
          %v3877 = vadd.f32 %v3842, %v3861
          %v3878 = vadd.f32 %v3843, %v3862
          %v3879 = vadd.f32 %v3844, %v3863
          %v3880 = vadd.f32 %v3845, %v3864
          %v3881 = vadd.f32 %v3846, %v3865
          %v3882 = vadd.f32 %v3847, %v3866
          %v3883 = vadd.f32 %v3848, %v3867
          %v3884 = vadd.f32 %v3849, %v3868
          %v3885 = vadd.f32 %v3850, %v3869
          %v3886 = vadd.f32 %v3851, %v3870
          %v3887 = vadd.f32 %v3852, %v3871
          %v3888 = vadd.f32 %v3853, %v3872
          %v3889 = vadd.f32 %v3854, %v3873
          %v3890 = vadd.f32 %v3647, %v3874
          %v3891 = vadd.f32 %v3648, %v3875
          %v3892 = vadd.f32 %v3649, %v3876
          %v3893 = vadd.f32 %v3650, %v3877
          %v3894 = vadd.f32 %v3651, %v3878
          %v3895 = vadd.f32 %v3652, %v3879
          %v3896 = vadd.f32 %v3653, %v3880
          %v3897 = vadd.f32 %v3654, %v3881
          %v3898 = vadd.f32 %v3655, %v3882
          %v3899 = vadd.f32 %v3656, %v3883
          %v3900 = vadd.f32 %v3657, %v3884
          %v3901 = vadd.f32 %v3658, %v3885
          %v3902 = vadd.f32 %v3659, %v3886
          %v3903 = vadd.f32 %v3660, %v3887
          %v3904 = vadd.f32 %v3661, %v3888
          %v3905 = vadd.f32 %v3662, %v3889
          %3906 = vrot.lane.b32.xlu0 %v2509, 3
          %v3907 = vpop.permute.xlu0 %3906
          %v3908 = vstv %s588
          %v3909 = vmul.f32 %v3908, %v2522
          %v3910 = vmul.f32 %v3908, %v2524
          %v3911 = vmul.f32 %v3908, %v2526
          %v3912 = vmul.f32 %v3908, %v2528
          %v3913 = vmul.f32 %v3908, %v2530
          %v3914 = vmul.f32 %v3908, %v2532
          %v3915 = vmul.f32 %v3908, %v2534
          %v3916 = vmul.f32 %v3908, %v2536
          %v3917 = vmul.f32 %v3908, %v2538
          %v3918 = vmul.f32 %v3908, %v2540
          %v3919 = vmul.f32 %v3908, %v2542
          %v3920 = vmul.f32 %v3908, %v2935
          %v3921 = vmul.f32 %v3908, %v3178
          %v3922 = vmul.f32 %v3908, %v3421
          %v3923 = vmul.f32 %v3908, %v3664
          %v3924 = vmul.f32 %v3908, %v3907
          %3925 = vrot.lane.b32.xlu0 %v2509, 2
          %v3926 = vpop.permute.xlu0 %3925
          %v3927 = vstv %s589
          %v3928 = vmul.f32 %v3927, %v2571
          %v3929 = vmul.f32 %v3927, %v2573
          %v3930 = vmul.f32 %v3927, %v2575
          %v3931 = vmul.f32 %v3927, %v2577
          %v3932 = vmul.f32 %v3927, %v2579
          %v3933 = vmul.f32 %v3927, %v2581
          %v3934 = vmul.f32 %v3927, %v2583
          %v3935 = vmul.f32 %v3927, %v2585
          %v3936 = vmul.f32 %v3927, %v2587
          %v3937 = vmul.f32 %v3927, %v2589
          %v3938 = vmul.f32 %v3927, %v2591
          %v3939 = vmul.f32 %v3927, %v2954
          %v3940 = vmul.f32 %v3927, %v3197
          %v3941 = vmul.f32 %v3927, %v3440
          %v3942 = vmul.f32 %v3927, %v3683
          %v3943 = vmul.f32 %v3927, %v3926
          %v3944 = vadd.f32 %v3909, %v3928
          %v3945 = vadd.f32 %v3910, %v3929
          %v3946 = vadd.f32 %v3911, %v3930
          %v3947 = vadd.f32 %v3912, %v3931
          %v3948 = vadd.f32 %v3913, %v3932
          %v3949 = vadd.f32 %v3914, %v3933
          %v3950 = vadd.f32 %v3915, %v3934
          %v3951 = vadd.f32 %v3916, %v3935
          %v3952 = vadd.f32 %v3917, %v3936
          %v3953 = vadd.f32 %v3918, %v3937
          %v3954 = vadd.f32 %v3919, %v3938
          %v3955 = vadd.f32 %v3920, %v3939
          %v3956 = vadd.f32 %v3921, %v3940
          %v3957 = vadd.f32 %v3922, %v3941
          %v3958 = vadd.f32 %v3923, %v3942
          %v3959 = vadd.f32 %v3924, %v3943
          %3960 = vrot.lane.b32.xlu0 %v2509, 1
          %v3961 = vpop.permute.xlu0 %3960
          %v3962 = vstv %s590
          %v3963 = vmul.f32 %v3962, %v2636
          %v3964 = vmul.f32 %v3962, %v2638
          %v3965 = vmul.f32 %v3962, %v2640
          %v3966 = vmul.f32 %v3962, %v2642
          %v3967 = vmul.f32 %v3962, %v2644
          %v3968 = vmul.f32 %v3962, %v2646
          %v3969 = vmul.f32 %v3962, %v2648
          %v3970 = vmul.f32 %v3962, %v2650
          %v3971 = vmul.f32 %v3962, %v2652
          %v3972 = vmul.f32 %v3962, %v2654
          %v3973 = vmul.f32 %v3962, %v2656
          %v3974 = vmul.f32 %v3962, %v2989
          %v3975 = vmul.f32 %v3962, %v3232
          %v3976 = vmul.f32 %v3962, %v3475
          %v3977 = vmul.f32 %v3962, %v3718
          %v3978 = vmul.f32 %v3962, %v3961
          %v3979 = vadd.f32 %v3944, %v3963
          %v3980 = vadd.f32 %v3945, %v3964
          %v3981 = vadd.f32 %v3946, %v3965
          %v3982 = vadd.f32 %v3947, %v3966
          %v3983 = vadd.f32 %v3948, %v3967
          %v3984 = vadd.f32 %v3949, %v3968
          %v3985 = vadd.f32 %v3950, %v3969
          %v3986 = vadd.f32 %v3951, %v3970
          %v3987 = vadd.f32 %v3952, %v3971
          %v3988 = vadd.f32 %v3953, %v3972
          %v3989 = vadd.f32 %v3954, %v3973
          %v3990 = vadd.f32 %v3955, %v3974
          %v3991 = vadd.f32 %v3956, %v3975
          %v3992 = vadd.f32 %v3957, %v3976
          %v3993 = vadd.f32 %v3958, %v3977
          %v3994 = vadd.f32 %v3959, %v3978
          %v3995 = vstv %s591
          %v3996 = vmul.f32 %v3995, %v2494
          %v3997 = vmul.f32 %v3995, %v2495
          %v3998 = vmul.f32 %v3995, %v2496
          %v3999 = vmul.f32 %v3995, %v2497
          %v4000 = vmul.f32 %v3995, %v2498
          %v4001 = vmul.f32 %v3995, %v2499
          %v4002 = vmul.f32 %v3995, %v2500
          %v4003 = vmul.f32 %v3995, %v2501
          %v4004 = vmul.f32 %v3995, %v2502
          %v4005 = vmul.f32 %v3995, %v2503
          %v4006 = vmul.f32 %v3995, %v2504
          %v4007 = vmul.f32 %v3995, %v2505
          %v4008 = vmul.f32 %v3995, %v2506
          %v4009 = vmul.f32 %v3995, %v2507
          %v4010 = vmul.f32 %v3995, %v2508
          %v4011 = vmul.f32 %v3995, %v2509
          %v4012 = vadd.f32 %v3979, %v3996
          %v4013 = vadd.f32 %v3980, %v3997
          %v4014 = vadd.f32 %v3981, %v3998
          %v4015 = vadd.f32 %v3982, %v3999
          %v4016 = vadd.f32 %v3983, %v4000
          %v4017 = vadd.f32 %v3984, %v4001
          %v4018 = vadd.f32 %v3985, %v4002
          %v4019 = vadd.f32 %v3986, %v4003
          %v4020 = vadd.f32 %v3987, %v4004
          %v4021 = vadd.f32 %v3988, %v4005
          %v4022 = vadd.f32 %v3989, %v4006
          %v4023 = vadd.f32 %v3990, %v4007
          %v4024 = vadd.f32 %v3991, %v4008
          %v4025 = vadd.f32 %v3992, %v4009
          %v4026 = vadd.f32 %v3993, %v4010
          %v4027 = vadd.f32 %v3994, %v4011
          %4028 = vrot.lane.b32.xlu0 %v2509, 127
          %v4029 = vpop.permute.xlu0 %4028
          %v4030 = vstv %s592
          %v4031 = vmul.f32 %v4030, %v2734
          %v4032 = vmul.f32 %v4030, %v2736
          %v4033 = vmul.f32 %v4030, %v2738
          %v4034 = vmul.f32 %v4030, %v2740
          %v4035 = vmul.f32 %v4030, %v2742
          %v4036 = vmul.f32 %v4030, %v2744
          %v4037 = vmul.f32 %v4030, %v2746
          %v4038 = vmul.f32 %v4030, %v2748
          %v4039 = vmul.f32 %v4030, %v2750
          %v4040 = vmul.f32 %v4030, %v2752
          %v4041 = vmul.f32 %v4030, %v2754
          %v4042 = vmul.f32 %v4030, %v3057
          %v4043 = vmul.f32 %v4030, %v3300
          %v4044 = vmul.f32 %v4030, %v3543
          %v4045 = vmul.f32 %v4030, %v3786
          %v4046 = vmul.f32 %v4030, %v4029
          %v4047 = vadd.f32 %v4012, %v4031
          %v4048 = vadd.f32 %v4013, %v4032
          %v4049 = vadd.f32 %v4014, %v4033
          %v4050 = vadd.f32 %v4015, %v4034
          %v4051 = vadd.f32 %v4016, %v4035
          %v4052 = vadd.f32 %v4017, %v4036
          %v4053 = vadd.f32 %v4018, %v4037
          %v4054 = vadd.f32 %v4019, %v4038
          %v4055 = vadd.f32 %v4020, %v4039
          %v4056 = vadd.f32 %v4021, %v4040
          %v4057 = vadd.f32 %v4022, %v4041
          %v4058 = vadd.f32 %v4023, %v4042
          %v4059 = vadd.f32 %v4024, %v4043
          %v4060 = vadd.f32 %v4025, %v4044
          %v4061 = vadd.f32 %v4026, %v4045
          %v4062 = vadd.f32 %v4027, %v4046
          %4063 = vrot.lane.b32.xlu0 %v2509, 126
          %v4064 = vpop.permute.xlu0 %4063
          %v4065 = vstv %s593
          %v4066 = vmul.f32 %v4065, %v2799
          %v4067 = vmul.f32 %v4065, %v2801
          %v4068 = vmul.f32 %v4065, %v2803
          %v4069 = vmul.f32 %v4065, %v2805
          %v4070 = vmul.f32 %v4065, %v2807
          %v4071 = vmul.f32 %v4065, %v2809
          %v4072 = vmul.f32 %v4065, %v2811
          %v4073 = vmul.f32 %v4065, %v2813
          %v4074 = vmul.f32 %v4065, %v2815
          %v4075 = vmul.f32 %v4065, %v2817
          %v4076 = vmul.f32 %v4065, %v2819
          %v4077 = vmul.f32 %v4065, %v3092
          %v4078 = vmul.f32 %v4065, %v3335
          %v4079 = vmul.f32 %v4065, %v3578
          %v4080 = vmul.f32 %v4065, %v3821
          %v4081 = vmul.f32 %v4065, %v4064
          %v4082 = vadd.f32 %v4047, %v4066
          %v4083 = vadd.f32 %v4048, %v4067
          %v4084 = vadd.f32 %v4049, %v4068
          %v4085 = vadd.f32 %v4050, %v4069
          %v4086 = vadd.f32 %v4051, %v4070
          %v4087 = vadd.f32 %v4052, %v4071
          %v4088 = vadd.f32 %v4053, %v4072
          %v4089 = vadd.f32 %v4054, %v4073
          %v4090 = vadd.f32 %v4055, %v4074
          %v4091 = vadd.f32 %v4056, %v4075
          %v4092 = vadd.f32 %v4057, %v4076
          %v4093 = vadd.f32 %v4058, %v4077
          %v4094 = vadd.f32 %v4059, %v4078
          %v4095 = vadd.f32 %v4060, %v4079
          %v4096 = vadd.f32 %v4061, %v4080
          %v4097 = vadd.f32 %v4062, %v4081
          %4098 = vrot.lane.b32.xlu0 %v2509, 125
          %v4099 = vpop.permute.xlu0 %4098
          %v4100 = vstv %s594
          %v4101 = vmul.f32 %v4100, %v2864
          %v4102 = vmul.f32 %v4100, %v2866
          %v4103 = vmul.f32 %v4100, %v2868
          %v4104 = vmul.f32 %v4100, %v2870
          %v4105 = vmul.f32 %v4100, %v2872
          %v4106 = vmul.f32 %v4100, %v2874
          %v4107 = vmul.f32 %v4100, %v2876
          %v4108 = vmul.f32 %v4100, %v2878
          %v4109 = vmul.f32 %v4100, %v2880
          %v4110 = vmul.f32 %v4100, %v2882
          %v4111 = vmul.f32 %v4100, %v2884
          %v4112 = vmul.f32 %v4100, %v3127
          %v4113 = vmul.f32 %v4100, %v3370
          %v4114 = vmul.f32 %v4100, %v3613
          %v4115 = vmul.f32 %v4100, %v3856
          %v4116 = vmul.f32 %v4100, %v4099
          %v4117 = vadd.f32 %v4082, %v4101
          %v4118 = vadd.f32 %v4083, %v4102
          %v4119 = vadd.f32 %v4084, %v4103
          %v4120 = vadd.f32 %v4085, %v4104
          %v4121 = vadd.f32 %v4086, %v4105
          %v4122 = vadd.f32 %v4087, %v4106
          %v4123 = vadd.f32 %v4088, %v4107
          %v4124 = vadd.f32 %v4089, %v4108
          %v4125 = vadd.f32 %v4090, %v4109
          %v4126 = vadd.f32 %v4091, %v4110
          %v4127 = vadd.f32 %v4092, %v4111
          %v4128 = vadd.f32 %v4093, %v4112
          %v4129 = vadd.f32 %v4094, %v4113
          %v4130 = vadd.f32 %v4095, %v4114
          %v4131 = vadd.f32 %v4096, %v4115
          %v4132 = vadd.f32 %v4097, %v4116
          %v4133 = vadd.f32 %v3890, %v4117
          %v4134 = vadd.f32 %v3891, %v4118
          %v4135 = vadd.f32 %v3892, %v4119
          %v4136 = vadd.f32 %v3893, %v4120
          %v4137 = vadd.f32 %v3894, %v4121
          %v4138 = vadd.f32 %v3895, %v4122
          %v4139 = vadd.f32 %v3896, %v4123
          %v4140 = vadd.f32 %v3897, %v4124
          %v4141 = vadd.f32 %v3898, %v4125
          %v4142 = vadd.f32 %v3899, %v4126
          %v4143 = vadd.f32 %v3900, %v4127
          %v4144 = vadd.f32 %v3901, %v4128
          %v4145 = vadd.f32 %v3902, %v4129
          %v4146 = vadd.f32 %v3903, %v4130
          %v4147 = vadd.f32 %v3904, %v4131
          %v4148 = vadd.f32 %v3905, %v4132
          %4149 = vrot.lane.b32.xlu0 %v2510, 3
          %v4150 = vpop.permute.xlu0 %4149
          %v4151 = vstv %s595
          %v4152 = vmul.f32 %v4151, %v2524
          %v4153 = vmul.f32 %v4151, %v2526
          %v4154 = vmul.f32 %v4151, %v2528
          %v4155 = vmul.f32 %v4151, %v2530
          %v4156 = vmul.f32 %v4151, %v2532
          %v4157 = vmul.f32 %v4151, %v2534
          %v4158 = vmul.f32 %v4151, %v2536
          %v4159 = vmul.f32 %v4151, %v2538
          %v4160 = vmul.f32 %v4151, %v2540
          %v4161 = vmul.f32 %v4151, %v2542
          %v4162 = vmul.f32 %v4151, %v2935
          %v4163 = vmul.f32 %v4151, %v3178
          %v4164 = vmul.f32 %v4151, %v3421
          %v4165 = vmul.f32 %v4151, %v3664
          %v4166 = vmul.f32 %v4151, %v3907
          %v4167 = vmul.f32 %v4151, %v4150
          %4168 = vrot.lane.b32.xlu0 %v2510, 2
          %v4169 = vpop.permute.xlu0 %4168
          %v4170 = vstv %s596
          %v4171 = vmul.f32 %v4170, %v2573
          %v4172 = vmul.f32 %v4170, %v2575
          %v4173 = vmul.f32 %v4170, %v2577
          %v4174 = vmul.f32 %v4170, %v2579
          %v4175 = vmul.f32 %v4170, %v2581
          %v4176 = vmul.f32 %v4170, %v2583
          %v4177 = vmul.f32 %v4170, %v2585
          %v4178 = vmul.f32 %v4170, %v2587
          %v4179 = vmul.f32 %v4170, %v2589
          %v4180 = vmul.f32 %v4170, %v2591
          %v4181 = vmul.f32 %v4170, %v2954
          %v4182 = vmul.f32 %v4170, %v3197
          %v4183 = vmul.f32 %v4170, %v3440
          %v4184 = vmul.f32 %v4170, %v3683
          %v4185 = vmul.f32 %v4170, %v3926
          %v4186 = vmul.f32 %v4170, %v4169
          %v4187 = vadd.f32 %v4152, %v4171
          %v4188 = vadd.f32 %v4153, %v4172
          %v4189 = vadd.f32 %v4154, %v4173
          %v4190 = vadd.f32 %v4155, %v4174
          %v4191 = vadd.f32 %v4156, %v4175
          %v4192 = vadd.f32 %v4157, %v4176
          %v4193 = vadd.f32 %v4158, %v4177
          %v4194 = vadd.f32 %v4159, %v4178
          %v4195 = vadd.f32 %v4160, %v4179
          %v4196 = vadd.f32 %v4161, %v4180
          %v4197 = vadd.f32 %v4162, %v4181
          %v4198 = vadd.f32 %v4163, %v4182
          %v4199 = vadd.f32 %v4164, %v4183
          %v4200 = vadd.f32 %v4165, %v4184
          %v4201 = vadd.f32 %v4166, %v4185
          %v4202 = vadd.f32 %v4167, %v4186
          %4203 = vrot.lane.b32.xlu0 %v2510, 1
          %v4204 = vpop.permute.xlu0 %4203
          %v4205 = vstv %s597
          %v4206 = vmul.f32 %v4205, %v2638
          %v4207 = vmul.f32 %v4205, %v2640
          %v4208 = vmul.f32 %v4205, %v2642
          %v4209 = vmul.f32 %v4205, %v2644
          %v4210 = vmul.f32 %v4205, %v2646
          %v4211 = vmul.f32 %v4205, %v2648
          %v4212 = vmul.f32 %v4205, %v2650
          %v4213 = vmul.f32 %v4205, %v2652
          %v4214 = vmul.f32 %v4205, %v2654
          %v4215 = vmul.f32 %v4205, %v2656
          %v4216 = vmul.f32 %v4205, %v2989
          %v4217 = vmul.f32 %v4205, %v3232
          %v4218 = vmul.f32 %v4205, %v3475
          %v4219 = vmul.f32 %v4205, %v3718
          %v4220 = vmul.f32 %v4205, %v3961
          %v4221 = vmul.f32 %v4205, %v4204
          %v4222 = vadd.f32 %v4187, %v4206
          %v4223 = vadd.f32 %v4188, %v4207
          %v4224 = vadd.f32 %v4189, %v4208
          %v4225 = vadd.f32 %v4190, %v4209
          %v4226 = vadd.f32 %v4191, %v4210
          %v4227 = vadd.f32 %v4192, %v4211
          %v4228 = vadd.f32 %v4193, %v4212
          %v4229 = vadd.f32 %v4194, %v4213
          %v4230 = vadd.f32 %v4195, %v4214
          %v4231 = vadd.f32 %v4196, %v4215
          %v4232 = vadd.f32 %v4197, %v4216
          %v4233 = vadd.f32 %v4198, %v4217
          %v4234 = vadd.f32 %v4199, %v4218
          %v4235 = vadd.f32 %v4200, %v4219
          %v4236 = vadd.f32 %v4201, %v4220
          %v4237 = vadd.f32 %v4202, %v4221
          %v4238 = vstv %s598
          %v4239 = vmul.f32 %v4238, %v2495
          %v4240 = vmul.f32 %v4238, %v2496
          %v4241 = vmul.f32 %v4238, %v2497
          %v4242 = vmul.f32 %v4238, %v2498
          %v4243 = vmul.f32 %v4238, %v2499
          %v4244 = vmul.f32 %v4238, %v2500
          %v4245 = vmul.f32 %v4238, %v2501
          %v4246 = vmul.f32 %v4238, %v2502
          %v4247 = vmul.f32 %v4238, %v2503
          %v4248 = vmul.f32 %v4238, %v2504
          %v4249 = vmul.f32 %v4238, %v2505
          %v4250 = vmul.f32 %v4238, %v2506
          %v4251 = vmul.f32 %v4238, %v2507
          %v4252 = vmul.f32 %v4238, %v2508
          %v4253 = vmul.f32 %v4238, %v2509
          %v4254 = vmul.f32 %v4238, %v2510
          %v4255 = vadd.f32 %v4222, %v4239
          %v4256 = vadd.f32 %v4223, %v4240
          %v4257 = vadd.f32 %v4224, %v4241
          %v4258 = vadd.f32 %v4225, %v4242
          %v4259 = vadd.f32 %v4226, %v4243
          %v4260 = vadd.f32 %v4227, %v4244
          %v4261 = vadd.f32 %v4228, %v4245
          %v4262 = vadd.f32 %v4229, %v4246
          %v4263 = vadd.f32 %v4230, %v4247
          %v4264 = vadd.f32 %v4231, %v4248
          %v4265 = vadd.f32 %v4232, %v4249
          %v4266 = vadd.f32 %v4233, %v4250
          %v4267 = vadd.f32 %v4234, %v4251
          %v4268 = vadd.f32 %v4235, %v4252
          %v4269 = vadd.f32 %v4236, %v4253
          %v4270 = vadd.f32 %v4237, %v4254
          %4271 = vrot.lane.b32.xlu0 %v2510, 127
          %v4272 = vpop.permute.xlu0 %4271
          %v4273 = vstv %s599
          %v4274 = vmul.f32 %v4273, %v2736
          %v4275 = vmul.f32 %v4273, %v2738
          %v4276 = vmul.f32 %v4273, %v2740
          %v4277 = vmul.f32 %v4273, %v2742
          %v4278 = vmul.f32 %v4273, %v2744
          %v4279 = vmul.f32 %v4273, %v2746
          %v4280 = vmul.f32 %v4273, %v2748
          %v4281 = vmul.f32 %v4273, %v2750
          %v4282 = vmul.f32 %v4273, %v2752
          %v4283 = vmul.f32 %v4273, %v2754
          %v4284 = vmul.f32 %v4273, %v3057
          %v4285 = vmul.f32 %v4273, %v3300
          %v4286 = vmul.f32 %v4273, %v3543
          %v4287 = vmul.f32 %v4273, %v3786
          %v4288 = vmul.f32 %v4273, %v4029
          %v4289 = vmul.f32 %v4273, %v4272
          %v4290 = vadd.f32 %v4255, %v4274
          %v4291 = vadd.f32 %v4256, %v4275
          %v4292 = vadd.f32 %v4257, %v4276
          %v4293 = vadd.f32 %v4258, %v4277
          %v4294 = vadd.f32 %v4259, %v4278
          %v4295 = vadd.f32 %v4260, %v4279
          %v4296 = vadd.f32 %v4261, %v4280
          %v4297 = vadd.f32 %v4262, %v4281
          %v4298 = vadd.f32 %v4263, %v4282
          %v4299 = vadd.f32 %v4264, %v4283
          %v4300 = vadd.f32 %v4265, %v4284
          %v4301 = vadd.f32 %v4266, %v4285
          %v4302 = vadd.f32 %v4267, %v4286
          %v4303 = vadd.f32 %v4268, %v4287
          %v4304 = vadd.f32 %v4269, %v4288
          %v4305 = vadd.f32 %v4270, %v4289
          %4306 = vrot.lane.b32.xlu0 %v2510, 126
          %v4307 = vpop.permute.xlu0 %4306
          %v4308 = vstv %s600
          %v4309 = vmul.f32 %v4308, %v2801
          %v4310 = vmul.f32 %v4308, %v2803
          %v4311 = vmul.f32 %v4308, %v2805
          %v4312 = vmul.f32 %v4308, %v2807
          %v4313 = vmul.f32 %v4308, %v2809
          %v4314 = vmul.f32 %v4308, %v2811
          %v4315 = vmul.f32 %v4308, %v2813
          %v4316 = vmul.f32 %v4308, %v2815
          %v4317 = vmul.f32 %v4308, %v2817
          %v4318 = vmul.f32 %v4308, %v2819
          %v4319 = vmul.f32 %v4308, %v3092
          %v4320 = vmul.f32 %v4308, %v3335
          %v4321 = vmul.f32 %v4308, %v3578
          %v4322 = vmul.f32 %v4308, %v3821
          %v4323 = vmul.f32 %v4308, %v4064
          %v4324 = vmul.f32 %v4308, %v4307
          %v4325 = vadd.f32 %v4290, %v4309
          %v4326 = vadd.f32 %v4291, %v4310
          %v4327 = vadd.f32 %v4292, %v4311
          %v4328 = vadd.f32 %v4293, %v4312
          %v4329 = vadd.f32 %v4294, %v4313
          %v4330 = vadd.f32 %v4295, %v4314
          %v4331 = vadd.f32 %v4296, %v4315
          %v4332 = vadd.f32 %v4297, %v4316
          %v4333 = vadd.f32 %v4298, %v4317
          %v4334 = vadd.f32 %v4299, %v4318
          %v4335 = vadd.f32 %v4300, %v4319
          %v4336 = vadd.f32 %v4301, %v4320
          %v4337 = vadd.f32 %v4302, %v4321
          %v4338 = vadd.f32 %v4303, %v4322
          %v4339 = vadd.f32 %v4304, %v4323
          %v4340 = vadd.f32 %v4305, %v4324
          %4341 = vrot.lane.b32.xlu0 %v2510, 125
          %v4342 = vpop.permute.xlu0 %4341
          %v4343 = vstv %s601
          %v4344 = vmul.f32 %v4343, %v2866
          %v4345 = vmul.f32 %v4343, %v2868
          %v4346 = vmul.f32 %v4343, %v2870
          %v4347 = vmul.f32 %v4343, %v2872
          %v4348 = vmul.f32 %v4343, %v2874
          %v4349 = vmul.f32 %v4343, %v2876
          %v4350 = vmul.f32 %v4343, %v2878
          %v4351 = vmul.f32 %v4343, %v2880
          %v4352 = vmul.f32 %v4343, %v2882
          %v4353 = vmul.f32 %v4343, %v2884
          %v4354 = vmul.f32 %v4343, %v3127
          %v4355 = vmul.f32 %v4343, %v3370
          %v4356 = vmul.f32 %v4343, %v3613
          %v4357 = vmul.f32 %v4343, %v3856
          %v4358 = vmul.f32 %v4343, %v4099
          %v4359 = vmul.f32 %v4343, %v4342
          %v4360 = vadd.f32 %v4325, %v4344
          %v4361 = vadd.f32 %v4326, %v4345
          %v4362 = vadd.f32 %v4327, %v4346
          %v4363 = vadd.f32 %v4328, %v4347
          %v4364 = vadd.f32 %v4329, %v4348
          %v4365 = vadd.f32 %v4330, %v4349
          %v4366 = vadd.f32 %v4331, %v4350
          %v4367 = vadd.f32 %v4332, %v4351
          %v4368 = vadd.f32 %v4333, %v4352
          %v4369 = vadd.f32 %v4334, %v4353
          %v4370 = vadd.f32 %v4335, %v4354
          %v4371 = vadd.f32 %v4336, %v4355
          %v4372 = vadd.f32 %v4337, %v4356
          %v4373 = vadd.f32 %v4338, %v4357
          %v4374 = vadd.f32 %v4339, %v4358
          %v4375 = vadd.f32 %v4340, %v4359
          %v4376 = vadd.f32 %v4133, %v4360
          %v4377 = vadd.f32 %v4134, %v4361
          %v4378 = vadd.f32 %v4135, %v4362
          %v4379 = vadd.f32 %v4136, %v4363
          %v4380 = vadd.f32 %v4137, %v4364
          %v4381 = vadd.f32 %v4138, %v4365
          %v4382 = vadd.f32 %v4139, %v4366
          %v4383 = vadd.f32 %v4140, %v4367
          %v4384 = vadd.f32 %v4141, %v4368
          %v4385 = vadd.f32 %v4142, %v4369
          %v4386 = vadd.f32 %v4143, %v4370
          %v4387 = vadd.f32 %v4144, %v4371
          %v4388 = vadd.f32 %v4145, %v4372
          %v4389 = vadd.f32 %v4146, %v4373
          %v4390 = vadd.f32 %v4147, %v4374
          %v4391 = vadd.f32 %v4148, %v4375
          %4393 = vrot.lane.b32.xlu0 %v4377, 16
          %v4394 = vpop.permute.xlu0 %4393
          %4397 = vrot.lane.b32.xlu0 %v4378, 32
          %v4398 = vpop.permute.xlu0 %4397
          %4401 = vrot.lane.b32.xlu0 %v4379, 48
          %v4402 = vpop.permute.xlu0 %4401
          %4405 = vrot.lane.b32.xlu0 %v4380, 64
          %v4406 = vpop.permute.xlu0 %4405
          %4409 = vrot.lane.b32.xlu0 %v4381, 80
          %v4410 = vpop.permute.xlu0 %4409
          %4413 = vrot.lane.b32.xlu0 %v4382, 96
          %v4414 = vpop.permute.xlu0 %4413
          %4417 = vrot.lane.b32.xlu0 %v4383, 112
          %v4418 = vpop.permute.xlu0 %4417
          %4421 = vrot.lane.b32.xlu0 %v4385, 16
          %v4422 = vpop.permute.xlu0 %4421
          %4425 = vrot.lane.b32.xlu0 %v4386, 32
          %v4426 = vpop.permute.xlu0 %4425
          %4429 = vrot.lane.b32.xlu0 %v4387, 48
          %v4430 = vpop.permute.xlu0 %4429
          %4433 = vrot.lane.b32.xlu0 %v4388, 64
          %v4434 = vpop.permute.xlu0 %4433
          %4437 = vrot.lane.b32.xlu0 %v4389, 80
          %v4438 = vpop.permute.xlu0 %4437
          %4441 = vrot.lane.b32.xlu0 %v4390, 96
          %v4442 = vpop.permute.xlu0 %4441
          %4445 = vrot.lane.b32.xlu0 %v4391, 112
          %v4446 = vpop.permute.xlu0 %4445
          %vm4448 = vcmask 130048
          %v4449 = vsel %vm4448, %v4376, %v4394
          %vm4450 = vcmask 261120
          %v4451 = vsel %vm4450, %v4449, %v4398
          %vm4452 = vcmask 392192
          %v4453 = vsel %vm4452, %v4451, %v4402
          %vm4454 = vcmask 523264
          %v4455 = vsel %vm4454, %v4453, %v4406
          %vm4456 = vcmask 654336
          %v4457 = vsel %vm4456, %v4455, %v4410
          %vm4458 = vcmask 785408
          %v4459 = vsel %vm4458, %v4457, %v4414
          %vm4460 = vcmask 916480
          %v4461 = vsel %vm4460, %v4459, %v4418
          %v4462 = vsel %vm4448, %v4384, %v4422
          %v4463 = vsel %vm4450, %v4462, %v4426
          %v4464 = vsel %vm4452, %v4463, %v4430
          %v4465 = vsel %vm4454, %v4464, %v4434
          %v4466 = vsel %vm4456, %v4465, %v4438
          %v4467 = vsel %vm4458, %v4466, %v4442
          %v4468 = vsel %vm4460, %v4467, %v4446
          %v4469 = vxor.u32 %v4461, 2147483648
          %v4470 = vxor.u32 %v4468, 2147483648
          %v4471 = vmul.f32 %v4469, 1.442695
          %v4472 = vpow.pop %v4471
          %v4473 = vmul.f32 %v4470, 1.442695
          %v4474 = vpow.pop %v4473
          %v4475 = vadd.f32 %v4472, 1.0
          %v4476 = vadd.f32 %v4474, 1.0
          %v4477 = vrcp.pop %v4475
          %v4478 = vmul.f32 1.0, %v4477
          %v4479 = vrcp.pop %v4476
          %v4480 = vmul.f32 1.0, %v4479
          %v4483 = vcombine.low %v4478, %v4480
          %v4485 = vunpack.c.l.s4 1966171168
          %v4486 = vunpack.c.0.s8 %v4485
          %v4487 = vlaneseq
          %v4488 = vshrl.u32 %v4487, 7
          %v4489 = vsub.s32 %v4486, %v4488
          %v4490 = vrot.slane %v4483, %v4489
          %v4492 = vunpack.c.l.s4 1966171168
          %v4493 = vunpack.c.0.s8 %v4492
          %v4494 = vlaneseq
          %v4495 = vshrl.u32 %v4494, 7
          %v4496 = vsub.s32 %v4493, %v4495
          %v4497 = vrot.slane %v4490, %v4496
          %4499 = vst.msk [vmem:[%s187] sm:$0x3] %vm240, %v4497
        $region44: #{tpu_custom_call.1} parent=27 // pred_fallthru
          _
        %s4500 = sand.u32 %s89, 1
        %s4501 = scalar_lea.sflag [#allocation8], %s4500
        %s4502 = sand.u32 %s89, 1
        %s4503 = smul.addr %s4502, 2
        %s4504 = scalar_lea.vmem [#allocation11], %s4503
        // Predicated region
        $region45: #{tpu_custom_call.1} parent=27 // pred_check
          %p4505 = pneg %p99
        $region46: #{tpu_custom_call.1} parent=27 // pred_check_branch
          %4507 = sbr.rel (%p4505) target = $region48
        $region47: #{tpu_custom_call.1} parent=27 // pred_region
          %s4509 = ssub.s32 32, 32
          %4510 = vsyncadd %s4501, %s4509
          %s4511 = smul.addr %s24, 2
          %s4512 = smul.addr %s4511, 16
          %s4513 = scalar_lea.hbm %s2, %s4512
          %s4515 = sshll.u32 %s4504, 4
          %s4516 = int_to_ptr.vmem [resolvable:$true] %s4515
          %4518 = dma.vmem_to_hbm [thread:$0]  %s4516, 32, %s4513, %s4501
        $region48: #{tpu_custom_call.1} parent=27 // pred_fallthru
          _
      $region28: #{tpu_custom_call.1} parent=5 // pred_fallthru
        _
      %p4519 = scmp.le.s32.totalorder 2, %s15
      // Predicated region
      $region49: #{tpu_custom_call.1} parent=5 // pred_check
        %p4520 = pneg %p4519
      $region50: #{tpu_custom_call.1} parent=5 // pred_check_branch
        %4522 = sbr.rel (%p4520) target = $region52
      $region51: #{tpu_custom_call.1} parent=5 // pred_region
        %s4523 = ssub.s32 %s15, 2
        // Predicated region
        $region53: #{tpu_custom_call.1} parent=51 // pred_check
          %p4524 = pneg %p105
        $region54: #{tpu_custom_call.1} parent=51 // pred_check_branch
          %4526 = sbr.rel (%p4524) target = $region56
        $region55: #{tpu_custom_call.1} parent=51 // pred_region
          %s4527 = sand.u32 %s90, 1
          %s4528 = scalar_lea.sflag [#allocation8], %s4527
          %s4529 = sand.u32 %s90, 1
          %s4530 = smul.addr %s4529, 2
          %s4531 = scalar_lea.vmem [#allocation11], %s4530
          %4532 = dma.done %s4528, 32
        $region56: #{tpu_custom_call.1} parent=51 // pred_fallthru
          _
      $region52: #{tpu_custom_call.1} parent=5 // pred_fallthru
        _
    $region6: #{tpu_custom_call.1} parent=1 // loop_footer
      %s19 = sadd.s32 1, %s15
    $region7: #{tpu_custom_call.1} parent=1 // loop_footer_branch
      %14 = sbr.rel target = $region3
    $region8: #{tpu_custom_call.1} parent=1 // loop_exit
      _
    %4533 = vsyncpa [#allocation7], 1
    %s4534 = scalar_lea.sflag [#allocation7], 1
    %4535 = vsyncpa %s4534, 1
    %4536 = vsyncpa [#allocation8], 1
    %s4537 = scalar_lea.sflag [#allocation8], 1
    %4538 = vsyncpa %s4537, 1
    %4539 = vsyncpa [#allocation9], 1
    %s4540 = scalar_lea.sflag [#allocation9], 1
    %4541 = vsyncpa %s4540, 1

</llo_original>
